<compile_context>
chip_gen: v7x
topology: tpu7x:2x2x1
jax: 0.10.0
libtpu: 0.0.40
codegen_flags: <defaults>
</compile_context>

<pallas_src>
import jax
import jax.numpy as jnp
from jax.experimental import pallas as pl
from jax.experimental.pallas import tpu as pltpu

HIDDEN = 512
K_PAD = 16          # first-layer contraction dim padded 9 -> 16
BN_EPS = 1e-5


def lattice_embedder_kernel(
    x_ref,            # (N, 16)        bf16 (cols 9..15 are zero padding)
    w0_ref,           # (16, 512)      bf16
    g0_ref, be0_ref,  # (1, 512) f32   BN gamma / beta of the init fc
    wl_ref,           # (1, 512, 512)  bf16  -- layer block (l-1)
    gl_ref, bel_ref,  # (1, 1, 512) f32      -- layer block (l-1)
    o_ref,            # (N, 512) f32
    h_ref,            # (N, 512) bf16 VMEM scratch: activation carried across layers
):
    l = pl.program_id(0)
    last = pl.num_programs(0) - 1
    inv_n = 1.0 / x_ref.shape[0]

    def bn_relu_store(h, gamma, beta):
        # Training-mode BatchNorm1d (biased variance, eps=1e-5) + ReLU.
        # Single statistics pass; gamma/beta folded into (1,512) scale/shift
        # so the (N,512) work is one multiply + one add + max, written out
        # directly in the consumer dtype (bf16 scratch or f32 output).
        mean = jnp.sum(h, axis=0, keepdims=True) * inv_n
        ex2 = jnp.sum(h * h, axis=0, keepdims=True) * inv_n
        var = ex2 - mean * mean                            # f32; keep f32 accumulation
        scale = gamma * jax.lax.rsqrt(var + BN_EPS)        # (1, 512) f32
        shift = beta - mean * scale                        # (1, 512) f32
        y = jnp.maximum(h * scale + shift, 0.0)

        @pl.when(l == last)
        def _():
            o_ref[...] = y.astype(o_ref.dtype)

        @pl.when(l < last)
        def _():
            h_ref[...] = y.astype(h_ref.dtype)

    @pl.when(l == 0)
    def _():
        # init fc: Linear(9->512, zero-padded to 16->512).  Bias omitted:
        # exactly cancelled by the BN mean subtraction.
        h = jnp.dot(x_ref[...], w0_ref[...], preferred_element_type=jnp.float32)
        bn_relu_store(h, g0_ref[...], be0_ref[...])

    @pl.when(l > 0)
    def _():
        # hidden block l-1: Linear(512->512) on the bf16 activation carry.
        h = jnp.dot(h_ref[...], wl_ref[0], preferred_element_type=jnp.float32)
        bn_relu_store(h, gl_ref[0], bel_ref[0])


def lattice_embedder(x, params):
    """x: (N, 9) float32 -> (N, 512) float32 (full-batch, exact training BN stats)."""
    (w0, g0, be0, wl, gl, bel) = params
    n = x.shape[0]
    num_layers = wl.shape[0]
    num_blocks = num_layers + 1

    # Pad the degenerate K=9 contraction to 16 lanes and cast to bf16 here
    # (halves the x DMA; K stays 16, padding further would only add work).
    x_p = jnp.pad(x, ((0, 0), (0, K_PAD - x.shape[1]))).astype(jnp.bfloat16)

    if num_layers == 0:
        # Dummy (never-used) layer block so the layer BlockSpecs stay in range.
        wl = jnp.zeros((1, HIDDEN, HIDDEN), jnp.bfloat16)
        gl = jnp.zeros((1, 1, HIDDEN), jnp.float32)
        bel = jnp.zeros((1, 1, HIDDEN), jnp.float32)

    resident2 = lambda l: (0, 0)                           # stays in VMEM across layers
    layer_map = lambda l: (jnp.maximum(l - 1, 0), 0, 0)    # step l uses hidden layer l-1

    in_specs = [
        pl.BlockSpec((n, K_PAD), resident2),               # x (bf16)
        pl.BlockSpec((K_PAD, HIDDEN), resident2),          # w0 (bf16)
        pl.BlockSpec((1, HIDDEN), resident2),              # g0
        pl.BlockSpec((1, HIDDEN), resident2),               # be0
        pl.BlockSpec((1, HIDDEN, HIDDEN), layer_map),       # wl (double-buffered DMA)
        pl.BlockSpec((1, 1, HIDDEN), layer_map),            # gl
        pl.BlockSpec((1, 1, HIDDEN), layer_map),            # bel
    ]
    out_specs = pl.BlockSpec((n, HIDDEN), resident2)

    # VMEM budget from the actual footprint: resident inputs + double-buffered
    # weight block + output (f32) + activation scratch (bf16) + ~4 f32 temps.
    resident_bytes = x_p.size * 2 + w0.size * 2 + (g0.size + be0.size) * 4
    wblock_bytes = 2 * (HIDDEN * HIDDEN * 2 + 2 * HIDDEN * 4)
    act_elems = n * HIDDEN
    vmem_limit = int(min(40 << 20,
                         max(16 << 20,
                             resident_bytes + wblock_bytes + act_elems * (4 + 2 + 4 * 4))))

    flops = 2 * n * (K_PAD * HIDDEN + num_layers * HIDDEN * HIDDEN)
    bytes_accessed = int(x_p.size * 2 + w0.size * 2 + wl.size * 2
                         + (g0.size + be0.size + gl.size + bel.size) * 4
                         + n * HIDDEN * 4)
    cost = pl.CostEstimate(
        flops=flops,
        transcendentals=num_blocks * HIDDEN,   # one rsqrt per BN feature per layer
        bytes_accessed=bytes_accessed,
    )

    return pl.pallas_call(
        lattice_embedder_kernel,
        out_shape=jax.ShapeDtypeStruct((n, HIDDEN), jnp.float32),
        grid_spec=pltpu.PrefetchScalarGridSpec(
            num_scalar_prefetch=0,
            grid=(num_blocks,),
            in_specs=in_specs,
            out_specs=out_specs,
            scratch_shapes=[pltpu.VMEM((n, HIDDEN), jnp.bfloat16)],
        ),
        compiler_params=pltpu.CompilerParams(
            dimension_semantics=("arbitrary",),   # layers are sequentially dependent
            vmem_limit_bytes=vmem_limit),
        cost_estimate=cost,
    )(x_p, w0, g0, be0, wl, gl, bel)


def init_params(key, num_blocks=4):
    assert num_blocks >= 1
    num_layers = num_blocks - 1
    keys = jax.random.split(key, 6)
    # Deterministic synthetic init (logical shapes match the PyTorch module).
    # Linear biases intentionally omitted: training-mode BN cancels them exactly.
    w0 = jax.random.normal(keys[0], (9, HIDDEN), jnp.float32) * (1.0 / jnp.sqrt(9.0))
    w0 = jnp.pad(w0, ((0, K_PAD - 9), (0, 0))).astype(jnp.bfloat16)
    g0 = 1.0 + 0.1 * jax.random.normal(keys[1], (1, HIDDEN), jnp.float32)
    be0 = 0.1 * jax.random.normal(keys[2], (1, HIDDEN), jnp.float32)
    wl = (jax.random.normal(keys[3], (num_layers, HIDDEN, HIDDEN), jnp.float32)
          * (1.0 / jnp.sqrt(float(HIDDEN)))).astype(jnp.bfloat16)
    gl = 1.0 + 0.1 * jax.random.normal(keys[4], (num_layers, 1, HIDDEN), jnp.float32)
    bel = 0.1 * jax.random.normal(keys[5], (num_layers, 1, HIDDEN), jnp.float32)
    return (w0, g0, be0, wl, gl, bel)


if __name__ == "__main__":
    key = jax.random.PRNGKey(0)
    k_x, k_p = jax.random.split(key)

    N = 256          # >=256 rows: fills the 256-wide MXU rows on v6e/v7x
    num_blocks = 4   # module default

    x = jax.random.normal(k_x, (N, 9), jnp.float32)
    params = init_params(k_p, num_blocks=num_blocks)

    out = jax.block_until_ready(lattice_embedder(x, params))

    assert out.shape == (N, HIDDEN)
    assert out.dtype == jnp.float32
    assert bool(jnp.all(jnp.isfinite(out)))
    print("KERNEL_OK")
</pallas_src>

<mosaic_0001>
module attributes {stable_mosaic.version = 11 : i64} {
  func.func @lattice_embedder_kernel(%arg0: i32, %arg1: memref<256x16xbf16, #tpu.memory_space<vmem>>, %arg2: memref<16x512xbf16, #tpu.memory_space<vmem>>, %arg3: memref<1x512xf32, #tpu.memory_space<vmem>>, %arg4: memref<1x512xf32, #tpu.memory_space<vmem>>, %arg5: memref<1x512x512xbf16, #tpu.memory_space<vmem>>, %arg6: memref<1x1x512xf32, #tpu.memory_space<vmem>>, %arg7: memref<1x1x512xf32, #tpu.memory_space<vmem>>, %arg8: memref<256x512xf32, #tpu.memory_space<vmem>>, %arg9: memref<256x512xbf16, #tpu.memory_space<vmem>>) attributes {dimension_semantics = [#tpu.dimension_semantics<arbitrary>], iteration_bounds = array<i64: 4>, scalar_prefetch = 0 : i64, scratch_operands = 1 : i64, tpu.core_type = #tpu.core_type<tc>, window_params = [{pipeline_mode = #tpu.pipeline_mode<synchronous>, transform_indices = @transform_0, window_bounds = array<i64: 256, 16>}, {pipeline_mode = #tpu.pipeline_mode<synchronous>, transform_indices = @transform_1, window_bounds = array<i64: 16, 512>}, {pipeline_mode = #tpu.pipeline_mode<synchronous>, transform_indices = @transform_2, window_bounds = array<i64: 1, 512>}, {pipeline_mode = #tpu.pipeline_mode<synchronous>, transform_indices = @transform_3, window_bounds = array<i64: 1, 512>}, {transform_indices = @transform_4, window_bounds = array<i64: 1, 512, 512>}, {transform_indices = @transform_5, window_bounds = array<i64: 1, 1, 512>}, {transform_indices = @transform_6, window_bounds = array<i64: 1, 1, 512>}, {pipeline_mode = #tpu.pipeline_mode<synchronous>, transform_indices = @transform_7, window_bounds = array<i64: 256, 512>}]} {
    %c0_i32 = arith.constant 0 : i32
    %0 = arith.cmpi eq, %arg0, %c0_i32 : i32
    %1 = arith.extui %0 : i1 to i32
    %c0_i32_0 = arith.constant 0 : i32
    %2 = arith.cmpi ne, %1, %c0_i32_0 : i32
    scf.if %2 {
      %c0 = arith.constant 0 : index
      %c0_3 = arith.constant 0 : index
      %6 = vector.load %arg1[%c0, %c0_3] : memref<256x16xbf16, #tpu.memory_space<vmem>>, vector<256x16xbf16>
      %c0_4 = arith.constant 0 : index
      %c0_5 = arith.constant 0 : index
      %7 = vector.load %arg2[%c0_4, %c0_5] : memref<16x512xbf16, #tpu.memory_space<vmem>>, vector<16x512xbf16>
      %cst = arith.constant dense<0.000000e+00> : vector<256x512xf32>
      %8 = tpu.matmul %6, %7, %cst {dimension_numbers = #tpu.dot_dimension_numbers<[1], [0], [0], [1], [0, 0, 1, 1], [], []>} : vector<256x16xbf16>, vector<16x512xbf16>, vector<256x512xf32> -> vector<256x512xf32>
      %c0_6 = arith.constant 0 : index
      %c0_7 = arith.constant 0 : index
      %9 = vector.load %arg3[%c0_6, %c0_7] : memref<1x512xf32, #tpu.memory_space<vmem>>, vector<1x512xf32>
      %c0_8 = arith.constant 0 : index
      %c0_9 = arith.constant 0 : index
      %10 = vector.load %arg4[%c0_8, %c0_9] : memref<1x512xf32, #tpu.memory_space<vmem>>, vector<1x512xf32>
      %cst_10 = arith.constant dense<0.000000e+00> : vector<512xf32>
      %11 = vector.multi_reduction <add>, %8, %cst_10 [0] : vector<256x512xf32> to vector<512xf32>
      %12 = vector.shape_cast %11 : vector<512xf32> to vector<1x512xf32>
      %cst_11 = arith.constant 3.906250e-03 : f32
      %13 = vector.broadcast %cst_11 : f32 to vector<1x512xf32>
      %14 = arith.mulf %12, %13 : vector<1x512xf32>
      %15 = arith.mulf %8, %8 : vector<256x512xf32>
      %cst_12 = arith.constant dense<0.000000e+00> : vector<512xf32>
      %16 = vector.multi_reduction <add>, %15, %cst_12 [0] : vector<256x512xf32> to vector<512xf32>
      %17 = vector.shape_cast %16 : vector<512xf32> to vector<1x512xf32>
      %cst_13 = arith.constant 3.906250e-03 : f32
      %18 = vector.broadcast %cst_13 : f32 to vector<1x512xf32>
      %19 = arith.mulf %17, %18 : vector<1x512xf32>
      %20 = arith.mulf %14, %14 : vector<1x512xf32>
      %21 = arith.subf %19, %20 : vector<1x512xf32>
      %cst_14 = arith.constant 9.99999974E-6 : f32
      %22 = vector.broadcast %cst_14 : f32 to vector<1x512xf32>
      %23 = arith.addf %21, %22 : vector<1x512xf32>
      %24 = math.rsqrt %23 : vector<1x512xf32>
      %25 = arith.mulf %9, %24 : vector<1x512xf32>
      %26 = arith.mulf %14, %25 : vector<1x512xf32>
      %27 = arith.subf %10, %26 : vector<1x512xf32>
      %28 = vector.broadcast %25 : vector<1x512xf32> to vector<256x512xf32>
      %29 = arith.mulf %8, %28 : vector<256x512xf32>
      %30 = vector.broadcast %27 : vector<1x512xf32> to vector<256x512xf32>
      %31 = arith.addf %29, %30 : vector<256x512xf32>
      %cst_15 = arith.constant 0.000000e+00 : f32
      %32 = vector.broadcast %cst_15 : f32 to vector<256x512xf32>
      %33 = arith.maximumf %31, %32 : vector<256x512xf32>
      %c3_i32 = arith.constant 3 : i32
      %34 = arith.cmpi eq, %arg0, %c3_i32 : i32
      %35 = arith.extui %34 : i1 to i32
      %c0_i32_16 = arith.constant 0 : i32
      %36 = arith.cmpi ne, %35, %c0_i32_16 : i32
      scf.if %36 {
        %c0_19 = arith.constant 0 : index
        %c0_20 = arith.constant 0 : index
        %40 = vector.load %arg8[%c0_19, %c0_20] : memref<256x512xf32, #tpu.memory_space<vmem>>, vector<256x512xf32>
        tpu.vector_store %arg8[%c0_19, %c0_20], %33 {strides = array<i32>} : memref<256x512xf32, #tpu.memory_space<vmem>>, vector<256x512xf32>,
      } else {
      }
      %c3_i32_17 = arith.constant 3 : i32
      %37 = arith.cmpi slt, %arg0, %c3_i32_17 : i32
      %38 = arith.extui %37 : i1 to i32
      %c0_i32_18 = arith.constant 0 : i32
      %39 = arith.cmpi ne, %38, %c0_i32_18 : i32
      scf.if %39 {
        %40 = arith.truncf %33 : vector<256x512xf32> to vector<256x512xbf16>
        %c0_19 = arith.constant 0 : index
        %c0_20 = arith.constant 0 : index
        %41 = vector.load %arg9[%c0_19, %c0_20] : memref<256x512xbf16, #tpu.memory_space<vmem>>, vector<256x512xbf16>
        tpu.vector_store %arg9[%c0_19, %c0_20], %40 {strides = array<i32>} : memref<256x512xbf16, #tpu.memory_space<vmem>>, vector<256x512xbf16>,
      } else {
      }
    } else {
    }
    %c0_i32_1 = arith.constant 0 : i32
    %3 = arith.cmpi sgt, %arg0, %c0_i32_1 : i32
    %4 = arith.extui %3 : i1 to i32
    %c0_i32_2 = arith.constant 0 : i32
    %5 = arith.cmpi ne, %4, %c0_i32_2 : i32
    scf.if %5 {
      %c0 = arith.constant 0 : index
      %c0_3 = arith.constant 0 : index
      %6 = vector.load %arg9[%c0, %c0_3] : memref<256x512xbf16, #tpu.memory_space<vmem>>, vector<256x512xbf16>
      %c0_4 = arith.constant 0 : index
      %c0_5 = arith.constant 0 : index
      %c0_6 = arith.constant 0 : index
      %7 = vector.load %arg5[%c0_4, %c0_5, %c0_6] : memref<1x512x512xbf16, #tpu.memory_space<vmem>>, vector<1x512x512xbf16>
      %8 = vector.shape_cast %7 : vector<1x512x512xbf16> to vector<512x512xbf16>
      %cst = arith.constant dense<0.000000e+00> : vector<256x512xf32>
      %9 = tpu.matmul %6, %8, %cst {dimension_numbers = #tpu.dot_dimension_numbers<[1], [0], [0], [1], [0, 0, 1, 1], [], []>} : vector<256x512xbf16>, vector<512x512xbf16>, vector<256x512xf32> -> vector<256x512xf32>
      %c0_7 = arith.constant 0 : index
      %c0_8 = arith.constant 0 : index
      %c0_9 = arith.constant 0 : index
      %10 = vector.load %arg6[%c0_7, %c0_8, %c0_9] : memref<1x1x512xf32, #tpu.memory_space<vmem>>, vector<1x1x512xf32>
      %11 = vector.shape_cast %10 : vector<1x1x512xf32> to vector<1x512xf32>
      %c0_10 = arith.constant 0 : index
      %c0_11 = arith.constant 0 : index
      %c0_12 = arith.constant 0 : index
      %12 = vector.load %arg7[%c0_10, %c0_11, %c0_12] : memref<1x1x512xf32, #tpu.memory_space<vmem>>, vector<1x1x512xf32>
      %13 = vector.shape_cast %12 : vector<1x1x512xf32> to vector<1x512xf32>
      %cst_13 = arith.constant dense<0.000000e+00> : vector<512xf32>
      %14 = vector.multi_reduction <add>, %9, %cst_13 [0] : vector<256x512xf32> to vector<512xf32>
      %15 = vector.shape_cast %14 : vector<512xf32> to vector<1x512xf32>
      %cst_14 = arith.constant 3.906250e-03 : f32
      %16 = vector.broadcast %cst_14 : f32 to vector<1x512xf32>
      %17 = arith.mulf %15, %16 : vector<1x512xf32>
      %18 = arith.mulf %9, %9 : vector<256x512xf32>
      %cst_15 = arith.constant dense<0.000000e+00> : vector<512xf32>
      %19 = vector.multi_reduction <add>, %18, %cst_15 [0] : vector<256x512xf32> to vector<512xf32>
      %20 = vector.shape_cast %19 : vector<512xf32> to vector<1x512xf32>
      %cst_16 = arith.constant 3.906250e-03 : f32
      %21 = vector.broadcast %cst_16 : f32 to vector<1x512xf32>
      %22 = arith.mulf %20, %21 : vector<1x512xf32>
      %23 = arith.mulf %17, %17 : vector<1x512xf32>
      %24 = arith.subf %22, %23 : vector<1x512xf32>
      %cst_17 = arith.constant 9.99999974E-6 : f32
      %25 = vector.broadcast %cst_17 : f32 to vector<1x512xf32>
      %26 = arith.addf %24, %25 : vector<1x512xf32>
      %27 = math.rsqrt %26 : vector<1x512xf32>
      %28 = arith.mulf %11, %27 : vector<1x512xf32>
      %29 = arith.mulf %17, %28 : vector<1x512xf32>
      %30 = arith.subf %13, %29 : vector<1x512xf32>
      %31 = vector.broadcast %28 : vector<1x512xf32> to vector<256x512xf32>
      %32 = arith.mulf %9, %31 : vector<256x512xf32>
      %33 = vector.broadcast %30 : vector<1x512xf32> to vector<256x512xf32>
      %34 = arith.addf %32, %33 : vector<256x512xf32>
      %cst_18 = arith.constant 0.000000e+00 : f32
      %35 = vector.broadcast %cst_18 : f32 to vector<256x512xf32>
      %36 = arith.maximumf %34, %35 : vector<256x512xf32>
      %c3_i32 = arith.constant 3 : i32
      %37 = arith.cmpi eq, %arg0, %c3_i32 : i32
      %38 = arith.extui %37 : i1 to i32
      %c0_i32_19 = arith.constant 0 : i32
      %39 = arith.cmpi ne, %38, %c0_i32_19 : i32
      scf.if %39 {
        %c0_22 = arith.constant 0 : index
        %c0_23 = arith.constant 0 : index
        %43 = vector.load %arg8[%c0_22, %c0_23] : memref<256x512xf32, #tpu.memory_space<vmem>>, vector<256x512xf32>
        tpu.vector_store %arg8[%c0_22, %c0_23], %36 {strides = array<i32>} : memref<256x512xf32, #tpu.memory_space<vmem>>, vector<256x512xf32>,
      } else {
      }
      %c3_i32_20 = arith.constant 3 : i32
      %40 = arith.cmpi slt, %arg0, %c3_i32_20 : i32
      %41 = arith.extui %40 : i1 to i32
      %c0_i32_21 = arith.constant 0 : i32
      %42 = arith.cmpi ne, %41, %c0_i32_21 : i32
      scf.if %42 {
        %43 = arith.truncf %36 : vector<256x512xf32> to vector<256x512xbf16>
        %c0_22 = arith.constant 0 : index
        %c0_23 = arith.constant 0 : index
        %44 = vector.load %arg9[%c0_22, %c0_23] : memref<256x512xbf16, #tpu.memory_space<vmem>>, vector<256x512xbf16>
        tpu.vector_store %arg9[%c0_22, %c0_23], %43 {strides = array<i32>} : memref<256x512xbf16, #tpu.memory_space<vmem>>, vector<256x512xbf16>,
      } else {
      }
    } else {
    }
    return
  }
  func.func @transform_0(%arg0: i32) -> (i32, i32) {
    %c0_i32 = arith.constant 0 : i32
    %c0_i32_0 = arith.constant 0 : i32
    %c0_i32_1 = arith.constant 0 : i32
    return %c0_i32, %c0_i32_0 : i32, i32
  }
  func.func @transform_1(%arg0: i32) -> (i32, i32) {
    %c0_i32 = arith.constant 0 : i32
    %c0_i32_0 = arith.constant 0 : i32
    %c0_i32_1 = arith.constant 0 : i32
    return %c0_i32, %c0_i32_0 : i32, i32
  }
  func.func @transform_2(%arg0: i32) -> (i32, i32) {
    %c0_i32 = arith.constant 0 : i32
    %c0_i32_0 = arith.constant 0 : i32
    %c0_i32_1 = arith.constant 0 : i32
    return %c0_i32, %c0_i32_0 : i32, i32
  }
  func.func @transform_3(%arg0: i32) -> (i32, i32) {
    %c0_i32 = arith.constant 0 : i32
    %c0_i32_0 = arith.constant 0 : i32
    %c0_i32_1 = arith.constant 0 : i32
    return %c0_i32, %c0_i32_0 : i32, i32
  }
  func.func @transform_4(%arg0: i32) -> (i32, i32, i32) {
    %c1_i32 = arith.constant 1 : i32
    %0 = arith.subi %arg0, %c1_i32 : i32
    %c0_i32 = arith.constant 0 : i32
    %1 = arith.maxsi %0, %c0_i32 : i32
    %c0_i32_0 = arith.constant 0 : i32
    %c0_i32_1 = arith.constant 0 : i32
    %c0_i32_2 = arith.constant 0 : i32
    return %1, %c0_i32_0, %c0_i32_1 : i32, i32, i32
  }
  func.func @transform_5(%arg0: i32) -> (i32, i32, i32) {
    %c1_i32 = arith.constant 1 : i32
    %0 = arith.subi %arg0, %c1_i32 : i32
    %c0_i32 = arith.constant 0 : i32
    %1 = arith.maxsi %0, %c0_i32 : i32
    %c0_i32_0 = arith.constant 0 : i32
    %c0_i32_1 = arith.constant 0 : i32
    %c0_i32_2 = arith.constant 0 : i32
    return %1, %c0_i32_0, %c0_i32_1 : i32, i32, i32
  }
  func.func @transform_6(%arg0: i32) -> (i32, i32, i32) {
    %c1_i32 = arith.constant 1 : i32
    %0 = arith.subi %arg0, %c1_i32 : i32
    %c0_i32 = arith.constant 0 : i32
    %1 = arith.maxsi %0, %c0_i32 : i32
    %c0_i32_0 = arith.constant 0 : i32
    %c0_i32_1 = arith.constant 0 : i32
    %c0_i32_2 = arith.constant 0 : i32
    return %1, %c0_i32_0, %c0_i32_1 : i32, i32, i32
  }
  func.func @transform_7(%arg0: i32) -> (i32, i32) {
    %c0_i32 = arith.constant 0 : i32
    %c0_i32_0 = arith.constant 0 : i32
    %c0_i32_1 = arith.constant 0 : i32
    return %c0_i32, %c0_i32_0 : i32, i32
  }
}

</mosaic_0001>

<llo_original>
// kernel: tpu_custom_call.1
$region0: #{tpu_custom_call.1}
  #allocation0 [shape = 'u32[]', space=smem, size = 0x4, offset = 0x4, fixed_abs, tag = 'smem constant byte address 0x4 - core index']
  #allocation1 [shape = 'u32[144,128]{1,0:T(1,128)}', space=vmem, size = 0x12000, scoped, tag = 'internal scratch']
  #allocation2 [shape = 'bf16[256,512]{1,0:T(16,128)(2,1)}', space=vmem, size = 0x40000, scoped, tag = 'scratch operand']
  %s0 = inlined_call_operand.vmem [shape: bf16[256,16], index: 0, kind: input, shape index: {}]
  %s1 = inlined_call_operand.hbm [shape: bf16[16,512], index: 1, kind: input, shape index: {}]
  %s2 = inlined_call_operand.hbm [shape: f32[1,512], index: 2, kind: input, shape index: {}]
  %s3 = inlined_call_operand.hbm [shape: f32[1,512], index: 3, kind: input, shape index: {}]
  %s4 = inlined_call_operand.hbm [shape: bf16[3,512,512], index: 4, kind: input, shape index: {}]
  %s5 = inlined_call_operand.hbm [shape: f32[3,1,512], index: 5, kind: input, shape index: {}]
  %s6 = inlined_call_operand.hbm [shape: f32[3,1,512], index: 6, kind: input, shape index: {}]
  %s7 = inlined_call_operand.hbm [shape: f32[256,512], index: 7, kind: output, shape index: {}]
  %s8 = sld [smem:[#allocation0]]
  $region109: #{tpu_custom_call.1} parent=0
    _
  %s10 = ssub.s32 1, %s8
  %s11 = scalar_select 0, %s10, %s8
  $region1: #{tpu_custom_call.1} parent=0
    #allocation3 [shape = 'u8[16384]{0}', space=vmem, size = 0x4000, scoped, tag = 'input window, operand 1, single buffered']
    #allocation4 [shape = 's32[2]{0}', space=sflag, size = 0x8, scoped, tag = 'scoped memory for tpu_custom_call.1']
    #allocation5 [shape = 's32[2]{0}', space=sflag, size = 0x8, scoped, tag = 'scoped memory for tpu_custom_call.1']
    #allocation6 [shape = 'u8[2048]{0}', space=vmem, size = 0x800, scoped, tag = 'input window, operand 2, single buffered']
    #allocation7 [shape = 's32[1]{0}', space=sflag, size = 0x4, scoped, tag = 'scoped memory for tpu_custom_call.1']
    #allocation8 [shape = 'u8[2048]{0}', space=vmem, size = 0x800, scoped, tag = 'input window, operand 3, single buffered']
    #allocation9 [shape = 'u8[1048576]{0}', space=vmem, size = 0x100000, scoped, tag = 'input window, operand 4']
    #allocation10 [shape = 's32[2]{0}', space=sflag, size = 0x8, scoped, tag = 'scoped memory for tpu_custom_call.1']
    #allocation11 [shape = 'u8[4096]{0}', space=vmem, size = 0x1000, scoped, tag = 'input window, operand 5']
    #allocation12 [shape = 'u8[4096]{0}', space=vmem, size = 0x1000, scoped, tag = 'input window, operand 6']
    #allocation13 [shape = 's32[2]{0}', space=sflag, size = 0x8, scoped, tag = 'scoped memory for tpu_custom_call.1']
    #allocation14 [shape = 'u8[524288]{0}', space=vmem, size = 0x80000, scoped, tag = 'output window, operand 0, single buffered']
    %12 = vsyncpa [#allocation4], 0
    %13 = vsyncpa [#allocation7], 0
    %14 = vsyncpa [#allocation10], 0
    %s15 = scalar_lea.sflag [#allocation10], 1
    %16 = vsyncpa %s15, 0
    %17 = vsyncpa [#allocation13], 0
    %s18 = scalar_lea.sflag [#allocation13], 1
    %19 = vsyncpa %s18, 0
    %20 = vsyncpa [#allocation5], 0
    loop: start=0, step=1, limit=6
    $region2: #{tpu_custom_call.1} parent=1 // loop_pre_header
      _
    $region3: #{tpu_custom_call.1} parent=1 // loop_header
      %s22 = sphi 0, %s26
      %p23 = scmp.ge.s32.totalorder %s22, 6
      %s30 = sphi 0, %s30
      %s32 = sphi 0, %s30
      %s33 = sphi 0, %s32
      %s47 = sphi 0, %s33
      %s51 = sphi 0, %s51
      %s53 = sphi 0, %s51
      %s54 = sphi 0, %s53
      %s68 = sphi 0, %s54
      %s72 = sphi 0, %s72
      %s74 = sphi 0, %s72
      %s75 = sphi 0, %s74
      %s89 = sphi 0, %s75
      %s93 = sphi 0, %s93
      %s95 = sphi 0, %s93
      %s96 = sphi 0, %s95
      %s110 = sphi 0, %s96
      %s122 = sphi 0, %s124
      %s125 = sphi 0, %s122
      %s126 = sphi 0, %s125
      %s142 = sphi 0, %s126
      %s154 = sphi 0, %s156
      %s157 = sphi 0, %s154
      %s158 = sphi 0, %s157
      %s174 = sphi 0, %s158
      %s186 = sphi 0, %s188
      %s189 = sphi 0, %s186
      %s190 = sphi 0, %s189
      %s206 = sphi 0, %s190
      %s210 = sphi 0, %s210
      %s212 = sphi 0, %s210
      %s213 = sphi 0, %s212
      %s227 = sphi 0, %s213
    $region4: #{tpu_custom_call.1} parent=1 // loop_header_branch
      %25 = sbr.rel (%p23) target = $region8
    $region5: #{tpu_custom_call.1} parent=1 // loop_body
      %s27 = ssub.s32 %s22, 1
      %s28 = ssub.s32 %s22, 2
      %s29 = sadd.s32 %s22, 1
      %s31 = sadd.s32 %s30, 1
      %p34 = scmp.eq.s32.totalorder %s22, 3
      %p35 = scmp.ne.s32.totalorder %s30, %s32
      %p36 = scmp.eq.s32.totalorder %s22, 0
      %p37 = por %p35, %p36
      %p38 = scmp.ne.s32.totalorder %s30, %s32
      %p39 = scmp.eq.s32.totalorder %s27, 3
      %p40 = por %p38, %p39
      %p41 = scmp.ne.s32.totalorder %s32, %s33
      %p42 = scmp.eq.s32.totalorder %s27, 0
      %p43 = por %p41, %p42
      %p44 = scmp.ne.s32.totalorder %s32, %s33
      %p45 = scmp.eq.s32.totalorder %s28, 3
      %p46 = por %p44, %p45
      %p48 = scmp.ne.s32.totalorder %s33, %s47
      %p49 = scmp.eq.s32.totalorder %s28, 0
      %p50 = por %p48, %p49
      %s52 = sadd.s32 %s51, 1
      %p55 = scmp.eq.s32.totalorder %s22, 3
      %p56 = scmp.ne.s32.totalorder %s51, %s53
      %p57 = scmp.eq.s32.totalorder %s22, 0
      %p58 = por %p56, %p57
      %p59 = scmp.ne.s32.totalorder %s51, %s53
      %p60 = scmp.eq.s32.totalorder %s27, 3
      %p61 = por %p59, %p60
      %p62 = scmp.ne.s32.totalorder %s53, %s54
      %p63 = scmp.eq.s32.totalorder %s27, 0
      %p64 = por %p62, %p63
      %p65 = scmp.ne.s32.totalorder %s53, %s54
      %p66 = scmp.eq.s32.totalorder %s28, 3
      %p67 = por %p65, %p66
      %p69 = scmp.ne.s32.totalorder %s54, %s68
      %p70 = scmp.eq.s32.totalorder %s28, 0
      %p71 = por %p69, %p70
      %s73 = sadd.s32 %s72, 1
      %p76 = scmp.eq.s32.totalorder %s22, 3
      %p77 = scmp.ne.s32.totalorder %s72, %s74
      %p78 = scmp.eq.s32.totalorder %s22, 0
      %p79 = por %p77, %p78
      %p80 = scmp.ne.s32.totalorder %s72, %s74
      %p81 = scmp.eq.s32.totalorder %s27, 3
      %p82 = por %p80, %p81
      %p83 = scmp.ne.s32.totalorder %s74, %s75
      %p84 = scmp.eq.s32.totalorder %s27, 0
      %p85 = por %p83, %p84
      %p86 = scmp.ne.s32.totalorder %s74, %s75
      %p87 = scmp.eq.s32.totalorder %s28, 3
      %p88 = por %p86, %p87
      %p90 = scmp.ne.s32.totalorder %s75, %s89
      %p91 = scmp.eq.s32.totalorder %s28, 0
      %p92 = por %p90, %p91
      %s94 = sadd.s32 %s93, 1
      %p97 = scmp.eq.s32.totalorder %s22, 3
      %p98 = scmp.ne.s32.totalorder %s93, %s95
      %p99 = scmp.eq.s32.totalorder %s22, 0
      %p100 = por %p98, %p99
      %p101 = scmp.ne.s32.totalorder %s93, %s95
      %p102 = scmp.eq.s32.totalorder %s27, 3
      %p103 = por %p101, %p102
      %p104 = scmp.ne.s32.totalorder %s95, %s96
      %p105 = scmp.eq.s32.totalorder %s27, 0
      %p106 = por %p104, %p105
      %p107 = scmp.ne.s32.totalorder %s95, %s96
      %p108 = scmp.eq.s32.totalorder %s28, 3
      %p109 = por %p107, %p108
      %p111 = scmp.ne.s32.totalorder %s96, %s110
      %p112 = scmp.eq.s32.totalorder %s28, 0
      %p113 = por %p111, %p112
      %s114 = ssub.s32 %s22, 1
      %p115 = scmp.gt.s32.totalorder %s114, 0
      %s116 = scalar_select %p115, %s114, 0
      %s117 = ssub.s32 %s29, 1
      %p118 = scmp.gt.s32.totalorder %s117, 0
      %s119 = scalar_select %p118, %s117, 0
      %s120 = ssub.s32 %s116, %s119
      %p121 = scmp.eq.s32.totalorder %s120, 0
      %s123 = sadd.s32 %s122, 1
      %s124 = scalar_select %p121, %s122, %s123
      %p127 = pneg %p121
      %p128 = scmp.eq.s32.totalorder %s22, 3
      %p129 = por %p127, %p128
      %p130 = scmp.ne.s32.totalorder %s122, %s125
      %p131 = scmp.eq.s32.totalorder %s22, 0
      %p132 = por %p130, %p131
      %p133 = scmp.ne.s32.totalorder %s122, %s125
      %p134 = scmp.eq.s32.totalorder %s27, 3
      %p135 = por %p133, %p134
      %p136 = scmp.ne.s32.totalorder %s125, %s126
      %p137 = scmp.eq.s32.totalorder %s27, 0
      %p138 = por %p136, %p137
      %p139 = scmp.ne.s32.totalorder %s125, %s126
      %p140 = scmp.eq.s32.totalorder %s28, 3
      %p141 = por %p139, %p140
      %p143 = scmp.ne.s32.totalorder %s126, %s142
      %p144 = scmp.eq.s32.totalorder %s28, 0
      %p145 = por %p143, %p144
      %s146 = ssub.s32 %s22, 1
      %p147 = scmp.gt.s32.totalorder %s146, 0
      %s148 = scalar_select %p147, %s146, 0
      %s149 = ssub.s32 %s29, 1
      %p150 = scmp.gt.s32.totalorder %s149, 0
      %s151 = scalar_select %p150, %s149, 0
      %s152 = ssub.s32 %s148, %s151
      %p153 = scmp.eq.s32.totalorder %s152, 0
      %s155 = sadd.s32 %s154, 1
      %s156 = scalar_select %p153, %s154, %s155
      %p159 = pneg %p153
      %p160 = scmp.eq.s32.totalorder %s22, 3
      %p161 = por %p159, %p160
      %p162 = scmp.ne.s32.totalorder %s154, %s157
      %p163 = scmp.eq.s32.totalorder %s22, 0
      %p164 = por %p162, %p163
      %p165 = scmp.ne.s32.totalorder %s154, %s157
      %p166 = scmp.eq.s32.totalorder %s27, 3
      %p167 = por %p165, %p166
      %p168 = scmp.ne.s32.totalorder %s157, %s158
      %p169 = scmp.eq.s32.totalorder %s27, 0
      %p170 = por %p168, %p169
      %p171 = scmp.ne.s32.totalorder %s157, %s158
      %p172 = scmp.eq.s32.totalorder %s28, 3
      %p173 = por %p171, %p172
      %p175 = scmp.ne.s32.totalorder %s158, %s174
      %p176 = scmp.eq.s32.totalorder %s28, 0
      %p177 = por %p175, %p176
      %s178 = ssub.s32 %s22, 1
      %p179 = scmp.gt.s32.totalorder %s178, 0
      %s180 = scalar_select %p179, %s178, 0
      %s181 = ssub.s32 %s29, 1
      %p182 = scmp.gt.s32.totalorder %s181, 0
      %s183 = scalar_select %p182, %s181, 0
      %s184 = ssub.s32 %s180, %s183
      %p185 = scmp.eq.s32.totalorder %s184, 0
      %s187 = sadd.s32 %s186, 1
      %s188 = scalar_select %p185, %s186, %s187
      %p191 = pneg %p185
      %p192 = scmp.eq.s32.totalorder %s22, 3
      %p193 = por %p191, %p192
      %p194 = scmp.ne.s32.totalorder %s186, %s189
      %p195 = scmp.eq.s32.totalorder %s22, 0
      %p196 = por %p194, %p195
      %p197 = scmp.ne.s32.totalorder %s186, %s189
      %p198 = scmp.eq.s32.totalorder %s27, 3
      %p199 = por %p197, %p198
      %p200 = scmp.ne.s32.totalorder %s189, %s190
      %p201 = scmp.eq.s32.totalorder %s27, 0
      %p202 = por %p200, %p201
      %p203 = scmp.ne.s32.totalorder %s189, %s190
      %p204 = scmp.eq.s32.totalorder %s28, 3
      %p205 = por %p203, %p204
      %p207 = scmp.ne.s32.totalorder %s190, %s206
      %p208 = scmp.eq.s32.totalorder %s28, 0
      %p209 = por %p207, %p208
      %s211 = sadd.s32 %s210, 1
      %p214 = scmp.eq.s32.totalorder %s22, 3
      %p215 = scmp.ne.s32.totalorder %s210, %s212
      %p216 = scmp.eq.s32.totalorder %s22, 0
      %p217 = por %p215, %p216
      %p218 = scmp.ne.s32.totalorder %s210, %s212
      %p219 = scmp.eq.s32.totalorder %s27, 3
      %p220 = por %p218, %p219
      %p221 = scmp.ne.s32.totalorder %s212, %s213
      %p222 = scmp.eq.s32.totalorder %s27, 0
      %p223 = por %p221, %p222
      %p224 = scmp.ne.s32.totalorder %s212, %s213
      %p225 = scmp.eq.s32.totalorder %s28, 3
      %p226 = por %p224, %p225
      %p228 = scmp.ne.s32.totalorder %s213, %s227
      %p229 = scmp.eq.s32.totalorder %s28, 0
      %p230 = por %p228, %p229
      %p231 = scmp.le.s32.totalorder 1, %s22
      %p232 = scmp.lt.s32.totalorder %s22, 5
      %p233 = pnand %p231, %p232
      %p234 = pneg %p233
      // Predicated region
      $region9: #{tpu_custom_call.1} parent=5 // pred_check
        _
      $region10: #{tpu_custom_call.1} parent=5 // pred_check_branch
        %236 = sbr.rel (%p233) target = $region12
      $region11: #{tpu_custom_call.1} parent=5 // pred_region
        %s237 = ssub.s32 %s22, 1
        // Predicated region
        $region13: #{tpu_custom_call.1} parent=11 // pred_check
          %p238 = pneg %p43
        $region14: #{tpu_custom_call.1} parent=11 // pred_check_branch
          %240 = sbr.rel (%p238) target = $region16
        $region15: #{tpu_custom_call.1} parent=11 // pred_region
          _
        $region16: #{tpu_custom_call.1} parent=11 // pred_fallthru
          _
        // Predicated region
        $region17: #{tpu_custom_call.1} parent=11 // pred_check
          %p241 = pneg %p64
        $region18: #{tpu_custom_call.1} parent=11 // pred_check_branch
          %243 = sbr.rel (%p241) target = $region20
        $region19: #{tpu_custom_call.1} parent=11 // pred_region
          %s245 = ssub.s32 512, 512
          %246 = vsyncadd [#allocation4], %s245
          %s247 = sshll.u32 [#allocation3], 4
          %s248 = int_to_ptr.vmem [resolvable:$true] %s247
          %253 = dma.hbm_to_vmem [thread:$0]  %s1, 512, %s248, [#allocation4], 256, 256, 16
        $region20: #{tpu_custom_call.1} parent=11 // pred_fallthru
          _
        // Predicated region
        $region21: #{tpu_custom_call.1} parent=11 // pred_check
          %p254 = pneg %p85
        $region22: #{tpu_custom_call.1} parent=11 // pred_check_branch
          %256 = sbr.rel (%p254) target = $region24
        $region23: #{tpu_custom_call.1} parent=11 // pred_region
          %s258 = ssub.s32 64, 64
          %259 = vsyncadd [#allocation7], %s258
          %s261 = sshll.u32 [#allocation6], 4
          %s262 = int_to_ptr.vmem [resolvable:$true] %s261
          %264 = dma.hbm_to_vmem [thread:$0]  %s2, 64, %s262, [#allocation7]
        $region24: #{tpu_custom_call.1} parent=11 // pred_fallthru
          _
        // Predicated region
        $region25: #{tpu_custom_call.1} parent=11 // pred_check
          %p265 = pneg %p106
        $region26: #{tpu_custom_call.1} parent=11 // pred_check_branch
          %267 = sbr.rel (%p265) target = $region28
        $region27: #{tpu_custom_call.1} parent=11 // pred_region
          %s269 = ssub.s32 64, 64
          %270 = vsyncadd [#allocation7], %s269
          %s272 = sshll.u32 [#allocation8], 4
          %s273 = int_to_ptr.vmem [resolvable:$true] %s272
          %275 = dma.hbm_to_vmem [thread:$0]  %s3, 64, %s273, [#allocation7]
        $region28: #{tpu_custom_call.1} parent=11 // pred_fallthru
          _
      $region12: #{tpu_custom_call.1} parent=5 // pred_fallthru
        _
      %p276 = scmp.lt.s32.totalorder %s22, 4
      // Predicated region
      $region29: #{tpu_custom_call.1} parent=5 // pred_check
        %p277 = pneg %p276
      $region30: #{tpu_custom_call.1} parent=5 // pred_check_branch
        %279 = sbr.rel (%p277) target = $region32
      $region31: #{tpu_custom_call.1} parent=5 // pred_region
        // Predicated region
        $region33: #{tpu_custom_call.1} parent=31 // pred_check
          %p280 = pneg %p132
        $region34: #{tpu_custom_call.1} parent=31 // pred_check_branch
          %282 = sbr.rel (%p280) target = $region36
        $region35: #{tpu_custom_call.1} parent=31 // pred_region
          %s283 = sand.u32 %s22, 1
          %s284 = scalar_lea.sflag [#allocation10], %s283
          %s285 = sand.u32 %s122, 1
          %s286 = smul.addr %s285, 1024
          %s287 = scalar_lea.vmem [#allocation9], %s286
          %s288 = ssub.s32 %s22, 1
          %p289 = scmp.gt.s32.totalorder %s288, 0
          %s290 = scalar_select %p289, %s288, 0
          %s292 = ssub.s32 16384, 16384
          %293 = vsyncadd %s284, %s292
          %s294 = smul.addr %s290, 256
          %s295 = smul.addr %s294, 64
          %s296 = scalar_lea.hbm %s4, %s295
          %s297 = sshll.u32 %s287, 4
          %s298 = int_to_ptr.vmem [resolvable:$true] %s297
          %303 = dma.hbm_to_vmem [thread:$0]  %s296, 16384, %s298, %s284, 256, 256, 16
        $region36: #{tpu_custom_call.1} parent=31 // pred_fallthru
          _
        // Predicated region
        $region37: #{tpu_custom_call.1} parent=31 // pred_check
          %p304 = pneg %p164
        $region38: #{tpu_custom_call.1} parent=31 // pred_check_branch
          %306 = sbr.rel (%p304) target = $region40
        $region39: #{tpu_custom_call.1} parent=31 // pred_region
          %s307 = sand.u32 %s22, 1
          %s308 = scalar_lea.sflag [#allocation10], %s307
          %s309 = sand.u32 %s154, 1
          %s310 = smul.addr %s309, 4
          %s311 = scalar_lea.vmem [#allocation11], %s310
          %s312 = ssub.s32 %s22, 1
          %p313 = scmp.gt.s32.totalorder %s312, 0
          %s314 = scalar_select %p313, %s312, 0
          %s316 = ssub.s32 64, 64
          %317 = vsyncadd %s308, %s316
          %s318 = smul.addr %s314, 4
          %s319 = smul.addr %s318, 16
          %s320 = scalar_lea.hbm %s5, %s319
          %s322 = sshll.u32 %s311, 4
          %s323 = int_to_ptr.vmem [resolvable:$true] %s322
          %325 = dma.hbm_to_vmem [thread:$0]  %s320, 64, %s323, %s308
        $region40: #{tpu_custom_call.1} parent=31 // pred_fallthru
          _
        // Predicated region
        $region41: #{tpu_custom_call.1} parent=31 // pred_check
          %p326 = pneg %p196
        $region42: #{tpu_custom_call.1} parent=31 // pred_check_branch
          %328 = sbr.rel (%p326) target = $region44
        $region43: #{tpu_custom_call.1} parent=31 // pred_region
          %s329 = sand.u32 %s186, 1
          %s330 = scalar_lea.sflag [#allocation13], %s329
          %s331 = sand.u32 %s186, 1
          %s332 = smul.addr %s331, 4
          %s333 = scalar_lea.vmem [#allocation12], %s332
          %s334 = ssub.s32 %s22, 1
          %p335 = scmp.gt.s32.totalorder %s334, 0
          %s336 = scalar_select %p335, %s334, 0
          %s338 = ssub.s32 64, 64
          %339 = vsyncadd %s330, %s338
          %s340 = smul.addr %s336, 4
          %s341 = smul.addr %s340, 16
          %s342 = scalar_lea.hbm %s6, %s341
          %s344 = sshll.u32 %s333, 4
          %s345 = int_to_ptr.vmem [resolvable:$true] %s344
          %347 = dma.hbm_to_vmem [thread:$0]  %s342, 64, %s345, %s330
        $region44: #{tpu_custom_call.1} parent=31 // pred_fallthru
          _
      $region32: #{tpu_custom_call.1} parent=5 // pred_fallthru
        _
      %p348 = scmp.le.s32.totalorder 1, %s22
      %p349 = scmp.lt.s32.totalorder %s22, 5
      %p350 = pnand %p348, %p349
      %p351 = pneg %p350
      // Predicated region
      $region45: #{tpu_custom_call.1} parent=5 // pred_check
        _
      $region46: #{tpu_custom_call.1} parent=5 // pred_check_branch
        %353 = sbr.rel (%p350) target = $region48
      $region47: #{tpu_custom_call.1} parent=5 // pred_region
        %s354 = ssub.s32 %s22, 1
        // Predicated region
        $region49: #{tpu_custom_call.1} parent=47 // pred_check
          %p355 = pneg %p64
        $region50: #{tpu_custom_call.1} parent=47 // pred_check_branch
          %357 = sbr.rel (%p355) target = $region52
        $region51: #{tpu_custom_call.1} parent=47 // pred_region
          %358 = dma.done [#allocation4], 512
        $region52: #{tpu_custom_call.1} parent=47 // pred_fallthru
          _
        // Predicated region
        $region53: #{tpu_custom_call.1} parent=47 // pred_check
          %p359 = pneg %p85
        $region54: #{tpu_custom_call.1} parent=47 // pred_check_branch
          %361 = sbr.rel (%p359) target = $region56
        $region55: #{tpu_custom_call.1} parent=47 // pred_region
          %362 = dma.done [#allocation7], 64
        $region56: #{tpu_custom_call.1} parent=47 // pred_fallthru
          _
        // Predicated region
        $region57: #{tpu_custom_call.1} parent=47 // pred_check
          %p363 = pneg %p106
        $region58: #{tpu_custom_call.1} parent=47 // pred_check_branch
          %365 = sbr.rel (%p363) target = $region60
        $region59: #{tpu_custom_call.1} parent=47 // pred_region
          %366 = dma.done [#allocation7], 64
        $region60: #{tpu_custom_call.1} parent=47 // pred_fallthru
          _
        %s367 = sand.u32 %s27, 1
        %s368 = scalar_lea.sflag [#allocation10], %s367
        %s369 = sand.u32 %s125, 1
        %s370 = smul.addr %s369, 1024
        %s371 = scalar_lea.vmem [#allocation9], %s370
        // Predicated region
        $region61: #{tpu_custom_call.1} parent=47 // pred_check
          %p372 = pneg %p138
        $region62: #{tpu_custom_call.1} parent=47 // pred_check_branch
          %374 = sbr.rel (%p372) target = $region64
        $region63: #{tpu_custom_call.1} parent=47 // pred_region
          %375 = dma.done %s368, 16384
        $region64: #{tpu_custom_call.1} parent=47 // pred_fallthru
          _
        %s376 = sand.u32 %s27, 1
        %s377 = scalar_lea.sflag [#allocation10], %s376
        %s378 = sand.u32 %s157, 1
        %s379 = smul.addr %s378, 4
        %s380 = scalar_lea.vmem [#allocation11], %s379
        // Predicated region
        $region65: #{tpu_custom_call.1} parent=47 // pred_check
          %p381 = pneg %p170
        $region66: #{tpu_custom_call.1} parent=47 // pred_check_branch
          %383 = sbr.rel (%p381) target = $region68
        $region67: #{tpu_custom_call.1} parent=47 // pred_region
          %384 = dma.done %s377, 64
        $region68: #{tpu_custom_call.1} parent=47 // pred_fallthru
          _
        %s385 = sand.u32 %s189, 1
        %s386 = scalar_lea.sflag [#allocation13], %s385
        %s387 = sand.u32 %s189, 1
        %s388 = smul.addr %s387, 4
        %s389 = scalar_lea.vmem [#allocation12], %s388
        // Predicated region
        $region69: #{tpu_custom_call.1} parent=47 // pred_check
          %p390 = pneg %p202
        $region70: #{tpu_custom_call.1} parent=47 // pred_check_branch
          %392 = sbr.rel (%p390) target = $region72
        $region71: #{tpu_custom_call.1} parent=47 // pred_region
          %393 = dma.done %s386, 64
        $region72: #{tpu_custom_call.1} parent=47 // pred_fallthru
          _
        %p394 = pneg %p43
        %p395 = pneg %p40
        %p396 = pneg %p64
        %p397 = pneg %p61
        %p398 = pneg %p85
        %p399 = pneg %p82
        %p400 = pneg %p106
        %p401 = pneg %p103
        %s402 = sand.u32 %s27, 1
        %s403 = scalar_lea.sflag [#allocation10], %s402
        %s404 = sand.u32 %s125, 1
        %s405 = smul.addr %s404, 1024
        %s406 = scalar_lea.vmem [#allocation9], %s405
        %p407 = pneg %p138
        %p408 = pneg %p135
        %s409 = sand.u32 %s27, 1
        %s410 = scalar_lea.sflag [#allocation10], %s409
        %s411 = sand.u32 %s157, 1
        %s412 = smul.addr %s411, 4
        %s413 = scalar_lea.vmem [#allocation11], %s412
        %p414 = pneg %p170
        %p415 = pneg %p167
        %s416 = sand.u32 %s189, 1
        %s417 = scalar_lea.sflag [#allocation13], %s416
        %s418 = sand.u32 %s189, 1
        %s419 = smul.addr %s418, 4
        %s420 = scalar_lea.vmem [#allocation12], %s419
        %p421 = pneg %p202
        %p422 = pneg %p199
        %p423 = pneg %p223
        %p424 = pneg %p220
        %s425 = ssub.s32 %s27, 1
        %p426 = scmp.gt.s32.totalorder %s425, 0
        %s427 = scalar_select %p426, %s425, 0
        %s428 = ssub.s32 %s27, 1
        %p429 = scmp.gt.s32.totalorder %s428, 0
        %s430 = scalar_select %p429, %s428, 0
        %s431 = ssub.s32 %s27, 1
        %p432 = scmp.gt.s32.totalorder %s431, 0
        %s433 = scalar_select %p432, %s431, 0
        %p435 = scmp.eq.s32.totalorder %s27, 0
        // Predicated region
        $region73: #{tpu_custom_call.1} parent=47 // pred_check
          %p436 = pneg %p435
        $region74: #{tpu_custom_call.1} parent=47 // pred_check_branch
          %438 = sbr.rel (%p436) target = $region76
        $region75: #{tpu_custom_call.1} parent=47 // pred_region
          %v439 = vld [vmem:[%s0] sm:$0xf]
          %v440 = vld [vmem:[%s0 + $0x4] sm:$0xf]
          %v441 = vld [vmem:[%s0 + $0x8] sm:$0xf]
          %v442 = vld [vmem:[%s0 + $0xc] sm:$0xf]
          %v443 = vld [vmem:[%s0 + $0x10] sm:$0xf]
          %v444 = vld [vmem:[%s0 + $0x14] sm:$0xf]
          %v445 = vld [vmem:[%s0 + $0x18] sm:$0xf]
          %v446 = vld [vmem:[%s0 + $0x1c] sm:$0xf]
          %v447 = vld [vmem:[%s0 + $0x20] sm:$0xf]
          %v448 = vld [vmem:[%s0 + $0x24] sm:$0xf]
          %v449 = vld [vmem:[%s0 + $0x28] sm:$0xf]
          %v450 = vld [vmem:[%s0 + $0x2c] sm:$0xf]
          %v451 = vld [vmem:[%s0 + $0x30] sm:$0xf]
          %v452 = vld [vmem:[%s0 + $0x34] sm:$0xf]
          %v453 = vld [vmem:[%s0 + $0x38] sm:$0xf]
          %v454 = vld [vmem:[%s0 + $0x3c] sm:$0xf]
          %v455 = vld [vmem:[%s0 + $0x40] sm:$0xf]
          %v456 = vld [vmem:[%s0 + $0x44] sm:$0xf]
          %v457 = vld [vmem:[%s0 + $0x48] sm:$0xf]
          %v458 = vld [vmem:[%s0 + $0x4c] sm:$0xf]
          %v459 = vld [vmem:[%s0 + $0x50] sm:$0xf]
          %v460 = vld [vmem:[%s0 + $0x54] sm:$0xf]
          %v461 = vld [vmem:[%s0 + $0x58] sm:$0xf]
          %v462 = vld [vmem:[%s0 + $0x5c] sm:$0xf]
          %v463 = vld [vmem:[%s0 + $0x60] sm:$0xf]
          %v464 = vld [vmem:[%s0 + $0x64] sm:$0xf]
          %v465 = vld [vmem:[%s0 + $0x68] sm:$0xf]
          %v466 = vld [vmem:[%s0 + $0x6c] sm:$0xf]
          %v467 = vld [vmem:[%s0 + $0x70] sm:$0xf]
          %v468 = vld [vmem:[%s0 + $0x74] sm:$0xf]
          %v469 = vld [vmem:[%s0 + $0x78] sm:$0xf]
          %v470 = vld [vmem:[%s0 + $0x7c] sm:$0xf]
          %v471 = vld [vmem:[#allocation3] sm:$0xff]
          %v472 = vld [vmem:[#allocation3 + $0x8] sm:$0xff]
          %v473 = vld [vmem:[#allocation3 + $0x10] sm:$0xff]
          %v474 = vld [vmem:[#allocation3 + $0x18] sm:$0xff]
          %v507 = vunpack.c.l.b16 %v439
          %v508 = vunpack.c.l.b16 %v440
          %v509 = vunpack.c.l.b16 %v441
          %v510 = vunpack.c.l.b16 %v442
          %v511 = vunpack.c.l.b16 %v443
          %v512 = vunpack.c.l.b16 %v444
          %v513 = vunpack.c.l.b16 %v445
          %v514 = vunpack.c.l.b16 %v446
          %v515 = vunpack.c.l.b16 %v447
          %v516 = vunpack.c.l.b16 %v448
          %v517 = vunpack.c.l.b16 %v449
          %v518 = vunpack.c.l.b16 %v450
          %v519 = vunpack.c.l.b16 %v451
          %v520 = vunpack.c.l.b16 %v452
          %v521 = vunpack.c.l.b16 %v453
          %v522 = vunpack.c.l.b16 %v454
          %v523 = vunpack.c.l.b16 %v455
          %v524 = vunpack.c.l.b16 %v456
          %v525 = vunpack.c.l.b16 %v457
          %v526 = vunpack.c.l.b16 %v458
          %v527 = vunpack.c.l.b16 %v459
          %v528 = vunpack.c.l.b16 %v460
          %v529 = vunpack.c.l.b16 %v461
          %v530 = vunpack.c.l.b16 %v462
          %v531 = vunpack.c.l.b16 %v463
          %v532 = vunpack.c.l.b16 %v464
          %v533 = vunpack.c.l.b16 %v465
          %v534 = vunpack.c.l.b16 %v466
          %v535 = vunpack.c.l.b16 %v467
          %v536 = vunpack.c.l.b16 %v468
          %v537 = vunpack.c.l.b16 %v469
          %v538 = vunpack.c.l.b16 %v470
          %v539 = vpack.c.b16 %v508, %v507
          %v540 = vpack.c.b16 %v510, %v509
          %v541 = vpack.c.b16 %v512, %v511
          %v542 = vpack.c.b16 %v514, %v513
          %v543 = vpack.c.b16 %v516, %v515
          %v544 = vpack.c.b16 %v518, %v517
          %v545 = vpack.c.b16 %v520, %v519
          %v546 = vpack.c.b16 %v522, %v521
          %v547 = vpack.c.b16 %v524, %v523
          %v548 = vpack.c.b16 %v526, %v525
          %v549 = vpack.c.b16 %v528, %v527
          %v550 = vpack.c.b16 %v530, %v529
          %v551 = vpack.c.b16 %v532, %v531
          %v552 = vpack.c.b16 %v534, %v533
          %v553 = vpack.c.b16 %v536, %v535
          %v554 = vpack.c.b16 %v538, %v537
          %v559 = vunpack.c.l.b16 %v471
          %v560 = vunpack.c.h.b16 %v471
          %v561 = vunpack.c.l.b16 %v472
          %v562 = vunpack.c.h.b16 %v472
          %v563 = vunpack.c.l.b16 %v473
          %v564 = vunpack.c.h.b16 %v473
          %v565 = vunpack.c.l.b16 %v474
          %v566 = vunpack.c.h.b16 %v474
          %v567 = vpack.c.b16 %v563, %v559
          %v568 = vpack.c.b16 %v564, %v560
          %v569 = vpack.c.b16 %v565, %v561
          %v570 = vpack.c.b16 %v566, %v562
          %vm575 = vcmask 130048
          %v577 = vsel %vm575, %v539, 0
          %v580 = vsel %vm575, %v540, 0
          %v583 = vsel %vm575, %v541, 0
          %v586 = vsel %vm575, %v542, 0
          %v589 = vsel %vm575, %v543, 0
          %v592 = vsel %vm575, %v544, 0
          %v595 = vsel %vm575, %v545, 0
          %v598 = vsel %vm575, %v546, 0
          %v601 = vsel %vm575, %v547, 0
          %v604 = vsel %vm575, %v548, 0
          %v607 = vsel %vm575, %v549, 0
          %v610 = vsel %vm575, %v550, 0
          %v613 = vsel %vm575, %v551, 0
          %v616 = vsel %vm575, %v552, 0
          %v619 = vsel %vm575, %v553, 0
          %v622 = vsel %vm575, %v554, 0
          %624 = vmatprep.subr.bf16.mxu0 %v568
          %625 = vmatpush1.bf16.msra.mxu0 %v567
          %626 = vmatprep.subr.bf16.mxu0 0
          %627 = vmatpush1.bf16.msra.mxu0 0
          %628 = vmatprep.subr.bf16.mxu0 0
          %629 = vmatpush1.bf16.msra.mxu0 0
          %630 = vmatprep.subr.bf16.mxu0 0
          %631 = vmatpush1.bf16.msra.mxu0 0
          %632 = vmatprep.subr.bf16.mxu0 0
          %633 = vmatpush1.bf16.msra.mxu0 0
          %634 = vmatprep.subr.bf16.mxu0 0
          %635 = vmatpush1.bf16.msra.mxu0 0
          %636 = vmatprep.subr.bf16.mxu0 0
          %637 = vmatpush1.bf16.msra.mxu0 0
          %638 = vmatprep.subr.bf16.mxu0 0
          %639 = vmatpush1.bf16.msra.mxu0 0
          %640 = vmatprep.subr.bf16.mxu0 0
          %641 = vmatpush1.bf16.msra.mxu0 0
          %642 = vmatprep.subr.bf16.mxu0 0
          %643 = vmatpush1.bf16.msra.mxu0 0
          %644 = vmatprep.subr.bf16.mxu0 0
          %645 = vmatpush1.bf16.msra.mxu0 0
          %646 = vmatprep.subr.bf16.mxu0 0
          %647 = vmatpush1.bf16.msra.mxu0 0
          %648 = vmatprep.subr.bf16.mxu0 0
          %649 = vmatpush1.bf16.msra.mxu0 0
          %650 = vmatprep.subr.bf16.mxu0 0
          %651 = vmatpush1.bf16.msra.mxu0 0
          %652 = vmatprep.subr.bf16.mxu0 0
          %653 = vmatpush1.bf16.msra.mxu0 0
          %654 = vmatprep.subr.bf16.mxu0 0
          %655 = vmatpush1.bf16.msra.mxu0 0
          %656 = vmatprep.mubr.bf16.mxu0 0
          %657 = vmatmul.mubr.bf16.gmra.mrb[0].mxu0 %v577
          %v658 = vpop.f32.mrb[0].mxu0
          %v659 = vadd.f32 0.0, %v658
          %v660 = vpop.f32.mrb[0].mxu0
          %v661 = vadd.f32 0.0, %v660
          %v662 = vpop.f32.mrb[0].mxu0
          %v663 = vadd.f32 0.0, %v662
          %v664 = vpop.f32.mrb[0].mxu0
          %v665 = vadd.f32 0.0, %v664
          %666 = vmatprep.mubr.bf16.mxu0 0
          %667 = vmatmul.mubr.bf16.gmra.mrb[0].mxu0 %v580
          %v668 = vpop.f32.mrb[0].mxu0
          %v669 = vadd.f32 0.0, %v668
          %v670 = vpop.f32.mrb[0].mxu0
          %v671 = vadd.f32 0.0, %v670
          %v672 = vpop.f32.mrb[0].mxu0
          %v673 = vadd.f32 0.0, %v672
          %v674 = vpop.f32.mrb[0].mxu0
          %v675 = vadd.f32 0.0, %v674
          %676 = vmatprep.mubr.bf16.mxu0 0
          %677 = vmatmul.mubr.bf16.gmra.mrb[0].mxu0 %v583
          %v678 = vpop.f32.mrb[0].mxu0
          %v679 = vadd.f32 0.0, %v678
          %v680 = vpop.f32.mrb[0].mxu0
          %v681 = vadd.f32 0.0, %v680
          %v682 = vpop.f32.mrb[0].mxu0
          %v683 = vadd.f32 0.0, %v682
          %v684 = vpop.f32.mrb[0].mxu0
          %v685 = vadd.f32 0.0, %v684
          %686 = vmatprep.mubr.bf16.mxu0 0
          %687 = vmatmul.mubr.bf16.gmra.mrb[0].mxu0 %v586
          %v688 = vpop.f32.mrb[0].mxu0
          %v689 = vadd.f32 0.0, %v688
          %v690 = vpop.f32.mrb[0].mxu0
          %v691 = vadd.f32 0.0, %v690
          %v692 = vpop.f32.mrb[0].mxu0
          %v693 = vadd.f32 0.0, %v692
          %v694 = vpop.f32.mrb[0].mxu0
          %v695 = vadd.f32 0.0, %v694
          %696 = vmatprep.mubr.bf16.mxu0 0
          %697 = vmatmul.mubr.bf16.gmra.mrb[0].mxu0 %v589
          %v698 = vpop.f32.mrb[0].mxu0
          %v699 = vadd.f32 0.0, %v698
          %v700 = vpop.f32.mrb[0].mxu0
          %v701 = vadd.f32 0.0, %v700
          %v702 = vpop.f32.mrb[0].mxu0
          %v703 = vadd.f32 0.0, %v702
          %v704 = vpop.f32.mrb[0].mxu0
          %v705 = vadd.f32 0.0, %v704
          %706 = vmatprep.mubr.bf16.mxu0 0
          %707 = vmatmul.mubr.bf16.gmra.mrb[0].mxu0 %v592
          %v708 = vpop.f32.mrb[0].mxu0
          %v709 = vadd.f32 0.0, %v708
          %v710 = vpop.f32.mrb[0].mxu0
          %v711 = vadd.f32 0.0, %v710
          %v712 = vpop.f32.mrb[0].mxu0
          %v713 = vadd.f32 0.0, %v712
          %v714 = vpop.f32.mrb[0].mxu0
          %v715 = vadd.f32 0.0, %v714
          %716 = vmatprep.mubr.bf16.mxu0 0
          %717 = vmatmul.mubr.bf16.gmra.mrb[0].mxu0 %v595
          %v718 = vpop.f32.mrb[0].mxu0
          %v719 = vadd.f32 0.0, %v718
          %v720 = vpop.f32.mrb[0].mxu0
          %v721 = vadd.f32 0.0, %v720
          %v722 = vpop.f32.mrb[0].mxu0
          %v723 = vadd.f32 0.0, %v722
          %v724 = vpop.f32.mrb[0].mxu0
          %v725 = vadd.f32 0.0, %v724
          %726 = vmatprep.mubr.bf16.mxu0 0
          %727 = vmatmul.mubr.bf16.gmra.mrb[0].mxu0 %v598
          %v728 = vpop.f32.mrb[0].mxu0
          %v729 = vadd.f32 0.0, %v728
          %v730 = vpop.f32.mrb[0].mxu0
          %v731 = vadd.f32 0.0, %v730
          %v732 = vpop.f32.mrb[0].mxu0
          %v733 = vadd.f32 0.0, %v732
          %v734 = vpop.f32.mrb[0].mxu0
          %v735 = vadd.f32 0.0, %v734
          %736 = vmatprep.mubr.bf16.mxu0 0
          %737 = vmatmul.mubr.bf16.gmra.mrb[0].mxu0 %v601
          %v738 = vpop.f32.mrb[0].mxu0
          %v739 = vadd.f32 0.0, %v738
          %v740 = vpop.f32.mrb[0].mxu0
          %v741 = vadd.f32 0.0, %v740
          %v742 = vpop.f32.mrb[0].mxu0
          %v743 = vadd.f32 0.0, %v742
          %v744 = vpop.f32.mrb[0].mxu0
          %v745 = vadd.f32 0.0, %v744
          %746 = vmatprep.mubr.bf16.mxu0 0
          %747 = vmatmul.mubr.bf16.gmra.mrb[0].mxu0 %v604
          %v748 = vpop.f32.mrb[0].mxu0
          %v749 = vadd.f32 0.0, %v748
          %v750 = vpop.f32.mrb[0].mxu0
          %v751 = vadd.f32 0.0, %v750
          %v752 = vpop.f32.mrb[0].mxu0
          %v753 = vadd.f32 0.0, %v752
          %v754 = vpop.f32.mrb[0].mxu0
          %v755 = vadd.f32 0.0, %v754
          %756 = vmatprep.mubr.bf16.mxu0 0
          %757 = vmatmul.mubr.bf16.gmra.mrb[0].mxu0 %v607
          %v758 = vpop.f32.mrb[0].mxu0
          %v759 = vadd.f32 0.0, %v758
          %v760 = vpop.f32.mrb[0].mxu0
          %v761 = vadd.f32 0.0, %v760
          %v762 = vpop.f32.mrb[0].mxu0
          %v763 = vadd.f32 0.0, %v762
          %v764 = vpop.f32.mrb[0].mxu0
          %v765 = vadd.f32 0.0, %v764
          %766 = vmatprep.mubr.bf16.mxu0 0
          %767 = vmatmul.mubr.bf16.gmra.mrb[0].mxu0 %v610
          %v768 = vpop.f32.mrb[0].mxu0
          %v769 = vadd.f32 0.0, %v768
          %v770 = vpop.f32.mrb[0].mxu0
          %v771 = vadd.f32 0.0, %v770
          %v772 = vpop.f32.mrb[0].mxu0
          %v773 = vadd.f32 0.0, %v772
          %v774 = vpop.f32.mrb[0].mxu0
          %v775 = vadd.f32 0.0, %v774
          %776 = vmatprep.mubr.bf16.mxu0 0
          %777 = vmatmul.mubr.bf16.gmra.mrb[0].mxu0 %v613
          %v778 = vpop.f32.mrb[0].mxu0
          %v779 = vadd.f32 0.0, %v778
          %v780 = vpop.f32.mrb[0].mxu0
          %v781 = vadd.f32 0.0, %v780
          %v782 = vpop.f32.mrb[0].mxu0
          %v783 = vadd.f32 0.0, %v782
          %v784 = vpop.f32.mrb[0].mxu0
          %v785 = vadd.f32 0.0, %v784
          %786 = vmatprep.mubr.bf16.mxu0 0
          %787 = vmatmul.mubr.bf16.gmra.mrb[0].mxu0 %v616
          %v788 = vpop.f32.mrb[0].mxu0
          %v789 = vadd.f32 0.0, %v788
          %v790 = vpop.f32.mrb[0].mxu0
          %v791 = vadd.f32 0.0, %v790
          %v792 = vpop.f32.mrb[0].mxu0
          %v793 = vadd.f32 0.0, %v792
          %v794 = vpop.f32.mrb[0].mxu0
          %v795 = vadd.f32 0.0, %v794
          %796 = vmatprep.mubr.bf16.mxu0 0
          %797 = vmatmul.mubr.bf16.gmra.mrb[0].mxu0 %v619
          %v798 = vpop.f32.mrb[0].mxu0
          %v799 = vadd.f32 0.0, %v798
          %v800 = vpop.f32.mrb[0].mxu0
          %v801 = vadd.f32 0.0, %v800
          %v802 = vpop.f32.mrb[0].mxu0
          %v803 = vadd.f32 0.0, %v802
          %v804 = vpop.f32.mrb[0].mxu0
          %v805 = vadd.f32 0.0, %v804
          %806 = vmatprep.mubr.bf16.mxu0 0
          %807 = vmatmul.mubr.bf16.gmra.mrb[0].mxu0 %v622
          %v808 = vpop.f32.mrb[0].mxu0
          %v809 = vadd.f32 0.0, %v808
          %v810 = vpop.f32.mrb[0].mxu0
          %v811 = vadd.f32 0.0, %v810
          %v812 = vpop.f32.mrb[0].mxu0
          %v813 = vadd.f32 0.0, %v812
          %v814 = vpop.f32.mrb[0].mxu0
          %v815 = vadd.f32 0.0, %v814
          %816 = vdwg.mxu0
          %817 = vmatprep.subr.bf16.mxu0 %v570
          %818 = vmatpush1.bf16.msra.mxu0 %v569
          %819 = vmatprep.subr.bf16.mxu0 0
          %820 = vmatpush1.bf16.msra.mxu0 0
          %821 = vmatprep.subr.bf16.mxu0 0
          %822 = vmatpush1.bf16.msra.mxu0 0
          %823 = vmatprep.subr.bf16.mxu0 0
          %824 = vmatpush1.bf16.msra.mxu0 0
          %825 = vmatprep.subr.bf16.mxu0 0
          %826 = vmatpush1.bf16.msra.mxu0 0
          %827 = vmatprep.subr.bf16.mxu0 0
          %828 = vmatpush1.bf16.msra.mxu0 0
          %829 = vmatprep.subr.bf16.mxu0 0
          %830 = vmatpush1.bf16.msra.mxu0 0
          %831 = vmatprep.subr.bf16.mxu0 0
          %832 = vmatpush1.bf16.msra.mxu0 0
          %833 = vmatprep.subr.bf16.mxu0 0
          %834 = vmatpush1.bf16.msra.mxu0 0
          %835 = vmatprep.subr.bf16.mxu0 0
          %836 = vmatpush1.bf16.msra.mxu0 0
          %837 = vmatprep.subr.bf16.mxu0 0
          %838 = vmatpush1.bf16.msra.mxu0 0
          %839 = vmatprep.subr.bf16.mxu0 0
          %840 = vmatpush1.bf16.msra.mxu0 0
          %841 = vmatprep.subr.bf16.mxu0 0
          %842 = vmatpush1.bf16.msra.mxu0 0
          %843 = vmatprep.subr.bf16.mxu0 0
          %844 = vmatpush1.bf16.msra.mxu0 0
          %845 = vmatprep.subr.bf16.mxu0 0
          %846 = vmatpush1.bf16.msra.mxu0 0
          %847 = vmatprep.subr.bf16.mxu0 0
          %848 = vmatpush1.bf16.msra.mxu0 0
          %849 = vmatprep.mubr.bf16.mxu0 0
          %850 = vmatmul.mubr.bf16.gmra.mrb[0].mxu0 %v577
          %v851 = vpop.f32.mrb[0].mxu0
          %v852 = vadd.f32 0.0, %v851
          %v853 = vpop.f32.mrb[0].mxu0
          %v854 = vadd.f32 0.0, %v853
          %v855 = vpop.f32.mrb[0].mxu0
          %v856 = vadd.f32 0.0, %v855
          %v857 = vpop.f32.mrb[0].mxu0
          %v858 = vadd.f32 0.0, %v857
          %859 = vmatprep.mubr.bf16.mxu0 0
          %860 = vmatmul.mubr.bf16.gmra.mrb[0].mxu0 %v580
          %v861 = vpop.f32.mrb[0].mxu0
          %v862 = vadd.f32 0.0, %v861
          %v863 = vpop.f32.mrb[0].mxu0
          %v864 = vadd.f32 0.0, %v863
          %v865 = vpop.f32.mrb[0].mxu0
          %v866 = vadd.f32 0.0, %v865
          %v867 = vpop.f32.mrb[0].mxu0
          %v868 = vadd.f32 0.0, %v867
          %869 = vmatprep.mubr.bf16.mxu0 0
          %870 = vmatmul.mubr.bf16.gmra.mrb[0].mxu0 %v583
          %v871 = vpop.f32.mrb[0].mxu0
          %v872 = vadd.f32 0.0, %v871
          %v873 = vpop.f32.mrb[0].mxu0
          %v874 = vadd.f32 0.0, %v873
          %v875 = vpop.f32.mrb[0].mxu0
          %v876 = vadd.f32 0.0, %v875
          %v877 = vpop.f32.mrb[0].mxu0
          %v878 = vadd.f32 0.0, %v877
          %879 = vmatprep.mubr.bf16.mxu0 0
          %880 = vmatmul.mubr.bf16.gmra.mrb[0].mxu0 %v586
          %v881 = vpop.f32.mrb[0].mxu0
          %v882 = vadd.f32 0.0, %v881
          %v883 = vpop.f32.mrb[0].mxu0
          %v884 = vadd.f32 0.0, %v883
          %v885 = vpop.f32.mrb[0].mxu0
          %v886 = vadd.f32 0.0, %v885
          %v887 = vpop.f32.mrb[0].mxu0
          %v888 = vadd.f32 0.0, %v887
          %889 = vmatprep.mubr.bf16.mxu0 0
          %890 = vmatmul.mubr.bf16.gmra.mrb[0].mxu0 %v589
          %v891 = vpop.f32.mrb[0].mxu0
          %v892 = vadd.f32 0.0, %v891
          %v893 = vpop.f32.mrb[0].mxu0
          %v894 = vadd.f32 0.0, %v893
          %v895 = vpop.f32.mrb[0].mxu0
          %v896 = vadd.f32 0.0, %v895
          %v897 = vpop.f32.mrb[0].mxu0
          %v898 = vadd.f32 0.0, %v897
          %899 = vmatprep.mubr.bf16.mxu0 0
          %900 = vmatmul.mubr.bf16.gmra.mrb[0].mxu0 %v592
          %v901 = vpop.f32.mrb[0].mxu0
          %v902 = vadd.f32 0.0, %v901
          %v903 = vpop.f32.mrb[0].mxu0
          %v904 = vadd.f32 0.0, %v903
          %v905 = vpop.f32.mrb[0].mxu0
          %v906 = vadd.f32 0.0, %v905
          %v907 = vpop.f32.mrb[0].mxu0
          %v908 = vadd.f32 0.0, %v907
          %909 = vmatprep.mubr.bf16.mxu0 0
          %910 = vmatmul.mubr.bf16.gmra.mrb[0].mxu0 %v595
          %v911 = vpop.f32.mrb[0].mxu0
          %v912 = vadd.f32 0.0, %v911
          %v913 = vpop.f32.mrb[0].mxu0
          %v914 = vadd.f32 0.0, %v913
          %v915 = vpop.f32.mrb[0].mxu0
          %v916 = vadd.f32 0.0, %v915
          %v917 = vpop.f32.mrb[0].mxu0
          %v918 = vadd.f32 0.0, %v917
          %919 = vmatprep.mubr.bf16.mxu0 0
          %920 = vmatmul.mubr.bf16.gmra.mrb[0].mxu0 %v598
          %v921 = vpop.f32.mrb[0].mxu0
          %v922 = vadd.f32 0.0, %v921
          %v923 = vpop.f32.mrb[0].mxu0
          %v924 = vadd.f32 0.0, %v923
          %v925 = vpop.f32.mrb[0].mxu0
          %v926 = vadd.f32 0.0, %v925
          %v927 = vpop.f32.mrb[0].mxu0
          %v928 = vadd.f32 0.0, %v927
          %929 = vmatprep.mubr.bf16.mxu0 0
          %930 = vmatmul.mubr.bf16.gmra.mrb[0].mxu0 %v601
          %v931 = vpop.f32.mrb[0].mxu0
          %v932 = vadd.f32 0.0, %v931
          %v933 = vpop.f32.mrb[0].mxu0
          %v934 = vadd.f32 0.0, %v933
          %v935 = vpop.f32.mrb[0].mxu0
          %v936 = vadd.f32 0.0, %v935
          %v937 = vpop.f32.mrb[0].mxu0
          %v938 = vadd.f32 0.0, %v937
          %939 = vmatprep.mubr.bf16.mxu0 0
          %940 = vmatmul.mubr.bf16.gmra.mrb[0].mxu0 %v604
          %v941 = vpop.f32.mrb[0].mxu0
          %v942 = vadd.f32 0.0, %v941
          %v943 = vpop.f32.mrb[0].mxu0
          %v944 = vadd.f32 0.0, %v943
          %v945 = vpop.f32.mrb[0].mxu0
          %v946 = vadd.f32 0.0, %v945
          %v947 = vpop.f32.mrb[0].mxu0
          %v948 = vadd.f32 0.0, %v947
          %949 = vmatprep.mubr.bf16.mxu0 0
          %950 = vmatmul.mubr.bf16.gmra.mrb[0].mxu0 %v607
          %v951 = vpop.f32.mrb[0].mxu0
          %v952 = vadd.f32 0.0, %v951
          %v953 = vpop.f32.mrb[0].mxu0
          %v954 = vadd.f32 0.0, %v953
          %v955 = vpop.f32.mrb[0].mxu0
          %v956 = vadd.f32 0.0, %v955
          %v957 = vpop.f32.mrb[0].mxu0
          %v958 = vadd.f32 0.0, %v957
          %959 = vmatprep.mubr.bf16.mxu0 0
          %960 = vmatmul.mubr.bf16.gmra.mrb[0].mxu0 %v610
          %v961 = vpop.f32.mrb[0].mxu0
          %v962 = vadd.f32 0.0, %v961
          %v963 = vpop.f32.mrb[0].mxu0
          %v964 = vadd.f32 0.0, %v963
          %v965 = vpop.f32.mrb[0].mxu0
          %v966 = vadd.f32 0.0, %v965
          %v967 = vpop.f32.mrb[0].mxu0
          %v968 = vadd.f32 0.0, %v967
          %969 = vmatprep.mubr.bf16.mxu0 0
          %970 = vmatmul.mubr.bf16.gmra.mrb[0].mxu0 %v613
          %v971 = vpop.f32.mrb[0].mxu0
          %v972 = vadd.f32 0.0, %v971
          %v973 = vpop.f32.mrb[0].mxu0
          %v974 = vadd.f32 0.0, %v973
          %v975 = vpop.f32.mrb[0].mxu0
          %v976 = vadd.f32 0.0, %v975
          %v977 = vpop.f32.mrb[0].mxu0
          %v978 = vadd.f32 0.0, %v977
          %979 = vmatprep.mubr.bf16.mxu0 0
          %980 = vmatmul.mubr.bf16.gmra.mrb[0].mxu0 %v616
          %v981 = vpop.f32.mrb[0].mxu0
          %v982 = vadd.f32 0.0, %v981
          %v983 = vpop.f32.mrb[0].mxu0
          %v984 = vadd.f32 0.0, %v983
          %v985 = vpop.f32.mrb[0].mxu0
          %v986 = vadd.f32 0.0, %v985
          %v987 = vpop.f32.mrb[0].mxu0
          %v988 = vadd.f32 0.0, %v987
          %989 = vmatprep.mubr.bf16.mxu0 0
          %990 = vmatmul.mubr.bf16.gmra.mrb[0].mxu0 %v619
          %v991 = vpop.f32.mrb[0].mxu0
          %v992 = vadd.f32 0.0, %v991
          %v993 = vpop.f32.mrb[0].mxu0
          %v994 = vadd.f32 0.0, %v993
          %v995 = vpop.f32.mrb[0].mxu0
          %v996 = vadd.f32 0.0, %v995
          %v997 = vpop.f32.mrb[0].mxu0
          %v998 = vadd.f32 0.0, %v997
          %999 = vmatprep.mubr.bf16.mxu0 0
          %1000 = vmatmul.mubr.bf16.gmra.mrb[0].mxu0 %v622
          %v1001 = vpop.f32.mrb[0].mxu0
          %v1002 = vadd.f32 0.0, %v1001
          %v1003 = vpop.f32.mrb[0].mxu0
          %v1004 = vadd.f32 0.0, %v1003
          %v1005 = vpop.f32.mrb[0].mxu0
          %v1006 = vadd.f32 0.0, %v1005
          %v1007 = vpop.f32.mrb[0].mxu0
          %v1008 = vadd.f32 0.0, %v1007
          %1009 = vdwg.mxu0
          %v1010 = vld [vmem:[#allocation6] sm:$0xf]
          %v1011 = vld [vmem:[#allocation8] sm:$0xf]
          %v1012 = vadd.f32 %v659, %v663
          %v1013 = vadd.f32 %v1012, %v669
          %v1014 = vadd.f32 %v1013, %v673
          %v1015 = vadd.f32 %v1014, %v679
          %v1016 = vadd.f32 %v1015, %v683
          %v1017 = vadd.f32 %v1016, %v689
          %v1018 = vadd.f32 %v1017, %v693
          %v1019 = vadd.f32 %v1018, %v699
          %v1020 = vadd.f32 %v1019, %v703
          %v1021 = vadd.f32 %v1020, %v709
          %v1022 = vadd.f32 %v1021, %v713
          %v1023 = vadd.f32 %v1022, %v719
          %v1024 = vadd.f32 %v1023, %v723
          %v1025 = vadd.f32 %v1024, %v729
          %v1026 = vadd.f32 %v1025, %v733
          %v1027 = vadd.f32 %v1026, %v739
          %v1028 = vadd.f32 %v1027, %v743
          %v1029 = vadd.f32 %v1028, %v749
          %v1030 = vadd.f32 %v1029, %v753
          %v1031 = vadd.f32 %v1030, %v759
          %v1032 = vadd.f32 %v1031, %v763
          %v1033 = vadd.f32 %v1032, %v769
          %v1034 = vadd.f32 %v1033, %v773
          %v1035 = vadd.f32 %v1034, %v779
          %v1036 = vadd.f32 %v1035, %v783
          %v1037 = vadd.f32 %v1036, %v789
          %v1038 = vadd.f32 %v1037, %v793
          %v1039 = vadd.f32 %v1038, %v799
          %v1040 = vadd.f32 %v1039, %v803
          %v1041 = vadd.f32 %v1040, %v809
          %v1042 = vadd.f32 %v1041, %v813
          %v1043 = vrot.slane %v1042, 4
          %v1044 = vadd.f32 %v1042, %v1043
          %v1045 = vrot.slane %v1044, 2
          %v1046 = vadd.f32 %v1044, %v1045
          %v1047 = vrot.slane %v1046, 1
          %v1048 = vadd.f32 %v1046, %v1047
          %v1049 = vadd.f32 %v661, %v665
          %v1050 = vadd.f32 %v1049, %v671
          %v1051 = vadd.f32 %v1050, %v675
          %v1052 = vadd.f32 %v1051, %v681
          %v1053 = vadd.f32 %v1052, %v685
          %v1054 = vadd.f32 %v1053, %v691
          %v1055 = vadd.f32 %v1054, %v695
          %v1056 = vadd.f32 %v1055, %v701
          %v1057 = vadd.f32 %v1056, %v705
          %v1058 = vadd.f32 %v1057, %v711
          %v1059 = vadd.f32 %v1058, %v715
          %v1060 = vadd.f32 %v1059, %v721
          %v1061 = vadd.f32 %v1060, %v725
          %v1062 = vadd.f32 %v1061, %v731
          %v1063 = vadd.f32 %v1062, %v735
          %v1064 = vadd.f32 %v1063, %v741
          %v1065 = vadd.f32 %v1064, %v745
          %v1066 = vadd.f32 %v1065, %v751
          %v1067 = vadd.f32 %v1066, %v755
          %v1068 = vadd.f32 %v1067, %v761
          %v1069 = vadd.f32 %v1068, %v765
          %v1070 = vadd.f32 %v1069, %v771
          %v1071 = vadd.f32 %v1070, %v775
          %v1072 = vadd.f32 %v1071, %v781
          %v1073 = vadd.f32 %v1072, %v785
          %v1074 = vadd.f32 %v1073, %v791
          %v1075 = vadd.f32 %v1074, %v795
          %v1076 = vadd.f32 %v1075, %v801
          %v1077 = vadd.f32 %v1076, %v805
          %v1078 = vadd.f32 %v1077, %v811
          %v1079 = vadd.f32 %v1078, %v815
          %v1080 = vrot.slane %v1079, 4
          %v1081 = vadd.f32 %v1079, %v1080
          %v1082 = vrot.slane %v1081, 2
          %v1083 = vadd.f32 %v1081, %v1082
          %v1084 = vrot.slane %v1083, 1
          %v1085 = vadd.f32 %v1083, %v1084
          %v1086 = vadd.f32 %v852, %v856
          %v1087 = vadd.f32 %v1086, %v862
          %v1088 = vadd.f32 %v1087, %v866
          %v1089 = vadd.f32 %v1088, %v872
          %v1090 = vadd.f32 %v1089, %v876
          %v1091 = vadd.f32 %v1090, %v882
          %v1092 = vadd.f32 %v1091, %v886
          %v1093 = vadd.f32 %v1092, %v892
          %v1094 = vadd.f32 %v1093, %v896
          %v1095 = vadd.f32 %v1094, %v902
          %v1096 = vadd.f32 %v1095, %v906
          %v1097 = vadd.f32 %v1096, %v912
          %v1098 = vadd.f32 %v1097, %v916
          %v1099 = vadd.f32 %v1098, %v922
          %v1100 = vadd.f32 %v1099, %v926
          %v1101 = vadd.f32 %v1100, %v932
          %v1102 = vadd.f32 %v1101, %v936
          %v1103 = vadd.f32 %v1102, %v942
          %v1104 = vadd.f32 %v1103, %v946
          %v1105 = vadd.f32 %v1104, %v952
          %v1106 = vadd.f32 %v1105, %v956
          %v1107 = vadd.f32 %v1106, %v962
          %v1108 = vadd.f32 %v1107, %v966
          %v1109 = vadd.f32 %v1108, %v972
          %v1110 = vadd.f32 %v1109, %v976
          %v1111 = vadd.f32 %v1110, %v982
          %v1112 = vadd.f32 %v1111, %v986
          %v1113 = vadd.f32 %v1112, %v992
          %v1114 = vadd.f32 %v1113, %v996
          %v1115 = vadd.f32 %v1114, %v1002
          %v1116 = vadd.f32 %v1115, %v1006
          %v1117 = vrot.slane %v1116, 4
          %v1118 = vadd.f32 %v1116, %v1117
          %v1119 = vrot.slane %v1118, 2
          %v1120 = vadd.f32 %v1118, %v1119
          %v1121 = vrot.slane %v1120, 1
          %v1122 = vadd.f32 %v1120, %v1121
          %v1123 = vadd.f32 %v854, %v858
          %v1124 = vadd.f32 %v1123, %v864
          %v1125 = vadd.f32 %v1124, %v868
          %v1126 = vadd.f32 %v1125, %v874
          %v1127 = vadd.f32 %v1126, %v878
          %v1128 = vadd.f32 %v1127, %v884
          %v1129 = vadd.f32 %v1128, %v888
          %v1130 = vadd.f32 %v1129, %v894
          %v1131 = vadd.f32 %v1130, %v898
          %v1132 = vadd.f32 %v1131, %v904
          %v1133 = vadd.f32 %v1132, %v908
          %v1134 = vadd.f32 %v1133, %v914
          %v1135 = vadd.f32 %v1134, %v918
          %v1136 = vadd.f32 %v1135, %v924
          %v1137 = vadd.f32 %v1136, %v928
          %v1138 = vadd.f32 %v1137, %v934
          %v1139 = vadd.f32 %v1138, %v938
          %v1140 = vadd.f32 %v1139, %v944
          %v1141 = vadd.f32 %v1140, %v948
          %v1142 = vadd.f32 %v1141, %v954
          %v1143 = vadd.f32 %v1142, %v958
          %v1144 = vadd.f32 %v1143, %v964
          %v1145 = vadd.f32 %v1144, %v968
          %v1146 = vadd.f32 %v1145, %v974
          %v1147 = vadd.f32 %v1146, %v978
          %v1148 = vadd.f32 %v1147, %v984
          %v1149 = vadd.f32 %v1148, %v988
          %v1150 = vadd.f32 %v1149, %v994
          %v1151 = vadd.f32 %v1150, %v998
          %v1152 = vadd.f32 %v1151, %v1004
          %v1153 = vadd.f32 %v1152, %v1008
          %v1154 = vrot.slane %v1153, 4
          %v1155 = vadd.f32 %v1153, %v1154
          %v1156 = vrot.slane %v1155, 2
          %v1157 = vadd.f32 %v1155, %v1156
          %v1158 = vrot.slane %v1157, 1
          %v1159 = vadd.f32 %v1157, %v1158
          %v1160 = vmul.f32 %v1048, 0.00390625
          %v1161 = vmul.f32 %v1085, 0.00390625
          %v1162 = vmul.f32 %v1122, 0.00390625
          %v1163 = vmul.f32 %v1159, 0.00390625
          %v1164 = vmul.f32 %v659, %v659
          %v1165 = vmul.f32 %v661, %v661
          %v1166 = vmul.f32 %v852, %v852
          %v1167 = vmul.f32 %v854, %v854
          %v1168 = vmul.f32 %v663, %v663
          %v1169 = vmul.f32 %v665, %v665
          %v1170 = vmul.f32 %v856, %v856
          %v1171 = vmul.f32 %v858, %v858
          %v1172 = vmul.f32 %v669, %v669
          %v1173 = vmul.f32 %v671, %v671
          %v1174 = vmul.f32 %v862, %v862
          %v1175 = vmul.f32 %v864, %v864
          %v1176 = vmul.f32 %v673, %v673
          %v1177 = vmul.f32 %v675, %v675
          %v1178 = vmul.f32 %v866, %v866
          %v1179 = vmul.f32 %v868, %v868
          %v1180 = vmul.f32 %v679, %v679
          %v1181 = vmul.f32 %v681, %v681
          %v1182 = vmul.f32 %v872, %v872
          %v1183 = vmul.f32 %v874, %v874
          %v1184 = vmul.f32 %v683, %v683
          %v1185 = vmul.f32 %v685, %v685
          %v1186 = vmul.f32 %v876, %v876
          %v1187 = vmul.f32 %v878, %v878
          %v1188 = vmul.f32 %v689, %v689
          %v1189 = vmul.f32 %v691, %v691
          %v1190 = vmul.f32 %v882, %v882
          %v1191 = vmul.f32 %v884, %v884
          %v1192 = vmul.f32 %v693, %v693
          %v1193 = vmul.f32 %v695, %v695
          %v1194 = vmul.f32 %v886, %v886
          %v1195 = vmul.f32 %v888, %v888
          %v1196 = vmul.f32 %v699, %v699
          %v1197 = vmul.f32 %v701, %v701
          %v1198 = vmul.f32 %v892, %v892
          %v1199 = vmul.f32 %v894, %v894
          %v1200 = vmul.f32 %v703, %v703
          %v1201 = vmul.f32 %v705, %v705
          %v1202 = vmul.f32 %v896, %v896
          %v1203 = vmul.f32 %v898, %v898
          %v1204 = vmul.f32 %v709, %v709
          %v1205 = vmul.f32 %v711, %v711
          %v1206 = vmul.f32 %v902, %v902
          %v1207 = vmul.f32 %v904, %v904
          %v1208 = vmul.f32 %v713, %v713
          %v1209 = vmul.f32 %v715, %v715
          %v1210 = vmul.f32 %v906, %v906
          %v1211 = vmul.f32 %v908, %v908
          %v1212 = vmul.f32 %v719, %v719
          %v1213 = vmul.f32 %v721, %v721
          %v1214 = vmul.f32 %v912, %v912
          %v1215 = vmul.f32 %v914, %v914
          %v1216 = vmul.f32 %v723, %v723
          %v1217 = vmul.f32 %v725, %v725
          %v1218 = vmul.f32 %v916, %v916
          %v1219 = vmul.f32 %v918, %v918
          %v1220 = vmul.f32 %v729, %v729
          %v1221 = vmul.f32 %v731, %v731
          %v1222 = vmul.f32 %v922, %v922
          %v1223 = vmul.f32 %v924, %v924
          %v1224 = vmul.f32 %v733, %v733
          %v1225 = vmul.f32 %v735, %v735
          %v1226 = vmul.f32 %v926, %v926
          %v1227 = vmul.f32 %v928, %v928
          %v1228 = vmul.f32 %v739, %v739
          %v1229 = vmul.f32 %v741, %v741
          %v1230 = vmul.f32 %v932, %v932
          %v1231 = vmul.f32 %v934, %v934
          %v1232 = vmul.f32 %v743, %v743
          %v1233 = vmul.f32 %v745, %v745
          %v1234 = vmul.f32 %v936, %v936
          %v1235 = vmul.f32 %v938, %v938
          %v1236 = vmul.f32 %v749, %v749
          %v1237 = vmul.f32 %v751, %v751
          %v1238 = vmul.f32 %v942, %v942
          %v1239 = vmul.f32 %v944, %v944
          %v1240 = vmul.f32 %v753, %v753
          %v1241 = vmul.f32 %v755, %v755
          %v1242 = vmul.f32 %v946, %v946
          %v1243 = vmul.f32 %v948, %v948
          %v1244 = vmul.f32 %v759, %v759
          %v1245 = vmul.f32 %v761, %v761
          %v1246 = vmul.f32 %v952, %v952
          %v1247 = vmul.f32 %v954, %v954
          %v1248 = vmul.f32 %v763, %v763
          %v1249 = vmul.f32 %v765, %v765
          %v1250 = vmul.f32 %v956, %v956
          %v1251 = vmul.f32 %v958, %v958
          %v1252 = vmul.f32 %v769, %v769
          %v1253 = vmul.f32 %v771, %v771
          %v1254 = vmul.f32 %v962, %v962
          %v1255 = vmul.f32 %v964, %v964
          %v1256 = vmul.f32 %v773, %v773
          %v1257 = vmul.f32 %v775, %v775
          %v1258 = vmul.f32 %v966, %v966
          %v1259 = vmul.f32 %v968, %v968
          %v1260 = vmul.f32 %v779, %v779
          %v1261 = vmul.f32 %v781, %v781
          %v1262 = vmul.f32 %v972, %v972
          %v1263 = vmul.f32 %v974, %v974
          %v1264 = vmul.f32 %v783, %v783
          %v1265 = vmul.f32 %v785, %v785
          %v1266 = vmul.f32 %v976, %v976
          %v1267 = vmul.f32 %v978, %v978
          %v1268 = vmul.f32 %v789, %v789
          %v1269 = vmul.f32 %v791, %v791
          %v1270 = vmul.f32 %v982, %v982
          %v1271 = vmul.f32 %v984, %v984
          %v1272 = vmul.f32 %v793, %v793
          %v1273 = vmul.f32 %v795, %v795
          %v1274 = vmul.f32 %v986, %v986
          %v1275 = vmul.f32 %v988, %v988
          %v1276 = vmul.f32 %v799, %v799
          %v1277 = vmul.f32 %v801, %v801
          %v1278 = vmul.f32 %v992, %v992
          %v1279 = vmul.f32 %v994, %v994
          %v1280 = vmul.f32 %v803, %v803
          %v1281 = vmul.f32 %v805, %v805
          %v1282 = vmul.f32 %v996, %v996
          %v1283 = vmul.f32 %v998, %v998
          %v1284 = vmul.f32 %v809, %v809
          %v1285 = vmul.f32 %v811, %v811
          %v1286 = vmul.f32 %v1002, %v1002
          %v1287 = vmul.f32 %v1004, %v1004
          %v1288 = vmul.f32 %v813, %v813
          %v1289 = vmul.f32 %v815, %v815
          %v1290 = vmul.f32 %v1006, %v1006
          %v1291 = vmul.f32 %v1008, %v1008
          %v1292 = vadd.f32 %v1164, %v1168
          %v1293 = vadd.f32 %v1292, %v1172
          %v1294 = vadd.f32 %v1293, %v1176
          %v1295 = vadd.f32 %v1294, %v1180
          %v1296 = vadd.f32 %v1295, %v1184
          %v1297 = vadd.f32 %v1296, %v1188
          %v1298 = vadd.f32 %v1297, %v1192
          %v1299 = vadd.f32 %v1298, %v1196
          %v1300 = vadd.f32 %v1299, %v1200
          %v1301 = vadd.f32 %v1300, %v1204
          %v1302 = vadd.f32 %v1301, %v1208
          %v1303 = vadd.f32 %v1302, %v1212
          %v1304 = vadd.f32 %v1303, %v1216
          %v1305 = vadd.f32 %v1304, %v1220
          %v1306 = vadd.f32 %v1305, %v1224
          %v1307 = vadd.f32 %v1306, %v1228
          %v1308 = vadd.f32 %v1307, %v1232
          %v1309 = vadd.f32 %v1308, %v1236
          %v1310 = vadd.f32 %v1309, %v1240
          %v1311 = vadd.f32 %v1310, %v1244
          %v1312 = vadd.f32 %v1311, %v1248
          %v1313 = vadd.f32 %v1312, %v1252
          %v1314 = vadd.f32 %v1313, %v1256
          %v1315 = vadd.f32 %v1314, %v1260
          %v1316 = vadd.f32 %v1315, %v1264
          %v1317 = vadd.f32 %v1316, %v1268
          %v1318 = vadd.f32 %v1317, %v1272
          %v1319 = vadd.f32 %v1318, %v1276
          %v1320 = vadd.f32 %v1319, %v1280
          %v1321 = vadd.f32 %v1320, %v1284
          %v1322 = vadd.f32 %v1321, %v1288
          %v1323 = vrot.slane %v1322, 4
          %v1324 = vadd.f32 %v1322, %v1323
          %v1325 = vrot.slane %v1324, 2
          %v1326 = vadd.f32 %v1324, %v1325
          %v1327 = vrot.slane %v1326, 1
          %v1328 = vadd.f32 %v1326, %v1327
          %v1329 = vadd.f32 %v1165, %v1169
          %v1330 = vadd.f32 %v1329, %v1173
          %v1331 = vadd.f32 %v1330, %v1177
          %v1332 = vadd.f32 %v1331, %v1181
          %v1333 = vadd.f32 %v1332, %v1185
          %v1334 = vadd.f32 %v1333, %v1189
          %v1335 = vadd.f32 %v1334, %v1193
          %v1336 = vadd.f32 %v1335, %v1197
          %v1337 = vadd.f32 %v1336, %v1201
          %v1338 = vadd.f32 %v1337, %v1205
          %v1339 = vadd.f32 %v1338, %v1209
          %v1340 = vadd.f32 %v1339, %v1213
          %v1341 = vadd.f32 %v1340, %v1217
          %v1342 = vadd.f32 %v1341, %v1221
          %v1343 = vadd.f32 %v1342, %v1225
          %v1344 = vadd.f32 %v1343, %v1229
          %v1345 = vadd.f32 %v1344, %v1233
          %v1346 = vadd.f32 %v1345, %v1237
          %v1347 = vadd.f32 %v1346, %v1241
          %v1348 = vadd.f32 %v1347, %v1245
          %v1349 = vadd.f32 %v1348, %v1249
          %v1350 = vadd.f32 %v1349, %v1253
          %v1351 = vadd.f32 %v1350, %v1257
          %v1352 = vadd.f32 %v1351, %v1261
          %v1353 = vadd.f32 %v1352, %v1265
          %v1354 = vadd.f32 %v1353, %v1269
          %v1355 = vadd.f32 %v1354, %v1273
          %v1356 = vadd.f32 %v1355, %v1277
          %v1357 = vadd.f32 %v1356, %v1281
          %v1358 = vadd.f32 %v1357, %v1285
          %v1359 = vadd.f32 %v1358, %v1289
          %v1360 = vrot.slane %v1359, 4
          %v1361 = vadd.f32 %v1359, %v1360
          %v1362 = vrot.slane %v1361, 2
          %v1363 = vadd.f32 %v1361, %v1362
          %v1364 = vrot.slane %v1363, 1
          %v1365 = vadd.f32 %v1363, %v1364
          %v1366 = vadd.f32 %v1166, %v1170
          %v1367 = vadd.f32 %v1366, %v1174
          %v1368 = vadd.f32 %v1367, %v1178
          %v1369 = vadd.f32 %v1368, %v1182
          %v1370 = vadd.f32 %v1369, %v1186
          %v1371 = vadd.f32 %v1370, %v1190
          %v1372 = vadd.f32 %v1371, %v1194
          %v1373 = vadd.f32 %v1372, %v1198
          %v1374 = vadd.f32 %v1373, %v1202
          %v1375 = vadd.f32 %v1374, %v1206
          %v1376 = vadd.f32 %v1375, %v1210
          %v1377 = vadd.f32 %v1376, %v1214
          %v1378 = vadd.f32 %v1377, %v1218
          %v1379 = vadd.f32 %v1378, %v1222
          %v1380 = vadd.f32 %v1379, %v1226
          %v1381 = vadd.f32 %v1380, %v1230
          %v1382 = vadd.f32 %v1381, %v1234
          %v1383 = vadd.f32 %v1382, %v1238
          %v1384 = vadd.f32 %v1383, %v1242
          %v1385 = vadd.f32 %v1384, %v1246
          %v1386 = vadd.f32 %v1385, %v1250
          %v1387 = vadd.f32 %v1386, %v1254
          %v1388 = vadd.f32 %v1387, %v1258
          %v1389 = vadd.f32 %v1388, %v1262
          %v1390 = vadd.f32 %v1389, %v1266
          %v1391 = vadd.f32 %v1390, %v1270
          %v1392 = vadd.f32 %v1391, %v1274
          %v1393 = vadd.f32 %v1392, %v1278
          %v1394 = vadd.f32 %v1393, %v1282
          %v1395 = vadd.f32 %v1394, %v1286
          %v1396 = vadd.f32 %v1395, %v1290
          %v1397 = vrot.slane %v1396, 4
          %v1398 = vadd.f32 %v1396, %v1397
          %v1399 = vrot.slane %v1398, 2
          %v1400 = vadd.f32 %v1398, %v1399
          %v1401 = vrot.slane %v1400, 1
          %v1402 = vadd.f32 %v1400, %v1401
          %v1403 = vadd.f32 %v1167, %v1171
          %v1404 = vadd.f32 %v1403, %v1175
          %v1405 = vadd.f32 %v1404, %v1179
          %v1406 = vadd.f32 %v1405, %v1183
          %v1407 = vadd.f32 %v1406, %v1187
          %v1408 = vadd.f32 %v1407, %v1191
          %v1409 = vadd.f32 %v1408, %v1195
          %v1410 = vadd.f32 %v1409, %v1199
          %v1411 = vadd.f32 %v1410, %v1203
          %v1412 = vadd.f32 %v1411, %v1207
          %v1413 = vadd.f32 %v1412, %v1211
          %v1414 = vadd.f32 %v1413, %v1215
          %v1415 = vadd.f32 %v1414, %v1219
          %v1416 = vadd.f32 %v1415, %v1223
          %v1417 = vadd.f32 %v1416, %v1227
          %v1418 = vadd.f32 %v1417, %v1231
          %v1419 = vadd.f32 %v1418, %v1235
          %v1420 = vadd.f32 %v1419, %v1239
          %v1421 = vadd.f32 %v1420, %v1243
          %v1422 = vadd.f32 %v1421, %v1247
          %v1423 = vadd.f32 %v1422, %v1251
          %v1424 = vadd.f32 %v1423, %v1255
          %v1425 = vadd.f32 %v1424, %v1259
          %v1426 = vadd.f32 %v1425, %v1263
          %v1427 = vadd.f32 %v1426, %v1267
          %v1428 = vadd.f32 %v1427, %v1271
          %v1429 = vadd.f32 %v1428, %v1275
          %v1430 = vadd.f32 %v1429, %v1279
          %v1431 = vadd.f32 %v1430, %v1283
          %v1432 = vadd.f32 %v1431, %v1287
          %v1433 = vadd.f32 %v1432, %v1291
          %v1434 = vrot.slane %v1433, 4
          %v1435 = vadd.f32 %v1433, %v1434
          %v1436 = vrot.slane %v1435, 2
          %v1437 = vadd.f32 %v1435, %v1436
          %v1438 = vrot.slane %v1437, 1
          %v1439 = vadd.f32 %v1437, %v1438
          %v1440 = vmul.f32 %v1328, 0.00390625
          %v1441 = vmul.f32 %v1365, 0.00390625
          %v1442 = vmul.f32 %v1402, 0.00390625
          %v1443 = vmul.f32 %v1439, 0.00390625
          %v1444 = vmul.f32 %v1160, %v1160
          %v1445 = vmul.f32 %v1161, %v1161
          %v1446 = vmul.f32 %v1162, %v1162
          %v1447 = vmul.f32 %v1163, %v1163
          %v1448 = vsub.f32 %v1440, %v1444
          %v1449 = vsub.f32 %v1441, %v1445
          %v1450 = vsub.f32 %v1442, %v1446
          %v1451 = vsub.f32 %v1443, %v1447
          %v1452 = vadd.f32 %v1448, 1e-05
          %v1453 = vadd.f32 %v1449, 1e-05
          %v1454 = vadd.f32 %v1450, 1e-05
          %v1455 = vadd.f32 %v1451, 1e-05
          %v1456 = vrsqrt.pop %v1452
          %v1457 = vrsqrt.pop %v1453
          %v1458 = vrsqrt.pop %v1454
          %v1459 = vrsqrt.pop %v1455
          %v1464 = vcombine.low %v1456, %v1457
          %v1465 = vcombine.low %v1458, %v1459
          %v1467 = vunpack.c.l.s4 1966171168
          %v1468 = vunpack.c.0.s8 %v1467
          %v1469 = vlaneseq
          %v1470 = vshrl.u32 %v1469, 7
          %v1471 = vsub.s32 %v1468, %v1470
          %v1472 = vrot.slane %v1464, %v1471
          %v1474 = vunpack.c.l.s4 1966171168
          %v1475 = vunpack.c.0.s8 %v1474
          %v1476 = vlaneseq
          %v1477 = vshrl.u32 %v1476, 7
          %v1478 = vsub.s32 %v1475, %v1477
          %v1479 = vrot.slane %v1465, %v1478
          %v1480 = vcombine.low %v1472, %v1479
          %v1482 = vunpack.c.l.s4 1966171168
          %v1483 = vunpack.c.0.s8 %v1482
          %v1484 = vlaneseq
          %v1485 = vshrl.u32 %v1484, 7
          %v1486 = vsub.s32 %v1483, %v1485
          %v1487 = vrot.slane %v1480, %v1486
          %v1489 = vmul.f32 %v1010, %v1487
          %v1491 = vlaneseq
          %v1492 = vshrl.u32 %v1491, 7
          %v1493 = vsub.s32 0, %v1492
          %v1494 = vrot.slane %v1489, %v1493
          %v1495 = vlaneseq
          %v1496 = vshrl.u32 %v1495, 7
          %v1497 = vsub.s32 1, %v1496
          %v1498 = vrot.slane %v1489, %v1497
          %v1499 = vlaneseq
          %v1500 = vshrl.u32 %v1499, 7
          %v1501 = vsub.s32 2, %v1500
          %v1502 = vrot.slane %v1489, %v1501
          %v1503 = vlaneseq
          %v1504 = vshrl.u32 %v1503, 7
          %v1505 = vsub.s32 3, %v1504
          %v1506 = vrot.slane %v1489, %v1505
          %v1511 = vmul.f32 %v1160, %v1494
          %v1512 = vmul.f32 %v1161, %v1498
          %v1513 = vmul.f32 %v1162, %v1502
          %v1514 = vmul.f32 %v1163, %v1506
          %v1519 = vcombine.low %v1511, %v1512
          %v1520 = vcombine.low %v1513, %v1514
          %v1522 = vunpack.c.l.s4 1966171168
          %v1523 = vunpack.c.0.s8 %v1522
          %v1524 = vlaneseq
          %v1525 = vshrl.u32 %v1524, 7
          %v1526 = vsub.s32 %v1523, %v1525
          %v1527 = vrot.slane %v1519, %v1526
          %v1529 = vunpack.c.l.s4 1966171168
          %v1530 = vunpack.c.0.s8 %v1529
          %v1531 = vlaneseq
          %v1532 = vshrl.u32 %v1531, 7
          %v1533 = vsub.s32 %v1530, %v1532
          %v1534 = vrot.slane %v1520, %v1533
          %v1535 = vcombine.low %v1527, %v1534
          %v1537 = vunpack.c.l.s4 1966171168
          %v1538 = vunpack.c.0.s8 %v1537
          %v1539 = vlaneseq
          %v1540 = vshrl.u32 %v1539, 7
          %v1541 = vsub.s32 %v1538, %v1540
          %v1542 = vrot.slane %v1535, %v1541
          %v1544 = vsub.f32 %v1011, %v1542
          %v1545 = vmul.f32 %v659, %v1494
          %v1546 = vmul.f32 %v661, %v1498
          %v1547 = vmul.f32 %v852, %v1502
          %v1548 = vmul.f32 %v854, %v1506
          %v1549 = vmul.f32 %v663, %v1494
          %v1550 = vmul.f32 %v665, %v1498
          %v1551 = vmul.f32 %v856, %v1502
          %v1552 = vmul.f32 %v858, %v1506
          %v1553 = vmul.f32 %v669, %v1494
          %v1554 = vmul.f32 %v671, %v1498
          %v1555 = vmul.f32 %v862, %v1502
          %v1556 = vmul.f32 %v864, %v1506
          %v1557 = vmul.f32 %v673, %v1494
          %v1558 = vmul.f32 %v675, %v1498
          %v1559 = vmul.f32 %v866, %v1502
          %v1560 = vmul.f32 %v868, %v1506
          %v1561 = vmul.f32 %v679, %v1494
          %v1562 = vmul.f32 %v681, %v1498
          %v1563 = vmul.f32 %v872, %v1502
          %v1564 = vmul.f32 %v874, %v1506
          %v1565 = vmul.f32 %v683, %v1494
          %v1566 = vmul.f32 %v685, %v1498
          %v1567 = vmul.f32 %v876, %v1502
          %v1568 = vmul.f32 %v878, %v1506
          %v1569 = vmul.f32 %v689, %v1494
          %v1570 = vmul.f32 %v691, %v1498
          %v1571 = vmul.f32 %v882, %v1502
          %v1572 = vmul.f32 %v884, %v1506
          %v1573 = vmul.f32 %v693, %v1494
          %v1574 = vmul.f32 %v695, %v1498
          %v1575 = vmul.f32 %v886, %v1502
          %v1576 = vmul.f32 %v888, %v1506
          %v1577 = vmul.f32 %v699, %v1494
          %v1578 = vmul.f32 %v701, %v1498
          %v1579 = vmul.f32 %v892, %v1502
          %v1580 = vmul.f32 %v894, %v1506
          %v1581 = vmul.f32 %v703, %v1494
          %v1582 = vmul.f32 %v705, %v1498
          %v1583 = vmul.f32 %v896, %v1502
          %v1584 = vmul.f32 %v898, %v1506
          %v1585 = vmul.f32 %v709, %v1494
          %v1586 = vmul.f32 %v711, %v1498
          %v1587 = vmul.f32 %v902, %v1502
          %v1588 = vmul.f32 %v904, %v1506
          %v1589 = vmul.f32 %v713, %v1494
          %v1590 = vmul.f32 %v715, %v1498
          %v1591 = vmul.f32 %v906, %v1502
          %v1592 = vmul.f32 %v908, %v1506
          %v1593 = vmul.f32 %v719, %v1494
          %v1594 = vmul.f32 %v721, %v1498
          %v1595 = vmul.f32 %v912, %v1502
          %v1596 = vmul.f32 %v914, %v1506
          %v1597 = vmul.f32 %v723, %v1494
          %v1598 = vmul.f32 %v725, %v1498
          %v1599 = vmul.f32 %v916, %v1502
          %v1600 = vmul.f32 %v918, %v1506
          %v1601 = vmul.f32 %v729, %v1494
          %v1602 = vmul.f32 %v731, %v1498
          %v1603 = vmul.f32 %v922, %v1502
          %v1604 = vmul.f32 %v924, %v1506
          %v1605 = vmul.f32 %v733, %v1494
          %v1606 = vmul.f32 %v735, %v1498
          %v1607 = vmul.f32 %v926, %v1502
          %v1608 = vmul.f32 %v928, %v1506
          %v1609 = vmul.f32 %v739, %v1494
          %v1610 = vmul.f32 %v741, %v1498
          %v1611 = vmul.f32 %v932, %v1502
          %v1612 = vmul.f32 %v934, %v1506
          %v1613 = vmul.f32 %v743, %v1494
          %v1614 = vmul.f32 %v745, %v1498
          %v1615 = vmul.f32 %v936, %v1502
          %v1616 = vmul.f32 %v938, %v1506
          %v1617 = vmul.f32 %v749, %v1494
          %v1618 = vmul.f32 %v751, %v1498
          %v1619 = vmul.f32 %v942, %v1502
          %v1620 = vmul.f32 %v944, %v1506
          %v1621 = vmul.f32 %v753, %v1494
          %v1622 = vmul.f32 %v755, %v1498
          %v1623 = vmul.f32 %v946, %v1502
          %v1624 = vmul.f32 %v948, %v1506
          %v1625 = vmul.f32 %v759, %v1494
          %v1626 = vmul.f32 %v761, %v1498
          %v1627 = vmul.f32 %v952, %v1502
          %v1628 = vmul.f32 %v954, %v1506
          %v1629 = vmul.f32 %v763, %v1494
          %v1630 = vmul.f32 %v765, %v1498
          %v1631 = vmul.f32 %v956, %v1502
          %v1632 = vmul.f32 %v958, %v1506
          %v1633 = vmul.f32 %v769, %v1494
          %v1634 = vmul.f32 %v771, %v1498
          %v1635 = vmul.f32 %v962, %v1502
          %v1636 = vmul.f32 %v964, %v1506
          %v1637 = vmul.f32 %v773, %v1494
          %v1638 = vmul.f32 %v775, %v1498
          %v1639 = vmul.f32 %v966, %v1502
          %v1640 = vmul.f32 %v968, %v1506
          %v1641 = vmul.f32 %v779, %v1494
          %v1642 = vmul.f32 %v781, %v1498
          %v1643 = vmul.f32 %v972, %v1502
          %v1644 = vmul.f32 %v974, %v1506
          %v1645 = vmul.f32 %v783, %v1494
          %v1646 = vmul.f32 %v785, %v1498
          %v1647 = vmul.f32 %v976, %v1502
          %v1648 = vmul.f32 %v978, %v1506
          %v1649 = vmul.f32 %v789, %v1494
          %v1650 = vmul.f32 %v791, %v1498
          %v1651 = vmul.f32 %v982, %v1502
          %v1652 = vmul.f32 %v984, %v1506
          %v1653 = vmul.f32 %v793, %v1494
          %v1654 = vmul.f32 %v795, %v1498
          %v1655 = vmul.f32 %v986, %v1502
          %v1656 = vmul.f32 %v988, %v1506
          %v1657 = vmul.f32 %v799, %v1494
          %v1658 = vmul.f32 %v801, %v1498
          %v1659 = vmul.f32 %v992, %v1502
          %v1660 = vmul.f32 %v994, %v1506
          %v1661 = vmul.f32 %v803, %v1494
          %v1662 = vmul.f32 %v805, %v1498
          %v1663 = vmul.f32 %v996, %v1502
          %v1664 = vmul.f32 %v998, %v1506
          %v1665 = vmul.f32 %v809, %v1494
          %v1666 = vmul.f32 %v811, %v1498
          %v1667 = vmul.f32 %v1002, %v1502
          %v1668 = vmul.f32 %v1004, %v1506
          %v1669 = vmul.f32 %v813, %v1494
          %v1670 = vmul.f32 %v815, %v1498
          %v1671 = vmul.f32 %v1006, %v1502
          %v1672 = vmul.f32 %v1008, %v1506
          %v1674 = vlaneseq
          %v1675 = vshrl.u32 %v1674, 7
          %v1676 = vsub.s32 0, %v1675
          %v1677 = vrot.slane %v1544, %v1676
          %v1678 = vlaneseq
          %v1679 = vshrl.u32 %v1678, 7
          %v1680 = vsub.s32 1, %v1679
          %v1681 = vrot.slane %v1544, %v1680
          %v1682 = vlaneseq
          %v1683 = vshrl.u32 %v1682, 7
          %v1684 = vsub.s32 2, %v1683
          %v1685 = vrot.slane %v1544, %v1684
          %v1686 = vlaneseq
          %v1687 = vshrl.u32 %v1686, 7
          %v1688 = vsub.s32 3, %v1687
          %v1689 = vrot.slane %v1544, %v1688
          %v1694 = vadd.f32 %v1545, %v1677
          %v1695 = vadd.f32 %v1546, %v1681
          %v1696 = vadd.f32 %v1547, %v1685
          %v1697 = vadd.f32 %v1548, %v1689
          %v1698 = vadd.f32 %v1549, %v1677
          %v1699 = vadd.f32 %v1550, %v1681
          %v1700 = vadd.f32 %v1551, %v1685
          %v1701 = vadd.f32 %v1552, %v1689
          %v1702 = vadd.f32 %v1553, %v1677
          %v1703 = vadd.f32 %v1554, %v1681
          %v1704 = vadd.f32 %v1555, %v1685
          %v1705 = vadd.f32 %v1556, %v1689
          %v1706 = vadd.f32 %v1557, %v1677
          %v1707 = vadd.f32 %v1558, %v1681
          %v1708 = vadd.f32 %v1559, %v1685
          %v1709 = vadd.f32 %v1560, %v1689
          %v1710 = vadd.f32 %v1561, %v1677
          %v1711 = vadd.f32 %v1562, %v1681
          %v1712 = vadd.f32 %v1563, %v1685
          %v1713 = vadd.f32 %v1564, %v1689
          %v1714 = vadd.f32 %v1565, %v1677
          %v1715 = vadd.f32 %v1566, %v1681
          %v1716 = vadd.f32 %v1567, %v1685
          %v1717 = vadd.f32 %v1568, %v1689
          %v1718 = vadd.f32 %v1569, %v1677
          %v1719 = vadd.f32 %v1570, %v1681
          %v1720 = vadd.f32 %v1571, %v1685
          %v1721 = vadd.f32 %v1572, %v1689
          %v1722 = vadd.f32 %v1573, %v1677
          %v1723 = vadd.f32 %v1574, %v1681
          %v1724 = vadd.f32 %v1575, %v1685
          %v1725 = vadd.f32 %v1576, %v1689
          %v1726 = vadd.f32 %v1577, %v1677
          %v1727 = vadd.f32 %v1578, %v1681
          %v1728 = vadd.f32 %v1579, %v1685
          %v1729 = vadd.f32 %v1580, %v1689
          %v1730 = vadd.f32 %v1581, %v1677
          %v1731 = vadd.f32 %v1582, %v1681
          %v1732 = vadd.f32 %v1583, %v1685
          %v1733 = vadd.f32 %v1584, %v1689
          %v1734 = vadd.f32 %v1585, %v1677
          %v1735 = vadd.f32 %v1586, %v1681
          %v1736 = vadd.f32 %v1587, %v1685
          %v1737 = vadd.f32 %v1588, %v1689
          %v1738 = vadd.f32 %v1589, %v1677
          %v1739 = vadd.f32 %v1590, %v1681
          %v1740 = vadd.f32 %v1591, %v1685
          %v1741 = vadd.f32 %v1592, %v1689
          %v1742 = vadd.f32 %v1593, %v1677
          %v1743 = vadd.f32 %v1594, %v1681
          %v1744 = vadd.f32 %v1595, %v1685
          %v1745 = vadd.f32 %v1596, %v1689
          %v1746 = vadd.f32 %v1597, %v1677
          %v1747 = vadd.f32 %v1598, %v1681
          %v1748 = vadd.f32 %v1599, %v1685
          %v1749 = vadd.f32 %v1600, %v1689
          %v1750 = vadd.f32 %v1601, %v1677
          %v1751 = vadd.f32 %v1602, %v1681
          %v1752 = vadd.f32 %v1603, %v1685
          %v1753 = vadd.f32 %v1604, %v1689
          %v1754 = vadd.f32 %v1605, %v1677
          %v1755 = vadd.f32 %v1606, %v1681
          %v1756 = vadd.f32 %v1607, %v1685
          %v1757 = vadd.f32 %v1608, %v1689
          %v1758 = vadd.f32 %v1609, %v1677
          %v1759 = vadd.f32 %v1610, %v1681
          %v1760 = vadd.f32 %v1611, %v1685
          %v1761 = vadd.f32 %v1612, %v1689
          %v1762 = vadd.f32 %v1613, %v1677
          %v1763 = vadd.f32 %v1614, %v1681
          %v1764 = vadd.f32 %v1615, %v1685
          %v1765 = vadd.f32 %v1616, %v1689
          %v1766 = vadd.f32 %v1617, %v1677
          %v1767 = vadd.f32 %v1618, %v1681
          %v1768 = vadd.f32 %v1619, %v1685
          %v1769 = vadd.f32 %v1620, %v1689
          %v1770 = vadd.f32 %v1621, %v1677
          %v1771 = vadd.f32 %v1622, %v1681
          %v1772 = vadd.f32 %v1623, %v1685
          %v1773 = vadd.f32 %v1624, %v1689
          %v1774 = vadd.f32 %v1625, %v1677
          %v1775 = vadd.f32 %v1626, %v1681
          %v1776 = vadd.f32 %v1627, %v1685
          %v1777 = vadd.f32 %v1628, %v1689
          %v1778 = vadd.f32 %v1629, %v1677
          %v1779 = vadd.f32 %v1630, %v1681
          %v1780 = vadd.f32 %v1631, %v1685
          %v1781 = vadd.f32 %v1632, %v1689
          %v1782 = vadd.f32 %v1633, %v1677
          %v1783 = vadd.f32 %v1634, %v1681
          %v1784 = vadd.f32 %v1635, %v1685
          %v1785 = vadd.f32 %v1636, %v1689
          %v1786 = vadd.f32 %v1637, %v1677
          %v1787 = vadd.f32 %v1638, %v1681
          %v1788 = vadd.f32 %v1639, %v1685
          %v1789 = vadd.f32 %v1640, %v1689
          %v1790 = vadd.f32 %v1641, %v1677
          %v1791 = vadd.f32 %v1642, %v1681
          %v1792 = vadd.f32 %v1643, %v1685
          %v1793 = vadd.f32 %v1644, %v1689
          %v1794 = vadd.f32 %v1645, %v1677
          %v1795 = vadd.f32 %v1646, %v1681
          %v1796 = vadd.f32 %v1647, %v1685
          %v1797 = vadd.f32 %v1648, %v1689
          %v1798 = vadd.f32 %v1649, %v1677
          %v1799 = vadd.f32 %v1650, %v1681
          %v1800 = vadd.f32 %v1651, %v1685
          %v1801 = vadd.f32 %v1652, %v1689
          %v1802 = vadd.f32 %v1653, %v1677
          %v1803 = vadd.f32 %v1654, %v1681
          %v1804 = vadd.f32 %v1655, %v1685
          %v1805 = vadd.f32 %v1656, %v1689
          %v1806 = vadd.f32 %v1657, %v1677
          %v1807 = vadd.f32 %v1658, %v1681
          %v1808 = vadd.f32 %v1659, %v1685
          %v1809 = vadd.f32 %v1660, %v1689
          %v1810 = vadd.f32 %v1661, %v1677
          %v1811 = vadd.f32 %v1662, %v1681
          %v1812 = vadd.f32 %v1663, %v1685
          %v1813 = vadd.f32 %v1664, %v1689
          %v1814 = vadd.f32 %v1665, %v1677
          %v1815 = vadd.f32 %v1666, %v1681
          %v1816 = vadd.f32 %v1667, %v1685
          %v1817 = vadd.f32 %v1668, %v1689
          %v1818 = vadd.f32 %v1669, %v1677
          %v1819 = vadd.f32 %v1670, %v1681
          %v1820 = vadd.f32 %v1671, %v1685
          %v1821 = vadd.f32 %v1672, %v1689
          %v1822 = vmax.f32 %v1694, 0.0
          %v1823 = vmax.f32 %v1695, 0.0
          %v1824 = vmax.f32 %v1696, 0.0
          %v1825 = vmax.f32 %v1697, 0.0
          %v1826 = vmax.f32 %v1698, 0.0
          %v1827 = vmax.f32 %v1699, 0.0
          %v1828 = vmax.f32 %v1700, 0.0
          %v1829 = vmax.f32 %v1701, 0.0
          %v1830 = vmax.f32 %v1702, 0.0
          %v1831 = vmax.f32 %v1703, 0.0
          %v1832 = vmax.f32 %v1704, 0.0
          %v1833 = vmax.f32 %v1705, 0.0
          %v1834 = vmax.f32 %v1706, 0.0
          %v1835 = vmax.f32 %v1707, 0.0
          %v1836 = vmax.f32 %v1708, 0.0
          %v1837 = vmax.f32 %v1709, 0.0
          %v1838 = vmax.f32 %v1710, 0.0
          %v1839 = vmax.f32 %v1711, 0.0
          %v1840 = vmax.f32 %v1712, 0.0
          %v1841 = vmax.f32 %v1713, 0.0
          %v1842 = vmax.f32 %v1714, 0.0
          %v1843 = vmax.f32 %v1715, 0.0
          %v1844 = vmax.f32 %v1716, 0.0
          %v1845 = vmax.f32 %v1717, 0.0
          %v1846 = vmax.f32 %v1718, 0.0
          %v1847 = vmax.f32 %v1719, 0.0
          %v1848 = vmax.f32 %v1720, 0.0
          %v1849 = vmax.f32 %v1721, 0.0
          %v1850 = vmax.f32 %v1722, 0.0
          %v1851 = vmax.f32 %v1723, 0.0
          %v1852 = vmax.f32 %v1724, 0.0
          %v1853 = vmax.f32 %v1725, 0.0
          %v1854 = vmax.f32 %v1726, 0.0
          %v1855 = vmax.f32 %v1727, 0.0
          %v1856 = vmax.f32 %v1728, 0.0
          %v1857 = vmax.f32 %v1729, 0.0
          %v1858 = vmax.f32 %v1730, 0.0
          %v1859 = vmax.f32 %v1731, 0.0
          %v1860 = vmax.f32 %v1732, 0.0
          %v1861 = vmax.f32 %v1733, 0.0
          %v1862 = vmax.f32 %v1734, 0.0
          %v1863 = vmax.f32 %v1735, 0.0
          %v1864 = vmax.f32 %v1736, 0.0
          %v1865 = vmax.f32 %v1737, 0.0
          %v1866 = vmax.f32 %v1738, 0.0
          %v1867 = vmax.f32 %v1739, 0.0
          %v1868 = vmax.f32 %v1740, 0.0
          %v1869 = vmax.f32 %v1741, 0.0
          %v1870 = vmax.f32 %v1742, 0.0
          %v1871 = vmax.f32 %v1743, 0.0
          %v1872 = vmax.f32 %v1744, 0.0
          %v1873 = vmax.f32 %v1745, 0.0
          %v1874 = vmax.f32 %v1746, 0.0
          %v1875 = vmax.f32 %v1747, 0.0
          %v1876 = vmax.f32 %v1748, 0.0
          %v1877 = vmax.f32 %v1749, 0.0
          %v1878 = vmax.f32 %v1750, 0.0
          %v1879 = vmax.f32 %v1751, 0.0
          %v1880 = vmax.f32 %v1752, 0.0
          %v1881 = vmax.f32 %v1753, 0.0
          %v1882 = vmax.f32 %v1754, 0.0
          %v1883 = vmax.f32 %v1755, 0.0
          %v1884 = vmax.f32 %v1756, 0.0
          %v1885 = vmax.f32 %v1757, 0.0
          %v1886 = vmax.f32 %v1758, 0.0
          %v1887 = vmax.f32 %v1759, 0.0
          %v1888 = vmax.f32 %v1760, 0.0
          %v1889 = vmax.f32 %v1761, 0.0
          %v1890 = vmax.f32 %v1762, 0.0
          %v1891 = vmax.f32 %v1763, 0.0
          %v1892 = vmax.f32 %v1764, 0.0
          %v1893 = vmax.f32 %v1765, 0.0
          %v1894 = vmax.f32 %v1766, 0.0
          %v1895 = vmax.f32 %v1767, 0.0
          %v1896 = vmax.f32 %v1768, 0.0
          %v1897 = vmax.f32 %v1769, 0.0
          %v1898 = vmax.f32 %v1770, 0.0
          %v1899 = vmax.f32 %v1771, 0.0
          %v1900 = vmax.f32 %v1772, 0.0
          %v1901 = vmax.f32 %v1773, 0.0
          %v1902 = vmax.f32 %v1774, 0.0
          %v1903 = vmax.f32 %v1775, 0.0
          %v1904 = vmax.f32 %v1776, 0.0
          %v1905 = vmax.f32 %v1777, 0.0
          %v1906 = vmax.f32 %v1778, 0.0
          %v1907 = vmax.f32 %v1779, 0.0
          %v1908 = vmax.f32 %v1780, 0.0
          %v1909 = vmax.f32 %v1781, 0.0
          %v1910 = vmax.f32 %v1782, 0.0
          %v1911 = vmax.f32 %v1783, 0.0
          %v1912 = vmax.f32 %v1784, 0.0
          %v1913 = vmax.f32 %v1785, 0.0
          %v1914 = vmax.f32 %v1786, 0.0
          %v1915 = vmax.f32 %v1787, 0.0
          %v1916 = vmax.f32 %v1788, 0.0
          %v1917 = vmax.f32 %v1789, 0.0
          %v1918 = vmax.f32 %v1790, 0.0
          %v1919 = vmax.f32 %v1791, 0.0
          %v1920 = vmax.f32 %v1792, 0.0
          %v1921 = vmax.f32 %v1793, 0.0
          %v1922 = vmax.f32 %v1794, 0.0
          %v1923 = vmax.f32 %v1795, 0.0
          %v1924 = vmax.f32 %v1796, 0.0
          %v1925 = vmax.f32 %v1797, 0.0
          %v1926 = vmax.f32 %v1798, 0.0
          %v1927 = vmax.f32 %v1799, 0.0
          %v1928 = vmax.f32 %v1800, 0.0
          %v1929 = vmax.f32 %v1801, 0.0
          %v1930 = vmax.f32 %v1802, 0.0
          %v1931 = vmax.f32 %v1803, 0.0
          %v1932 = vmax.f32 %v1804, 0.0
          %v1933 = vmax.f32 %v1805, 0.0
          %v1934 = vmax.f32 %v1806, 0.0
          %v1935 = vmax.f32 %v1807, 0.0
          %v1936 = vmax.f32 %v1808, 0.0
          %v1937 = vmax.f32 %v1809, 0.0
          %v1938 = vmax.f32 %v1810, 0.0
          %v1939 = vmax.f32 %v1811, 0.0
          %v1940 = vmax.f32 %v1812, 0.0
          %v1941 = vmax.f32 %v1813, 0.0
          %v1942 = vmax.f32 %v1814, 0.0
          %v1943 = vmax.f32 %v1815, 0.0
          %v1944 = vmax.f32 %v1816, 0.0
          %v1945 = vmax.f32 %v1817, 0.0
          %v1946 = vmax.f32 %v1818, 0.0
          %v1947 = vmax.f32 %v1819, 0.0
          %v1948 = vmax.f32 %v1820, 0.0
          %v1949 = vmax.f32 %v1821, 0.0
          %p1950 = scmp.eq.s32.totalorder %s27, 3
          // Predicated region
          $region77: #{tpu_custom_call.1} parent=75 // pred_check
            %p1951 = pneg %p1950
          $region78: #{tpu_custom_call.1} parent=75 // pred_check_branch
            %1953 = sbr.rel (%p1951) target = $region80
          $region79: #{tpu_custom_call.1} parent=75 // pred_region
            %1954 = vst [vmem:[#allocation14] sm:$0xff] %v1822
            %1955 = vst [vmem:[#allocation14 + $0x8] sm:$0xff] %v1823
            %1956 = vst [vmem:[#allocation14 + $0x10] sm:$0xff] %v1824
            %1957 = vst [vmem:[#allocation14 + $0x18] sm:$0xff] %v1825
            %1958 = vst [vmem:[#allocation14 + $0x20] sm:$0xff] %v1826
            %1959 = vst [vmem:[#allocation14 + $0x28] sm:$0xff] %v1827
            %1960 = vst [vmem:[#allocation14 + $0x30] sm:$0xff] %v1828
            %1961 = vst [vmem:[#allocation14 + $0x38] sm:$0xff] %v1829
            %1962 = vst [vmem:[#allocation14 + $0x40] sm:$0xff] %v1830
            %1963 = vst [vmem:[#allocation14 + $0x48] sm:$0xff] %v1831
            %1964 = vst [vmem:[#allocation14 + $0x50] sm:$0xff] %v1832
            %1965 = vst [vmem:[#allocation14 + $0x58] sm:$0xff] %v1833
            %1966 = vst [vmem:[#allocation14 + $0x60] sm:$0xff] %v1834
            %1967 = vst [vmem:[#allocation14 + $0x68] sm:$0xff] %v1835
            %1968 = vst [vmem:[#allocation14 + $0x70] sm:$0xff] %v1836
            %1969 = vst [vmem:[#allocation14 + $0x78] sm:$0xff] %v1837
            %1970 = vst [vmem:[#allocation14 + $0x80] sm:$0xff] %v1838
            %1971 = vst [vmem:[#allocation14 + $0x88] sm:$0xff] %v1839
            %1972 = vst [vmem:[#allocation14 + $0x90] sm:$0xff] %v1840
            %1973 = vst [vmem:[#allocation14 + $0x98] sm:$0xff] %v1841
            %1974 = vst [vmem:[#allocation14 + $0xa0] sm:$0xff] %v1842
            %1975 = vst [vmem:[#allocation14 + $0xa8] sm:$0xff] %v1843
            %1976 = vst [vmem:[#allocation14 + $0xb0] sm:$0xff] %v1844
            %1977 = vst [vmem:[#allocation14 + $0xb8] sm:$0xff] %v1845
            %1978 = vst [vmem:[#allocation14 + $0xc0] sm:$0xff] %v1846
            %1979 = vst [vmem:[#allocation14 + $0xc8] sm:$0xff] %v1847
            %1980 = vst [vmem:[#allocation14 + $0xd0] sm:$0xff] %v1848
            %1981 = vst [vmem:[#allocation14 + $0xd8] sm:$0xff] %v1849
            %1982 = vst [vmem:[#allocation14 + $0xe0] sm:$0xff] %v1850
            %1983 = vst [vmem:[#allocation14 + $0xe8] sm:$0xff] %v1851
            %1984 = vst [vmem:[#allocation14 + $0xf0] sm:$0xff] %v1852
            %1985 = vst [vmem:[#allocation14 + $0xf8] sm:$0xff] %v1853
            %1986 = vst [vmem:[#allocation14 + $0x100] sm:$0xff] %v1854
            %1987 = vst [vmem:[#allocation14 + $0x108] sm:$0xff] %v1855
            %1988 = vst [vmem:[#allocation14 + $0x110] sm:$0xff] %v1856
            %1989 = vst [vmem:[#allocation14 + $0x118] sm:$0xff] %v1857
            %1990 = vst [vmem:[#allocation14 + $0x120] sm:$0xff] %v1858
            %1991 = vst [vmem:[#allocation14 + $0x128] sm:$0xff] %v1859
            %1992 = vst [vmem:[#allocation14 + $0x130] sm:$0xff] %v1860
            %1993 = vst [vmem:[#allocation14 + $0x138] sm:$0xff] %v1861
            %1994 = vst [vmem:[#allocation14 + $0x140] sm:$0xff] %v1862
            %1995 = vst [vmem:[#allocation14 + $0x148] sm:$0xff] %v1863
            %1996 = vst [vmem:[#allocation14 + $0x150] sm:$0xff] %v1864
            %1997 = vst [vmem:[#allocation14 + $0x158] sm:$0xff] %v1865
            %1998 = vst [vmem:[#allocation14 + $0x160] sm:$0xff] %v1866
            %1999 = vst [vmem:[#allocation14 + $0x168] sm:$0xff] %v1867
            %2000 = vst [vmem:[#allocation14 + $0x170] sm:$0xff] %v1868
            %2001 = vst [vmem:[#allocation14 + $0x178] sm:$0xff] %v1869
            %2002 = vst [vmem:[#allocation14 + $0x180] sm:$0xff] %v1870
            %2003 = vst [vmem:[#allocation14 + $0x188] sm:$0xff] %v1871
            %2004 = vst [vmem:[#allocation14 + $0x190] sm:$0xff] %v1872
            %2005 = vst [vmem:[#allocation14 + $0x198] sm:$0xff] %v1873
            %2006 = vst [vmem:[#allocation14 + $0x1a0] sm:$0xff] %v1874
            %2007 = vst [vmem:[#allocation14 + $0x1a8] sm:$0xff] %v1875
            %2008 = vst [vmem:[#allocation14 + $0x1b0] sm:$0xff] %v1876
            %2009 = vst [vmem:[#allocation14 + $0x1b8] sm:$0xff] %v1877
            %2010 = vst [vmem:[#allocation14 + $0x1c0] sm:$0xff] %v1878
            %2011 = vst [vmem:[#allocation14 + $0x1c8] sm:$0xff] %v1879
            %2012 = vst [vmem:[#allocation14 + $0x1d0] sm:$0xff] %v1880
            %2013 = vst [vmem:[#allocation14 + $0x1d8] sm:$0xff] %v1881
            %2014 = vst [vmem:[#allocation14 + $0x1e0] sm:$0xff] %v1882
            %2015 = vst [vmem:[#allocation14 + $0x1e8] sm:$0xff] %v1883
            %2016 = vst [vmem:[#allocation14 + $0x1f0] sm:$0xff] %v1884
            %2017 = vst [vmem:[#allocation14 + $0x1f8] sm:$0xff] %v1885
            %2018 = vst [vmem:[#allocation14 + $0x200] sm:$0xff] %v1886
            %2019 = vst [vmem:[#allocation14 + $0x208] sm:$0xff] %v1887
            %2020 = vst [vmem:[#allocation14 + $0x210] sm:$0xff] %v1888
            %2021 = vst [vmem:[#allocation14 + $0x218] sm:$0xff] %v1889
            %2022 = vst [vmem:[#allocation14 + $0x220] sm:$0xff] %v1890
            %2023 = vst [vmem:[#allocation14 + $0x228] sm:$0xff] %v1891
            %2024 = vst [vmem:[#allocation14 + $0x230] sm:$0xff] %v1892
            %2025 = vst [vmem:[#allocation14 + $0x238] sm:$0xff] %v1893
            %2026 = vst [vmem:[#allocation14 + $0x240] sm:$0xff] %v1894
            %2027 = vst [vmem:[#allocation14 + $0x248] sm:$0xff] %v1895
            %2028 = vst [vmem:[#allocation14 + $0x250] sm:$0xff] %v1896
            %2029 = vst [vmem:[#allocation14 + $0x258] sm:$0xff] %v1897
            %2030 = vst [vmem:[#allocation14 + $0x260] sm:$0xff] %v1898
            %2031 = vst [vmem:[#allocation14 + $0x268] sm:$0xff] %v1899
            %2032 = vst [vmem:[#allocation14 + $0x270] sm:$0xff] %v1900
            %2033 = vst [vmem:[#allocation14 + $0x278] sm:$0xff] %v1901
            %2034 = vst [vmem:[#allocation14 + $0x280] sm:$0xff] %v1902
            %2035 = vst [vmem:[#allocation14 + $0x288] sm:$0xff] %v1903
            %2036 = vst [vmem:[#allocation14 + $0x290] sm:$0xff] %v1904
            %2037 = vst [vmem:[#allocation14 + $0x298] sm:$0xff] %v1905
            %2038 = vst [vmem:[#allocation14 + $0x2a0] sm:$0xff] %v1906
            %2039 = vst [vmem:[#allocation14 + $0x2a8] sm:$0xff] %v1907
            %2040 = vst [vmem:[#allocation14 + $0x2b0] sm:$0xff] %v1908
            %2041 = vst [vmem:[#allocation14 + $0x2b8] sm:$0xff] %v1909
            %2042 = vst [vmem:[#allocation14 + $0x2c0] sm:$0xff] %v1910
            %2043 = vst [vmem:[#allocation14 + $0x2c8] sm:$0xff] %v1911
            %2044 = vst [vmem:[#allocation14 + $0x2d0] sm:$0xff] %v1912
            %2045 = vst [vmem:[#allocation14 + $0x2d8] sm:$0xff] %v1913
            %2046 = vst [vmem:[#allocation14 + $0x2e0] sm:$0xff] %v1914
            %2047 = vst [vmem:[#allocation14 + $0x2e8] sm:$0xff] %v1915
            %2048 = vst [vmem:[#allocation14 + $0x2f0] sm:$0xff] %v1916
            %2049 = vst [vmem:[#allocation14 + $0x2f8] sm:$0xff] %v1917
            %2050 = vst [vmem:[#allocation14 + $0x300] sm:$0xff] %v1918
            %2051 = vst [vmem:[#allocation14 + $0x308] sm:$0xff] %v1919
            %2052 = vst [vmem:[#allocation14 + $0x310] sm:$0xff] %v1920
            %2053 = vst [vmem:[#allocation14 + $0x318] sm:$0xff] %v1921
            %2054 = vst [vmem:[#allocation14 + $0x320] sm:$0xff] %v1922
            %2055 = vst [vmem:[#allocation14 + $0x328] sm:$0xff] %v1923
            %2056 = vst [vmem:[#allocation14 + $0x330] sm:$0xff] %v1924
            %2057 = vst [vmem:[#allocation14 + $0x338] sm:$0xff] %v1925
            %2058 = vst [vmem:[#allocation14 + $0x340] sm:$0xff] %v1926
            %2059 = vst [vmem:[#allocation14 + $0x348] sm:$0xff] %v1927
            %2060 = vst [vmem:[#allocation14 + $0x350] sm:$0xff] %v1928
            %2061 = vst [vmem:[#allocation14 + $0x358] sm:$0xff] %v1929
            %2062 = vst [vmem:[#allocation14 + $0x360] sm:$0xff] %v1930
            %2063 = vst [vmem:[#allocation14 + $0x368] sm:$0xff] %v1931
            %2064 = vst [vmem:[#allocation14 + $0x370] sm:$0xff] %v1932
            %2065 = vst [vmem:[#allocation14 + $0x378] sm:$0xff] %v1933
            %2066 = vst [vmem:[#allocation14 + $0x380] sm:$0xff] %v1934
            %2067 = vst [vmem:[#allocation14 + $0x388] sm:$0xff] %v1935
            %2068 = vst [vmem:[#allocation14 + $0x390] sm:$0xff] %v1936
            %2069 = vst [vmem:[#allocation14 + $0x398] sm:$0xff] %v1937
            %2070 = vst [vmem:[#allocation14 + $0x3a0] sm:$0xff] %v1938
            %2071 = vst [vmem:[#allocation14 + $0x3a8] sm:$0xff] %v1939
            %2072 = vst [vmem:[#allocation14 + $0x3b0] sm:$0xff] %v1940
            %2073 = vst [vmem:[#allocation14 + $0x3b8] sm:$0xff] %v1941
            %2074 = vst [vmem:[#allocation14 + $0x3c0] sm:$0xff] %v1942
            %2075 = vst [vmem:[#allocation14 + $0x3c8] sm:$0xff] %v1943
            %2076 = vst [vmem:[#allocation14 + $0x3d0] sm:$0xff] %v1944
            %2077 = vst [vmem:[#allocation14 + $0x3d8] sm:$0xff] %v1945
            %2078 = vst [vmem:[#allocation14 + $0x3e0] sm:$0xff] %v1946
            %2079 = vst [vmem:[#allocation14 + $0x3e8] sm:$0xff] %v1947
            %2080 = vst [vmem:[#allocation14 + $0x3f0] sm:$0xff] %v1948
            %2081 = vst [vmem:[#allocation14 + $0x3f8] sm:$0xff] %v1949
          $region80: #{tpu_custom_call.1} parent=75 // pred_fallthru
            _
          %p2082 = scmp.lt.s32.totalorder %s27, 3
          // Predicated region
          $region81: #{tpu_custom_call.1} parent=75 // pred_check
            %p2083 = pneg %p2082
          $region82: #{tpu_custom_call.1} parent=75 // pred_check_branch
            %2085 = sbr.rel (%p2083) target = $region84
          $region83: #{tpu_custom_call.1} parent=75 // pred_region
            %v2086 = vpack.c.bf16 %v1826, %v1822
            %v2087 = vpack.c.bf16 %v1827, %v1823
            %v2088 = vpack.c.bf16 %v1828, %v1824
            %v2089 = vpack.c.bf16 %v1829, %v1825
            %v2090 = vpack.c.bf16 %v1834, %v1830
            %v2091 = vpack.c.bf16 %v1835, %v1831
            %v2092 = vpack.c.bf16 %v1836, %v1832
            %v2093 = vpack.c.bf16 %v1837, %v1833
            %v2094 = vpack.c.bf16 %v1842, %v1838
            %v2095 = vpack.c.bf16 %v1843, %v1839
            %v2096 = vpack.c.bf16 %v1844, %v1840
            %v2097 = vpack.c.bf16 %v1845, %v1841
            %v2098 = vpack.c.bf16 %v1850, %v1846
            %v2099 = vpack.c.bf16 %v1851, %v1847
            %v2100 = vpack.c.bf16 %v1852, %v1848
            %v2101 = vpack.c.bf16 %v1853, %v1849
            %v2102 = vpack.c.bf16 %v1858, %v1854
            %v2103 = vpack.c.bf16 %v1859, %v1855
            %v2104 = vpack.c.bf16 %v1860, %v1856
            %v2105 = vpack.c.bf16 %v1861, %v1857
            %v2106 = vpack.c.bf16 %v1866, %v1862
            %v2107 = vpack.c.bf16 %v1867, %v1863
            %v2108 = vpack.c.bf16 %v1868, %v1864
            %v2109 = vpack.c.bf16 %v1869, %v1865
            %v2110 = vpack.c.bf16 %v1874, %v1870
            %v2111 = vpack.c.bf16 %v1875, %v1871
            %v2112 = vpack.c.bf16 %v1876, %v1872
            %v2113 = vpack.c.bf16 %v1877, %v1873
            %v2114 = vpack.c.bf16 %v1882, %v1878
            %v2115 = vpack.c.bf16 %v1883, %v1879
            %v2116 = vpack.c.bf16 %v1884, %v1880
            %v2117 = vpack.c.bf16 %v1885, %v1881
            %v2118 = vpack.c.bf16 %v1890, %v1886
            %v2119 = vpack.c.bf16 %v1891, %v1887
            %v2120 = vpack.c.bf16 %v1892, %v1888
            %v2121 = vpack.c.bf16 %v1893, %v1889
            %v2122 = vpack.c.bf16 %v1898, %v1894
            %v2123 = vpack.c.bf16 %v1899, %v1895
            %v2124 = vpack.c.bf16 %v1900, %v1896
            %v2125 = vpack.c.bf16 %v1901, %v1897
            %v2126 = vpack.c.bf16 %v1906, %v1902
            %v2127 = vpack.c.bf16 %v1907, %v1903
            %v2128 = vpack.c.bf16 %v1908, %v1904
            %v2129 = vpack.c.bf16 %v1909, %v1905
            %v2130 = vpack.c.bf16 %v1914, %v1910
            %v2131 = vpack.c.bf16 %v1915, %v1911
            %v2132 = vpack.c.bf16 %v1916, %v1912
            %v2133 = vpack.c.bf16 %v1917, %v1913
            %v2134 = vpack.c.bf16 %v1922, %v1918
            %v2135 = vpack.c.bf16 %v1923, %v1919
            %v2136 = vpack.c.bf16 %v1924, %v1920
            %v2137 = vpack.c.bf16 %v1925, %v1921
            %v2138 = vpack.c.bf16 %v1930, %v1926
            %v2139 = vpack.c.bf16 %v1931, %v1927
            %v2140 = vpack.c.bf16 %v1932, %v1928
            %v2141 = vpack.c.bf16 %v1933, %v1929
            %v2142 = vpack.c.bf16 %v1938, %v1934
            %v2143 = vpack.c.bf16 %v1939, %v1935
            %v2144 = vpack.c.bf16 %v1940, %v1936
            %v2145 = vpack.c.bf16 %v1941, %v1937
            %v2146 = vpack.c.bf16 %v1946, %v1942
            %v2147 = vpack.c.bf16 %v1947, %v1943
            %v2148 = vpack.c.bf16 %v1948, %v1944
            %v2149 = vpack.c.bf16 %v1949, %v1945
            %2150 = vst [vmem:[#allocation2] sm:$0xff] %v2086
            %2151 = vst [vmem:[#allocation2 + $0x8] sm:$0xff] %v2087
            %2152 = vst [vmem:[#allocation2 + $0x10] sm:$0xff] %v2088
            %2153 = vst [vmem:[#allocation2 + $0x18] sm:$0xff] %v2089
            %2154 = vst [vmem:[#allocation2 + $0x20] sm:$0xff] %v2090
            %2155 = vst [vmem:[#allocation2 + $0x28] sm:$0xff] %v2091
            %2156 = vst [vmem:[#allocation2 + $0x30] sm:$0xff] %v2092
            %2157 = vst [vmem:[#allocation2 + $0x38] sm:$0xff] %v2093
            %2158 = vst [vmem:[#allocation2 + $0x40] sm:$0xff] %v2094
            %2159 = vst [vmem:[#allocation2 + $0x48] sm:$0xff] %v2095
            %2160 = vst [vmem:[#allocation2 + $0x50] sm:$0xff] %v2096
            %2161 = vst [vmem:[#allocation2 + $0x58] sm:$0xff] %v2097
            %2162 = vst [vmem:[#allocation2 + $0x60] sm:$0xff] %v2098
            %2163 = vst [vmem:[#allocation2 + $0x68] sm:$0xff] %v2099
            %2164 = vst [vmem:[#allocation2 + $0x70] sm:$0xff] %v2100
            %2165 = vst [vmem:[#allocation2 + $0x78] sm:$0xff] %v2101
            %2166 = vst [vmem:[#allocation2 + $0x80] sm:$0xff] %v2102
            %2167 = vst [vmem:[#allocation2 + $0x88] sm:$0xff] %v2103
            %2168 = vst [vmem:[#allocation2 + $0x90] sm:$0xff] %v2104
            %2169 = vst [vmem:[#allocation2 + $0x98] sm:$0xff] %v2105
            %2170 = vst [vmem:[#allocation2 + $0xa0] sm:$0xff] %v2106
            %2171 = vst [vmem:[#allocation2 + $0xa8] sm:$0xff] %v2107
            %2172 = vst [vmem:[#allocation2 + $0xb0] sm:$0xff] %v2108
            %2173 = vst [vmem:[#allocation2 + $0xb8] sm:$0xff] %v2109
            %2174 = vst [vmem:[#allocation2 + $0xc0] sm:$0xff] %v2110
            %2175 = vst [vmem:[#allocation2 + $0xc8] sm:$0xff] %v2111
            %2176 = vst [vmem:[#allocation2 + $0xd0] sm:$0xff] %v2112
            %2177 = vst [vmem:[#allocation2 + $0xd8] sm:$0xff] %v2113
            %2178 = vst [vmem:[#allocation2 + $0xe0] sm:$0xff] %v2114
            %2179 = vst [vmem:[#allocation2 + $0xe8] sm:$0xff] %v2115
            %2180 = vst [vmem:[#allocation2 + $0xf0] sm:$0xff] %v2116
            %2181 = vst [vmem:[#allocation2 + $0xf8] sm:$0xff] %v2117
            %2182 = vst [vmem:[#allocation2 + $0x100] sm:$0xff] %v2118
            %2183 = vst [vmem:[#allocation2 + $0x108] sm:$0xff] %v2119
            %2184 = vst [vmem:[#allocation2 + $0x110] sm:$0xff] %v2120
            %2185 = vst [vmem:[#allocation2 + $0x118] sm:$0xff] %v2121
            %2186 = vst [vmem:[#allocation2 + $0x120] sm:$0xff] %v2122
            %2187 = vst [vmem:[#allocation2 + $0x128] sm:$0xff] %v2123
            %2188 = vst [vmem:[#allocation2 + $0x130] sm:$0xff] %v2124
            %2189 = vst [vmem:[#allocation2 + $0x138] sm:$0xff] %v2125
            %2190 = vst [vmem:[#allocation2 + $0x140] sm:$0xff] %v2126
            %2191 = vst [vmem:[#allocation2 + $0x148] sm:$0xff] %v2127
            %2192 = vst [vmem:[#allocation2 + $0x150] sm:$0xff] %v2128
            %2193 = vst [vmem:[#allocation2 + $0x158] sm:$0xff] %v2129
            %2194 = vst [vmem:[#allocation2 + $0x160] sm:$0xff] %v2130
            %2195 = vst [vmem:[#allocation2 + $0x168] sm:$0xff] %v2131
            %2196 = vst [vmem:[#allocation2 + $0x170] sm:$0xff] %v2132
            %2197 = vst [vmem:[#allocation2 + $0x178] sm:$0xff] %v2133
            %2198 = vst [vmem:[#allocation2 + $0x180] sm:$0xff] %v2134
            %2199 = vst [vmem:[#allocation2 + $0x188] sm:$0xff] %v2135
            %2200 = vst [vmem:[#allocation2 + $0x190] sm:$0xff] %v2136
            %2201 = vst [vmem:[#allocation2 + $0x198] sm:$0xff] %v2137
            %2202 = vst [vmem:[#allocation2 + $0x1a0] sm:$0xff] %v2138
            %2203 = vst [vmem:[#allocation2 + $0x1a8] sm:$0xff] %v2139
            %2204 = vst [vmem:[#allocation2 + $0x1b0] sm:$0xff] %v2140
            %2205 = vst [vmem:[#allocation2 + $0x1b8] sm:$0xff] %v2141
            %2206 = vst [vmem:[#allocation2 + $0x1c0] sm:$0xff] %v2142
            %2207 = vst [vmem:[#allocation2 + $0x1c8] sm:$0xff] %v2143
            %2208 = vst [vmem:[#allocation2 + $0x1d0] sm:$0xff] %v2144
            %2209 = vst [vmem:[#allocation2 + $0x1d8] sm:$0xff] %v2145
            %2210 = vst [vmem:[#allocation2 + $0x1e0] sm:$0xff] %v2146
            %2211 = vst [vmem:[#allocation2 + $0x1e8] sm:$0xff] %v2147
            %2212 = vst [vmem:[#allocation2 + $0x1f0] sm:$0xff] %v2148
            %2213 = vst [vmem:[#allocation2 + $0x1f8] sm:$0xff] %v2149
          $region84: #{tpu_custom_call.1} parent=75 // pred_fallthru
            _
        $region76: #{tpu_custom_call.1} parent=47 // pred_fallthru
          _
        %p2214 = scmp.gt.s32.totalorder %s27, 0
        // Predicated region
        $region85: #{tpu_custom_call.1} parent=47 // pred_check
          %p2215 = pneg %p2214
        $region86: #{tpu_custom_call.1} parent=47 // pred_check_branch
          %2217 = sbr.rel (%p2215) target = $region88
        $region87: #{tpu_custom_call.1} parent=47 // pred_region
          %v2218 = vld [vmem:[#allocation2] sm:$0xff]
          %v2219 = vld [vmem:[#allocation2 + $0x8] sm:$0xff]
          %v2220 = vld [vmem:[#allocation2 + $0x10] sm:$0xff]
          %v2221 = vld [vmem:[#allocation2 + $0x18] sm:$0xff]
          %v2222 = vld [vmem:[#allocation2 + $0x20] sm:$0xff]
          %v2223 = vld [vmem:[#allocation2 + $0x28] sm:$0xff]
          %v2224 = vld [vmem:[#allocation2 + $0x30] sm:$0xff]
          %v2225 = vld [vmem:[#allocation2 + $0x38] sm:$0xff]
          %v2226 = vld [vmem:[#allocation2 + $0x40] sm:$0xff]
          %v2227 = vld [vmem:[#allocation2 + $0x48] sm:$0xff]
          %v2228 = vld [vmem:[#allocation2 + $0x50] sm:$0xff]
          %v2229 = vld [vmem:[#allocation2 + $0x58] sm:$0xff]
          %v2230 = vld [vmem:[#allocation2 + $0x60] sm:$0xff]
          %v2231 = vld [vmem:[#allocation2 + $0x68] sm:$0xff]
          %v2232 = vld [vmem:[#allocation2 + $0x70] sm:$0xff]
          %v2233 = vld [vmem:[#allocation2 + $0x78] sm:$0xff]
          %v2234 = vld [vmem:[#allocation2 + $0x80] sm:$0xff]
          %v2235 = vld [vmem:[#allocation2 + $0x88] sm:$0xff]
          %v2236 = vld [vmem:[#allocation2 + $0x90] sm:$0xff]
          %v2237 = vld [vmem:[#allocation2 + $0x98] sm:$0xff]
          %v2238 = vld [vmem:[#allocation2 + $0xa0] sm:$0xff]
          %v2239 = vld [vmem:[#allocation2 + $0xa8] sm:$0xff]
          %v2240 = vld [vmem:[#allocation2 + $0xb0] sm:$0xff]
          %v2241 = vld [vmem:[#allocation2 + $0xb8] sm:$0xff]
          %v2242 = vld [vmem:[#allocation2 + $0xc0] sm:$0xff]
          %v2243 = vld [vmem:[#allocation2 + $0xc8] sm:$0xff]
          %v2244 = vld [vmem:[#allocation2 + $0xd0] sm:$0xff]
          %v2245 = vld [vmem:[#allocation2 + $0xd8] sm:$0xff]
          %v2246 = vld [vmem:[#allocation2 + $0xe0] sm:$0xff]
          %v2247 = vld [vmem:[#allocation2 + $0xe8] sm:$0xff]
          %v2248 = vld [vmem:[#allocation2 + $0xf0] sm:$0xff]
          %v2249 = vld [vmem:[#allocation2 + $0xf8] sm:$0xff]
          %v2250 = vld [vmem:[#allocation2 + $0x100] sm:$0xff]
          %v2251 = vld [vmem:[#allocation2 + $0x108] sm:$0xff]
          %v2252 = vld [vmem:[#allocation2 + $0x110] sm:$0xff]
          %v2253 = vld [vmem:[#allocation2 + $0x118] sm:$0xff]
          %v2254 = vld [vmem:[#allocation2 + $0x120] sm:$0xff]
          %v2255 = vld [vmem:[#allocation2 + $0x128] sm:$0xff]
          %v2256 = vld [vmem:[#allocation2 + $0x130] sm:$0xff]
          %v2257 = vld [vmem:[#allocation2 + $0x138] sm:$0xff]
          %v2258 = vld [vmem:[#allocation2 + $0x140] sm:$0xff]
          %v2259 = vld [vmem:[#allocation2 + $0x148] sm:$0xff]
          %v2260 = vld [vmem:[#allocation2 + $0x150] sm:$0xff]
          %v2261 = vld [vmem:[#allocation2 + $0x158] sm:$0xff]
          %v2262 = vld [vmem:[#allocation2 + $0x160] sm:$0xff]
          %v2263 = vld [vmem:[#allocation2 + $0x168] sm:$0xff]
          %v2264 = vld [vmem:[#allocation2 + $0x170] sm:$0xff]
          %v2265 = vld [vmem:[#allocation2 + $0x178] sm:$0xff]
          %v2266 = vld [vmem:[#allocation2 + $0x180] sm:$0xff]
          %v2267 = vld [vmem:[#allocation2 + $0x188] sm:$0xff]
          %v2268 = vld [vmem:[#allocation2 + $0x190] sm:$0xff]
          %v2269 = vld [vmem:[#allocation2 + $0x198] sm:$0xff]
          %v2270 = vld [vmem:[#allocation2 + $0x1a0] sm:$0xff]
          %v2271 = vld [vmem:[#allocation2 + $0x1a8] sm:$0xff]
          %v2272 = vld [vmem:[#allocation2 + $0x1b0] sm:$0xff]
          %v2273 = vld [vmem:[#allocation2 + $0x1b8] sm:$0xff]
          %v2274 = vld [vmem:[#allocation2 + $0x1c0] sm:$0xff]
          %v2275 = vld [vmem:[#allocation2 + $0x1c8] sm:$0xff]
          %v2276 = vld [vmem:[#allocation2 + $0x1d0] sm:$0xff]
          %v2277 = vld [vmem:[#allocation2 + $0x1d8] sm:$0xff]
          %v2278 = vld [vmem:[#allocation2 + $0x1e0] sm:$0xff]
          %v2279 = vld [vmem:[#allocation2 + $0x1e8] sm:$0xff]
          %v2280 = vld [vmem:[#allocation2 + $0x1f0] sm:$0xff]
          %v2281 = vld [vmem:[#allocation2 + $0x1f8] sm:$0xff]
          %v2282 = vld [vmem:[%s371] sm:$0xff]
          %v2283 = vld [vmem:[%s371 + $0x8] sm:$0xff]
          %v2284 = vld [vmem:[%s371 + $0x10] sm:$0xff]
          %v2285 = vld [vmem:[%s371 + $0x18] sm:$0xff]
          %v2286 = vld [vmem:[%s371 + $0x20] sm:$0xff]
          %v2287 = vld [vmem:[%s371 + $0x28] sm:$0xff]
          %v2288 = vld [vmem:[%s371 + $0x30] sm:$0xff]
          %v2289 = vld [vmem:[%s371 + $0x38] sm:$0xff]
          %v2290 = vld [vmem:[%s371 + $0x40] sm:$0xff]
          %v2291 = vld [vmem:[%s371 + $0x48] sm:$0xff]
          %v2292 = vld [vmem:[%s371 + $0x50] sm:$0xff]
          %v2293 = vld [vmem:[%s371 + $0x58] sm:$0xff]
          %v2294 = vld [vmem:[%s371 + $0x60] sm:$0xff]
          %v2295 = vld [vmem:[%s371 + $0x68] sm:$0xff]
          %v2296 = vld [vmem:[%s371 + $0x70] sm:$0xff]
          %v2297 = vld [vmem:[%s371 + $0x78] sm:$0xff]
          %v2298 = vld [vmem:[%s371 + $0x80] sm:$0xff]
          %v2299 = vld [vmem:[%s371 + $0x88] sm:$0xff]
          %v2300 = vld [vmem:[%s371 + $0x90] sm:$0xff]
          %v2301 = vld [vmem:[%s371 + $0x98] sm:$0xff]
          %v2302 = vld [vmem:[%s371 + $0xa0] sm:$0xff]
          %v2303 = vld [vmem:[%s371 + $0xa8] sm:$0xff]
          %v2304 = vld [vmem:[%s371 + $0xb0] sm:$0xff]
          %v2305 = vld [vmem:[%s371 + $0xb8] sm:$0xff]
          %v2306 = vld [vmem:[%s371 + $0xc0] sm:$0xff]
          %v2307 = vld [vmem:[%s371 + $0xc8] sm:$0xff]
          %v2308 = vld [vmem:[%s371 + $0xd0] sm:$0xff]
          %v2309 = vld [vmem:[%s371 + $0xd8] sm:$0xff]
          %v2310 = vld [vmem:[%s371 + $0xe0] sm:$0xff]
          %v2311 = vld [vmem:[%s371 + $0xe8] sm:$0xff]
          %v2312 = vld [vmem:[%s371 + $0xf0] sm:$0xff]
          %v2313 = vld [vmem:[%s371 + $0xf8] sm:$0xff]
          %v2314 = vld [vmem:[%s371 + $0x100] sm:$0xff]
          %v2315 = vld [vmem:[%s371 + $0x108] sm:$0xff]
          %v2316 = vld [vmem:[%s371 + $0x110] sm:$0xff]
          %v2317 = vld [vmem:[%s371 + $0x118] sm:$0xff]
          %v2318 = vld [vmem:[%s371 + $0x120] sm:$0xff]
          %v2319 = vld [vmem:[%s371 + $0x128] sm:$0xff]
          %v2320 = vld [vmem:[%s371 + $0x130] sm:$0xff]
          %v2321 = vld [vmem:[%s371 + $0x138] sm:$0xff]
          %v2322 = vld [vmem:[%s371 + $0x140] sm:$0xff]
          %v2323 = vld [vmem:[%s371 + $0x148] sm:$0xff]
          %v2324 = vld [vmem:[%s371 + $0x150] sm:$0xff]
          %v2325 = vld [vmem:[%s371 + $0x158] sm:$0xff]
          %v2326 = vld [vmem:[%s371 + $0x160] sm:$0xff]
          %v2327 = vld [vmem:[%s371 + $0x168] sm:$0xff]
          %v2328 = vld [vmem:[%s371 + $0x170] sm:$0xff]
          %v2329 = vld [vmem:[%s371 + $0x178] sm:$0xff]
          %v2330 = vld [vmem:[%s371 + $0x180] sm:$0xff]
          %v2331 = vld [vmem:[%s371 + $0x188] sm:$0xff]
          %v2332 = vld [vmem:[%s371 + $0x190] sm:$0xff]
          %v2333 = vld [vmem:[%s371 + $0x198] sm:$0xff]
          %v2334 = vld [vmem:[%s371 + $0x1a0] sm:$0xff]
          %v2335 = vld [vmem:[%s371 + $0x1a8] sm:$0xff]
          %v2336 = vld [vmem:[%s371 + $0x1b0] sm:$0xff]
          %v2337 = vld [vmem:[%s371 + $0x1b8] sm:$0xff]
          %v2338 = vld [vmem:[%s371 + $0x1c0] sm:$0xff]
          %v2339 = vld [vmem:[%s371 + $0x1c8] sm:$0xff]
          %v2340 = vld [vmem:[%s371 + $0x1d0] sm:$0xff]
          %v2341 = vld [vmem:[%s371 + $0x1d8] sm:$0xff]
          %v2342 = vld [vmem:[%s371 + $0x1e0] sm:$0xff]
          %v2343 = vld [vmem:[%s371 + $0x1e8] sm:$0xff]
          %v2344 = vld [vmem:[%s371 + $0x1f0] sm:$0xff]
          %v2345 = vld [vmem:[%s371 + $0x1f8] sm:$0xff]
          %v2346 = vld [vmem:[%s371 + $0x200] sm:$0xff]
          %v2347 = vld [vmem:[%s371 + $0x208] sm:$0xff]
          %v2348 = vld [vmem:[%s371 + $0x210] sm:$0xff]
          %v2349 = vld [vmem:[%s371 + $0x218] sm:$0xff]
          %v2350 = vld [vmem:[%s371 + $0x220] sm:$0xff]
          %v2351 = vld [vmem:[%s371 + $0x228] sm:$0xff]
          %v2352 = vld [vmem:[%s371 + $0x230] sm:$0xff]
          %v2353 = vld [vmem:[%s371 + $0x238] sm:$0xff]
          %v2354 = vld [vmem:[%s371 + $0x240] sm:$0xff]
          %v2355 = vld [vmem:[%s371 + $0x248] sm:$0xff]
          %v2356 = vld [vmem:[%s371 + $0x250] sm:$0xff]
          %v2357 = vld [vmem:[%s371 + $0x258] sm:$0xff]
          %v2358 = vld [vmem:[%s371 + $0x260] sm:$0xff]
          %v2359 = vld [vmem:[%s371 + $0x268] sm:$0xff]
          %v2360 = vld [vmem:[%s371 + $0x270] sm:$0xff]
          %v2361 = vld [vmem:[%s371 + $0x278] sm:$0xff]
          %v2362 = vld [vmem:[%s371 + $0x280] sm:$0xff]
          %v2363 = vld [vmem:[%s371 + $0x288] sm:$0xff]
          %v2364 = vld [vmem:[%s371 + $0x290] sm:$0xff]
          %v2365 = vld [vmem:[%s371 + $0x298] sm:$0xff]
          %v2366 = vld [vmem:[%s371 + $0x2a0] sm:$0xff]
          %v2367 = vld [vmem:[%s371 + $0x2a8] sm:$0xff]
          %v2368 = vld [vmem:[%s371 + $0x2b0] sm:$0xff]
          %v2369 = vld [vmem:[%s371 + $0x2b8] sm:$0xff]
          %v2370 = vld [vmem:[%s371 + $0x2c0] sm:$0xff]
          %v2371 = vld [vmem:[%s371 + $0x2c8] sm:$0xff]
          %v2372 = vld [vmem:[%s371 + $0x2d0] sm:$0xff]
          %v2373 = vld [vmem:[%s371 + $0x2d8] sm:$0xff]
          %v2374 = vld [vmem:[%s371 + $0x2e0] sm:$0xff]
          %v2375 = vld [vmem:[%s371 + $0x2e8] sm:$0xff]
          %v2376 = vld [vmem:[%s371 + $0x2f0] sm:$0xff]
          %v2377 = vld [vmem:[%s371 + $0x2f8] sm:$0xff]
          %v2378 = vld [vmem:[%s371 + $0x300] sm:$0xff]
          %v2379 = vld [vmem:[%s371 + $0x308] sm:$0xff]
          %v2380 = vld [vmem:[%s371 + $0x310] sm:$0xff]
          %v2381 = vld [vmem:[%s371 + $0x318] sm:$0xff]
          %v2382 = vld [vmem:[%s371 + $0x320] sm:$0xff]
          %v2383 = vld [vmem:[%s371 + $0x328] sm:$0xff]
          %v2384 = vld [vmem:[%s371 + $0x330] sm:$0xff]
          %v2385 = vld [vmem:[%s371 + $0x338] sm:$0xff]
          %v2386 = vld [vmem:[%s371 + $0x340] sm:$0xff]
          %v2387 = vld [vmem:[%s371 + $0x348] sm:$0xff]
          %v2388 = vld [vmem:[%s371 + $0x350] sm:$0xff]
          %v2389 = vld [vmem:[%s371 + $0x358] sm:$0xff]
          %v2390 = vld [vmem:[%s371 + $0x360] sm:$0xff]
          %v2391 = vld [vmem:[%s371 + $0x368] sm:$0xff]
          %v2392 = vld [vmem:[%s371 + $0x370] sm:$0xff]
          %v2393 = vld [vmem:[%s371 + $0x378] sm:$0xff]
          %v2394 = vld [vmem:[%s371 + $0x380] sm:$0xff]
          %v2395 = vld [vmem:[%s371 + $0x388] sm:$0xff]
          %v2396 = vld [vmem:[%s371 + $0x390] sm:$0xff]
          %v2397 = vld [vmem:[%s371 + $0x398] sm:$0xff]
          %v2398 = vld [vmem:[%s371 + $0x3a0] sm:$0xff]
          %v2399 = vld [vmem:[%s371 + $0x3a8] sm:$0xff]
          %v2400 = vld [vmem:[%s371 + $0x3b0] sm:$0xff]
          %v2401 = vld [vmem:[%s371 + $0x3b8] sm:$0xff]
          %v2402 = vld [vmem:[%s371 + $0x3c0] sm:$0xff]
          %v2403 = vld [vmem:[%s371 + $0x3c8] sm:$0xff]
          %v2404 = vld [vmem:[%s371 + $0x3d0] sm:$0xff]
          %v2405 = vld [vmem:[%s371 + $0x3d8] sm:$0xff]
          %v2406 = vld [vmem:[%s371 + $0x3e0] sm:$0xff]
          %v2407 = vld [vmem:[%s371 + $0x3e8] sm:$0xff]
          %v2408 = vld [vmem:[%s371 + $0x3f0] sm:$0xff]
          %v2409 = vld [vmem:[%s371 + $0x3f8] sm:$0xff]
          %v2538 = vunpack.c.l.b16 %v2282
          %v2539 = vunpack.c.h.b16 %v2282
          %v2540 = vunpack.c.l.b16 %v2283
          %v2541 = vunpack.c.h.b16 %v2283
          %v2542 = vunpack.c.l.b16 %v2284
          %v2543 = vunpack.c.h.b16 %v2284
          %v2544 = vunpack.c.l.b16 %v2285
          %v2545 = vunpack.c.h.b16 %v2285
          %v2546 = vunpack.c.l.b16 %v2286
          %v2547 = vunpack.c.h.b16 %v2286
          %v2548 = vunpack.c.l.b16 %v2287
          %v2549 = vunpack.c.h.b16 %v2287
          %v2550 = vunpack.c.l.b16 %v2288
          %v2551 = vunpack.c.h.b16 %v2288
          %v2552 = vunpack.c.l.b16 %v2289
          %v2553 = vunpack.c.h.b16 %v2289
          %v2554 = vunpack.c.l.b16 %v2290
          %v2555 = vunpack.c.h.b16 %v2290
          %v2556 = vunpack.c.l.b16 %v2291
          %v2557 = vunpack.c.h.b16 %v2291
          %v2558 = vunpack.c.l.b16 %v2292
          %v2559 = vunpack.c.h.b16 %v2292
          %v2560 = vunpack.c.l.b16 %v2293
          %v2561 = vunpack.c.h.b16 %v2293
          %v2562 = vunpack.c.l.b16 %v2294
          %v2563 = vunpack.c.h.b16 %v2294
          %v2564 = vunpack.c.l.b16 %v2295
          %v2565 = vunpack.c.h.b16 %v2295
          %v2566 = vunpack.c.l.b16 %v2296
          %v2567 = vunpack.c.h.b16 %v2296
          %v2568 = vunpack.c.l.b16 %v2297
          %v2569 = vunpack.c.h.b16 %v2297
          %v2570 = vunpack.c.l.b16 %v2298
          %v2571 = vunpack.c.h.b16 %v2298
          %v2572 = vunpack.c.l.b16 %v2299
          %v2573 = vunpack.c.h.b16 %v2299
          %v2574 = vunpack.c.l.b16 %v2300
          %v2575 = vunpack.c.h.b16 %v2300
          %v2576 = vunpack.c.l.b16 %v2301
          %v2577 = vunpack.c.h.b16 %v2301
          %v2578 = vunpack.c.l.b16 %v2302
          %v2579 = vunpack.c.h.b16 %v2302
          %v2580 = vunpack.c.l.b16 %v2303
          %v2581 = vunpack.c.h.b16 %v2303
          %v2582 = vunpack.c.l.b16 %v2304
          %v2583 = vunpack.c.h.b16 %v2304
          %v2584 = vunpack.c.l.b16 %v2305
          %v2585 = vunpack.c.h.b16 %v2305
          %v2586 = vunpack.c.l.b16 %v2306
          %v2587 = vunpack.c.h.b16 %v2306
          %v2588 = vunpack.c.l.b16 %v2307
          %v2589 = vunpack.c.h.b16 %v2307
          %v2590 = vunpack.c.l.b16 %v2308
          %v2591 = vunpack.c.h.b16 %v2308
          %v2592 = vunpack.c.l.b16 %v2309
          %v2593 = vunpack.c.h.b16 %v2309
          %v2594 = vunpack.c.l.b16 %v2310
          %v2595 = vunpack.c.h.b16 %v2310
          %v2596 = vunpack.c.l.b16 %v2311
          %v2597 = vunpack.c.h.b16 %v2311
          %v2598 = vunpack.c.l.b16 %v2312
          %v2599 = vunpack.c.h.b16 %v2312
          %v2600 = vunpack.c.l.b16 %v2313
          %v2601 = vunpack.c.h.b16 %v2313
          %v2602 = vunpack.c.l.b16 %v2314
          %v2603 = vunpack.c.h.b16 %v2314
          %v2604 = vunpack.c.l.b16 %v2315
          %v2605 = vunpack.c.h.b16 %v2315
          %v2606 = vunpack.c.l.b16 %v2316
          %v2607 = vunpack.c.h.b16 %v2316
          %v2608 = vunpack.c.l.b16 %v2317
          %v2609 = vunpack.c.h.b16 %v2317
          %v2610 = vunpack.c.l.b16 %v2318
          %v2611 = vunpack.c.h.b16 %v2318
          %v2612 = vunpack.c.l.b16 %v2319
          %v2613 = vunpack.c.h.b16 %v2319
          %v2614 = vunpack.c.l.b16 %v2320
          %v2615 = vunpack.c.h.b16 %v2320
          %v2616 = vunpack.c.l.b16 %v2321
          %v2617 = vunpack.c.h.b16 %v2321
          %v2618 = vunpack.c.l.b16 %v2322
          %v2619 = vunpack.c.h.b16 %v2322
          %v2620 = vunpack.c.l.b16 %v2323
          %v2621 = vunpack.c.h.b16 %v2323
          %v2622 = vunpack.c.l.b16 %v2324
          %v2623 = vunpack.c.h.b16 %v2324
          %v2624 = vunpack.c.l.b16 %v2325
          %v2625 = vunpack.c.h.b16 %v2325
          %v2626 = vunpack.c.l.b16 %v2326
          %v2627 = vunpack.c.h.b16 %v2326
          %v2628 = vunpack.c.l.b16 %v2327
          %v2629 = vunpack.c.h.b16 %v2327
          %v2630 = vunpack.c.l.b16 %v2328
          %v2631 = vunpack.c.h.b16 %v2328
          %v2632 = vunpack.c.l.b16 %v2329
          %v2633 = vunpack.c.h.b16 %v2329
          %v2634 = vunpack.c.l.b16 %v2330
          %v2635 = vunpack.c.h.b16 %v2330
          %v2636 = vunpack.c.l.b16 %v2331
          %v2637 = vunpack.c.h.b16 %v2331
          %v2638 = vunpack.c.l.b16 %v2332
          %v2639 = vunpack.c.h.b16 %v2332
          %v2640 = vunpack.c.l.b16 %v2333
          %v2641 = vunpack.c.h.b16 %v2333
          %v2642 = vunpack.c.l.b16 %v2334
          %v2643 = vunpack.c.h.b16 %v2334
          %v2644 = vunpack.c.l.b16 %v2335
          %v2645 = vunpack.c.h.b16 %v2335
          %v2646 = vunpack.c.l.b16 %v2336
          %v2647 = vunpack.c.h.b16 %v2336
          %v2648 = vunpack.c.l.b16 %v2337
          %v2649 = vunpack.c.h.b16 %v2337
          %v2650 = vunpack.c.l.b16 %v2338
          %v2651 = vunpack.c.h.b16 %v2338
          %v2652 = vunpack.c.l.b16 %v2339
          %v2653 = vunpack.c.h.b16 %v2339
          %v2654 = vunpack.c.l.b16 %v2340
          %v2655 = vunpack.c.h.b16 %v2340
          %v2656 = vunpack.c.l.b16 %v2341
          %v2657 = vunpack.c.h.b16 %v2341
          %v2658 = vunpack.c.l.b16 %v2342
          %v2659 = vunpack.c.h.b16 %v2342
          %v2660 = vunpack.c.l.b16 %v2343
          %v2661 = vunpack.c.h.b16 %v2343
          %v2662 = vunpack.c.l.b16 %v2344
          %v2663 = vunpack.c.h.b16 %v2344
          %v2664 = vunpack.c.l.b16 %v2345
          %v2665 = vunpack.c.h.b16 %v2345
          %v2666 = vunpack.c.l.b16 %v2346
          %v2667 = vunpack.c.h.b16 %v2346
          %v2668 = vunpack.c.l.b16 %v2347
          %v2669 = vunpack.c.h.b16 %v2347
          %v2670 = vunpack.c.l.b16 %v2348
          %v2671 = vunpack.c.h.b16 %v2348
          %v2672 = vunpack.c.l.b16 %v2349
          %v2673 = vunpack.c.h.b16 %v2349
          %v2674 = vunpack.c.l.b16 %v2350
          %v2675 = vunpack.c.h.b16 %v2350
          %v2676 = vunpack.c.l.b16 %v2351
          %v2677 = vunpack.c.h.b16 %v2351
          %v2678 = vunpack.c.l.b16 %v2352
          %v2679 = vunpack.c.h.b16 %v2352
          %v2680 = vunpack.c.l.b16 %v2353
          %v2681 = vunpack.c.h.b16 %v2353
          %v2682 = vunpack.c.l.b16 %v2354
          %v2683 = vunpack.c.h.b16 %v2354
          %v2684 = vunpack.c.l.b16 %v2355
          %v2685 = vunpack.c.h.b16 %v2355
          %v2686 = vunpack.c.l.b16 %v2356
          %v2687 = vunpack.c.h.b16 %v2356
          %v2688 = vunpack.c.l.b16 %v2357
          %v2689 = vunpack.c.h.b16 %v2357
          %v2690 = vunpack.c.l.b16 %v2358
          %v2691 = vunpack.c.h.b16 %v2358
          %v2692 = vunpack.c.l.b16 %v2359
          %v2693 = vunpack.c.h.b16 %v2359
          %v2694 = vunpack.c.l.b16 %v2360
          %v2695 = vunpack.c.h.b16 %v2360
          %v2696 = vunpack.c.l.b16 %v2361
          %v2697 = vunpack.c.h.b16 %v2361
          %v2698 = vunpack.c.l.b16 %v2362
          %v2699 = vunpack.c.h.b16 %v2362
          %v2700 = vunpack.c.l.b16 %v2363
          %v2701 = vunpack.c.h.b16 %v2363
          %v2702 = vunpack.c.l.b16 %v2364
          %v2703 = vunpack.c.h.b16 %v2364
          %v2704 = vunpack.c.l.b16 %v2365
          %v2705 = vunpack.c.h.b16 %v2365
          %v2706 = vunpack.c.l.b16 %v2366
          %v2707 = vunpack.c.h.b16 %v2366
          %v2708 = vunpack.c.l.b16 %v2367
          %v2709 = vunpack.c.h.b16 %v2367
          %v2710 = vunpack.c.l.b16 %v2368
          %v2711 = vunpack.c.h.b16 %v2368
          %v2712 = vunpack.c.l.b16 %v2369
          %v2713 = vunpack.c.h.b16 %v2369
          %v2714 = vunpack.c.l.b16 %v2370
          %v2715 = vunpack.c.h.b16 %v2370
          %v2716 = vunpack.c.l.b16 %v2371
          %v2717 = vunpack.c.h.b16 %v2371
          %v2718 = vunpack.c.l.b16 %v2372
          %v2719 = vunpack.c.h.b16 %v2372
          %v2720 = vunpack.c.l.b16 %v2373
          %v2721 = vunpack.c.h.b16 %v2373
          %v2722 = vunpack.c.l.b16 %v2374
          %v2723 = vunpack.c.h.b16 %v2374
          %v2724 = vunpack.c.l.b16 %v2375
          %v2725 = vunpack.c.h.b16 %v2375
          %v2726 = vunpack.c.l.b16 %v2376
          %v2727 = vunpack.c.h.b16 %v2376
          %v2728 = vunpack.c.l.b16 %v2377
          %v2729 = vunpack.c.h.b16 %v2377
          %v2730 = vunpack.c.l.b16 %v2378
          %v2731 = vunpack.c.h.b16 %v2378
          %v2732 = vunpack.c.l.b16 %v2379
          %v2733 = vunpack.c.h.b16 %v2379
          %v2734 = vunpack.c.l.b16 %v2380
          %v2735 = vunpack.c.h.b16 %v2380
          %v2736 = vunpack.c.l.b16 %v2381
          %v2737 = vunpack.c.h.b16 %v2381
          %v2738 = vunpack.c.l.b16 %v2382
          %v2739 = vunpack.c.h.b16 %v2382
          %v2740 = vunpack.c.l.b16 %v2383
          %v2741 = vunpack.c.h.b16 %v2383
          %v2742 = vunpack.c.l.b16 %v2384
          %v2743 = vunpack.c.h.b16 %v2384
          %v2744 = vunpack.c.l.b16 %v2385
          %v2745 = vunpack.c.h.b16 %v2385
          %v2746 = vunpack.c.l.b16 %v2386
          %v2747 = vunpack.c.h.b16 %v2386
          %v2748 = vunpack.c.l.b16 %v2387
          %v2749 = vunpack.c.h.b16 %v2387
          %v2750 = vunpack.c.l.b16 %v2388
          %v2751 = vunpack.c.h.b16 %v2388
          %v2752 = vunpack.c.l.b16 %v2389
          %v2753 = vunpack.c.h.b16 %v2389
          %v2754 = vunpack.c.l.b16 %v2390
          %v2755 = vunpack.c.h.b16 %v2390
          %v2756 = vunpack.c.l.b16 %v2391
          %v2757 = vunpack.c.h.b16 %v2391
          %v2758 = vunpack.c.l.b16 %v2392
          %v2759 = vunpack.c.h.b16 %v2392
          %v2760 = vunpack.c.l.b16 %v2393
          %v2761 = vunpack.c.h.b16 %v2393
          %v2762 = vunpack.c.l.b16 %v2394
          %v2763 = vunpack.c.h.b16 %v2394
          %v2764 = vunpack.c.l.b16 %v2395
          %v2765 = vunpack.c.h.b16 %v2395
          %v2766 = vunpack.c.l.b16 %v2396
          %v2767 = vunpack.c.h.b16 %v2396
          %v2768 = vunpack.c.l.b16 %v2397
          %v2769 = vunpack.c.h.b16 %v2397
          %v2770 = vunpack.c.l.b16 %v2398
          %v2771 = vunpack.c.h.b16 %v2398
          %v2772 = vunpack.c.l.b16 %v2399
          %v2773 = vunpack.c.h.b16 %v2399
          %v2774 = vunpack.c.l.b16 %v2400
          %v2775 = vunpack.c.h.b16 %v2400
          %v2776 = vunpack.c.l.b16 %v2401
          %v2777 = vunpack.c.h.b16 %v2401
          %v2778 = vunpack.c.l.b16 %v2402
          %v2779 = vunpack.c.h.b16 %v2402
          %v2780 = vunpack.c.l.b16 %v2403
          %v2781 = vunpack.c.h.b16 %v2403
          %v2782 = vunpack.c.l.b16 %v2404
          %v2783 = vunpack.c.h.b16 %v2404
          %v2784 = vunpack.c.l.b16 %v2405
          %v2785 = vunpack.c.h.b16 %v2405
          %v2786 = vunpack.c.l.b16 %v2406
          %v2787 = vunpack.c.h.b16 %v2406
          %v2788 = vunpack.c.l.b16 %v2407
          %v2789 = vunpack.c.h.b16 %v2407
          %v2790 = vunpack.c.l.b16 %v2408
          %v2791 = vunpack.c.h.b16 %v2408
          %v2792 = vunpack.c.l.b16 %v2409
          %v2793 = vunpack.c.h.b16 %v2409
          %v2794 = vpack.c.b16 %v2542, %v2538
          %v2795 = vpack.c.b16 %v2543, %v2539
          %v2796 = vpack.c.b16 %v2544, %v2540
          %v2797 = vpack.c.b16 %v2545, %v2541
          %v2798 = vpack.c.b16 %v2550, %v2546
          %v2799 = vpack.c.b16 %v2551, %v2547
          %v2800 = vpack.c.b16 %v2552, %v2548
          %v2801 = vpack.c.b16 %v2553, %v2549
          %v2802 = vpack.c.b16 %v2558, %v2554
          %v2803 = vpack.c.b16 %v2559, %v2555
          %v2804 = vpack.c.b16 %v2560, %v2556
          %v2805 = vpack.c.b16 %v2561, %v2557
          %v2806 = vpack.c.b16 %v2566, %v2562
          %v2807 = vpack.c.b16 %v2567, %v2563
          %v2808 = vpack.c.b16 %v2568, %v2564
          %v2809 = vpack.c.b16 %v2569, %v2565
          %v2810 = vpack.c.b16 %v2574, %v2570
          %v2811 = vpack.c.b16 %v2575, %v2571
          %v2812 = vpack.c.b16 %v2576, %v2572
          %v2813 = vpack.c.b16 %v2577, %v2573
          %v2814 = vpack.c.b16 %v2582, %v2578
          %v2815 = vpack.c.b16 %v2583, %v2579
          %v2816 = vpack.c.b16 %v2584, %v2580
          %v2817 = vpack.c.b16 %v2585, %v2581
          %v2818 = vpack.c.b16 %v2590, %v2586
          %v2819 = vpack.c.b16 %v2591, %v2587
          %v2820 = vpack.c.b16 %v2592, %v2588
          %v2821 = vpack.c.b16 %v2593, %v2589
          %v2822 = vpack.c.b16 %v2598, %v2594
          %v2823 = vpack.c.b16 %v2599, %v2595
          %v2824 = vpack.c.b16 %v2600, %v2596
          %v2825 = vpack.c.b16 %v2601, %v2597
          %v2826 = vpack.c.b16 %v2606, %v2602
          %v2827 = vpack.c.b16 %v2607, %v2603
          %v2828 = vpack.c.b16 %v2608, %v2604
          %v2829 = vpack.c.b16 %v2609, %v2605
          %v2830 = vpack.c.b16 %v2614, %v2610
          %v2831 = vpack.c.b16 %v2615, %v2611
          %v2832 = vpack.c.b16 %v2616, %v2612
          %v2833 = vpack.c.b16 %v2617, %v2613
          %v2834 = vpack.c.b16 %v2622, %v2618
          %v2835 = vpack.c.b16 %v2623, %v2619
          %v2836 = vpack.c.b16 %v2624, %v2620
          %v2837 = vpack.c.b16 %v2625, %v2621
          %v2838 = vpack.c.b16 %v2630, %v2626
          %v2839 = vpack.c.b16 %v2631, %v2627
          %v2840 = vpack.c.b16 %v2632, %v2628
          %v2841 = vpack.c.b16 %v2633, %v2629
          %v2842 = vpack.c.b16 %v2638, %v2634
          %v2843 = vpack.c.b16 %v2639, %v2635
          %v2844 = vpack.c.b16 %v2640, %v2636
          %v2845 = vpack.c.b16 %v2641, %v2637
          %v2846 = vpack.c.b16 %v2646, %v2642
          %v2847 = vpack.c.b16 %v2647, %v2643
          %v2848 = vpack.c.b16 %v2648, %v2644
          %v2849 = vpack.c.b16 %v2649, %v2645
          %v2850 = vpack.c.b16 %v2654, %v2650
          %v2851 = vpack.c.b16 %v2655, %v2651
          %v2852 = vpack.c.b16 %v2656, %v2652
          %v2853 = vpack.c.b16 %v2657, %v2653
          %v2854 = vpack.c.b16 %v2662, %v2658
          %v2855 = vpack.c.b16 %v2663, %v2659
          %v2856 = vpack.c.b16 %v2664, %v2660
          %v2857 = vpack.c.b16 %v2665, %v2661
          %v2858 = vpack.c.b16 %v2670, %v2666
          %v2859 = vpack.c.b16 %v2671, %v2667
          %v2860 = vpack.c.b16 %v2672, %v2668
          %v2861 = vpack.c.b16 %v2673, %v2669
          %v2862 = vpack.c.b16 %v2678, %v2674
          %v2863 = vpack.c.b16 %v2679, %v2675
          %v2864 = vpack.c.b16 %v2680, %v2676
          %v2865 = vpack.c.b16 %v2681, %v2677
          %v2866 = vpack.c.b16 %v2686, %v2682
          %v2867 = vpack.c.b16 %v2687, %v2683
          %v2868 = vpack.c.b16 %v2688, %v2684
          %v2869 = vpack.c.b16 %v2689, %v2685
          %v2870 = vpack.c.b16 %v2694, %v2690
          %v2871 = vpack.c.b16 %v2695, %v2691
          %v2872 = vpack.c.b16 %v2696, %v2692
          %v2873 = vpack.c.b16 %v2697, %v2693
          %v2874 = vpack.c.b16 %v2702, %v2698
          %v2875 = vpack.c.b16 %v2703, %v2699
          %v2876 = vpack.c.b16 %v2704, %v2700
          %v2877 = vpack.c.b16 %v2705, %v2701
          %v2878 = vpack.c.b16 %v2710, %v2706
          %v2879 = vpack.c.b16 %v2711, %v2707
          %v2880 = vpack.c.b16 %v2712, %v2708
          %v2881 = vpack.c.b16 %v2713, %v2709
          %v2882 = vpack.c.b16 %v2718, %v2714
          %v2883 = vpack.c.b16 %v2719, %v2715
          %v2884 = vpack.c.b16 %v2720, %v2716
          %v2885 = vpack.c.b16 %v2721, %v2717
          %v2886 = vpack.c.b16 %v2726, %v2722
          %v2887 = vpack.c.b16 %v2727, %v2723
          %v2888 = vpack.c.b16 %v2728, %v2724
          %v2889 = vpack.c.b16 %v2729, %v2725
          %v2890 = vpack.c.b16 %v2734, %v2730
          %v2891 = vpack.c.b16 %v2735, %v2731
          %v2892 = vpack.c.b16 %v2736, %v2732
          %v2893 = vpack.c.b16 %v2737, %v2733
          %v2894 = vpack.c.b16 %v2742, %v2738
          %v2895 = vpack.c.b16 %v2743, %v2739
          %v2896 = vpack.c.b16 %v2744, %v2740
          %v2897 = vpack.c.b16 %v2745, %v2741
          %v2898 = vpack.c.b16 %v2750, %v2746
          %v2899 = vpack.c.b16 %v2751, %v2747
          %v2900 = vpack.c.b16 %v2752, %v2748
          %v2901 = vpack.c.b16 %v2753, %v2749
          %v2902 = vpack.c.b16 %v2758, %v2754
          %v2903 = vpack.c.b16 %v2759, %v2755
          %v2904 = vpack.c.b16 %v2760, %v2756
          %v2905 = vpack.c.b16 %v2761, %v2757
          %v2906 = vpack.c.b16 %v2766, %v2762
          %v2907 = vpack.c.b16 %v2767, %v2763
          %v2908 = vpack.c.b16 %v2768, %v2764
          %v2909 = vpack.c.b16 %v2769, %v2765
          %v2910 = vpack.c.b16 %v2774, %v2770
          %v2911 = vpack.c.b16 %v2775, %v2771
          %v2912 = vpack.c.b16 %v2776, %v2772
          %v2913 = vpack.c.b16 %v2777, %v2773
          %v2914 = vpack.c.b16 %v2782, %v2778
          %v2915 = vpack.c.b16 %v2783, %v2779
          %v2916 = vpack.c.b16 %v2784, %v2780
          %v2917 = vpack.c.b16 %v2785, %v2781
          %v2918 = vpack.c.b16 %v2790, %v2786
          %v2919 = vpack.c.b16 %v2791, %v2787
          %v2920 = vpack.c.b16 %v2792, %v2788
          %v2921 = vpack.c.b16 %v2793, %v2789
          %3050 = vmatprep.subr.bf16.mxu0 %v2795
          %3051 = vmatpush1.bf16.msra.mxu0 %v2794
          %3052 = vmatprep.subr.bf16.mxu0 %v2799
          %3053 = vmatpush1.bf16.msra.mxu0 %v2798
          %3054 = vmatprep.subr.bf16.mxu0 %v2803
          %3055 = vmatpush1.bf16.msra.mxu0 %v2802
          %3056 = vmatprep.subr.bf16.mxu0 %v2807
          %3057 = vmatpush1.bf16.msra.mxu0 %v2806
          %3058 = vmatprep.subr.bf16.mxu0 %v2811
          %3059 = vmatpush1.bf16.msra.mxu0 %v2810
          %3060 = vmatprep.subr.bf16.mxu0 %v2815
          %3061 = vmatpush1.bf16.msra.mxu0 %v2814
          %3062 = vmatprep.subr.bf16.mxu0 %v2819
          %3063 = vmatpush1.bf16.msra.mxu0 %v2818
          %3064 = vmatprep.subr.bf16.mxu0 %v2823
          %3065 = vmatpush1.bf16.msra.mxu0 %v2822
          %3066 = vmatprep.subr.bf16.mxu0 %v2827
          %3067 = vmatpush1.bf16.msra.mxu0 %v2826
          %3068 = vmatprep.subr.bf16.mxu0 %v2831
          %3069 = vmatpush1.bf16.msra.mxu0 %v2830
          %3070 = vmatprep.subr.bf16.mxu0 %v2835
          %3071 = vmatpush1.bf16.msra.mxu0 %v2834
          %3072 = vmatprep.subr.bf16.mxu0 %v2839
          %3073 = vmatpush1.bf16.msra.mxu0 %v2838
          %3074 = vmatprep.subr.bf16.mxu0 %v2843
          %3075 = vmatpush1.bf16.msra.mxu0 %v2842
          %3076 = vmatprep.subr.bf16.mxu0 %v2847
          %3077 = vmatpush1.bf16.msra.mxu0 %v2846
          %3078 = vmatprep.subr.bf16.mxu0 %v2851
          %3079 = vmatpush1.bf16.msra.mxu0 %v2850
          %3080 = vmatprep.subr.bf16.mxu0 %v2855
          %3081 = vmatpush1.bf16.msra.mxu0 %v2854
          %3082 = vmatprep.mubr.bf16.mxu0 %v2219
          %3083 = vmatmul.mubr.bf16.gmra.mrb[0].mxu0 %v2218
          %v3084 = vpop.f32.mrb[0].mxu0
          %v3085 = vadd.f32 0.0, %v3084
          %v3086 = vpop.f32.mrb[0].mxu0
          %v3087 = vadd.f32 0.0, %v3086
          %v3088 = vpop.f32.mrb[0].mxu0
          %v3089 = vadd.f32 0.0, %v3088
          %v3090 = vpop.f32.mrb[0].mxu0
          %v3091 = vadd.f32 0.0, %v3090
          %3092 = vmatprep.mubr.bf16.mxu0 %v2223
          %3093 = vmatmul.mubr.bf16.gmra.mrb[0].mxu0 %v2222
          %v3094 = vpop.f32.mrb[0].mxu0
          %v3095 = vadd.f32 0.0, %v3094
          %v3096 = vpop.f32.mrb[0].mxu0
          %v3097 = vadd.f32 0.0, %v3096
          %v3098 = vpop.f32.mrb[0].mxu0
          %v3099 = vadd.f32 0.0, %v3098
          %v3100 = vpop.f32.mrb[0].mxu0
          %v3101 = vadd.f32 0.0, %v3100
          %3102 = vmatprep.mubr.bf16.mxu0 %v2227
          %3103 = vmatmul.mubr.bf16.gmra.mrb[0].mxu0 %v2226
          %v3104 = vpop.f32.mrb[0].mxu0
          %v3105 = vadd.f32 0.0, %v3104
          %v3106 = vpop.f32.mrb[0].mxu0
          %v3107 = vadd.f32 0.0, %v3106
          %v3108 = vpop.f32.mrb[0].mxu0
          %v3109 = vadd.f32 0.0, %v3108
          %v3110 = vpop.f32.mrb[0].mxu0
          %v3111 = vadd.f32 0.0, %v3110
          %3112 = vmatprep.mubr.bf16.mxu0 %v2231
          %3113 = vmatmul.mubr.bf16.gmra.mrb[0].mxu0 %v2230
          %v3114 = vpop.f32.mrb[0].mxu0
          %v3115 = vadd.f32 0.0, %v3114
          %v3116 = vpop.f32.mrb[0].mxu0
          %v3117 = vadd.f32 0.0, %v3116
          %v3118 = vpop.f32.mrb[0].mxu0
          %v3119 = vadd.f32 0.0, %v3118
          %v3120 = vpop.f32.mrb[0].mxu0
          %v3121 = vadd.f32 0.0, %v3120
          %3122 = vmatprep.mubr.bf16.mxu0 %v2235
          %3123 = vmatmul.mubr.bf16.gmra.mrb[0].mxu0 %v2234
          %v3124 = vpop.f32.mrb[0].mxu0
          %v3125 = vadd.f32 0.0, %v3124
          %v3126 = vpop.f32.mrb[0].mxu0
          %v3127 = vadd.f32 0.0, %v3126
          %v3128 = vpop.f32.mrb[0].mxu0
          %v3129 = vadd.f32 0.0, %v3128
          %v3130 = vpop.f32.mrb[0].mxu0
          %v3131 = vadd.f32 0.0, %v3130
          %3132 = vmatprep.mubr.bf16.mxu0 %v2239
          %3133 = vmatmul.mubr.bf16.gmra.mrb[0].mxu0 %v2238
          %v3134 = vpop.f32.mrb[0].mxu0
          %v3135 = vadd.f32 0.0, %v3134
          %v3136 = vpop.f32.mrb[0].mxu0
          %v3137 = vadd.f32 0.0, %v3136
          %v3138 = vpop.f32.mrb[0].mxu0
          %v3139 = vadd.f32 0.0, %v3138
          %v3140 = vpop.f32.mrb[0].mxu0
          %v3141 = vadd.f32 0.0, %v3140
          %3142 = vmatprep.mubr.bf16.mxu0 %v2243
          %3143 = vmatmul.mubr.bf16.gmra.mrb[0].mxu0 %v2242
          %v3144 = vpop.f32.mrb[0].mxu0
          %v3145 = vadd.f32 0.0, %v3144
          %v3146 = vpop.f32.mrb[0].mxu0
          %v3147 = vadd.f32 0.0, %v3146
          %v3148 = vpop.f32.mrb[0].mxu0
          %v3149 = vadd.f32 0.0, %v3148
          %v3150 = vpop.f32.mrb[0].mxu0
          %v3151 = vadd.f32 0.0, %v3150
          %3152 = vmatprep.mubr.bf16.mxu0 %v2247
          %3153 = vmatmul.mubr.bf16.gmra.mrb[0].mxu0 %v2246
          %v3154 = vpop.f32.mrb[0].mxu0
          %v3155 = vadd.f32 0.0, %v3154
          %v3156 = vpop.f32.mrb[0].mxu0
          %v3157 = vadd.f32 0.0, %v3156
          %v3158 = vpop.f32.mrb[0].mxu0
          %v3159 = vadd.f32 0.0, %v3158
          %v3160 = vpop.f32.mrb[0].mxu0
          %v3161 = vadd.f32 0.0, %v3160
          %3162 = vmatprep.mubr.bf16.mxu0 %v2251
          %3163 = vmatmul.mubr.bf16.gmra.mrb[0].mxu0 %v2250
          %v3164 = vpop.f32.mrb[0].mxu0
          %v3165 = vadd.f32 0.0, %v3164
          %v3166 = vpop.f32.mrb[0].mxu0
          %v3167 = vadd.f32 0.0, %v3166
          %v3168 = vpop.f32.mrb[0].mxu0
          %v3169 = vadd.f32 0.0, %v3168
          %v3170 = vpop.f32.mrb[0].mxu0
          %v3171 = vadd.f32 0.0, %v3170
          %3172 = vmatprep.mubr.bf16.mxu0 %v2255
          %3173 = vmatmul.mubr.bf16.gmra.mrb[0].mxu0 %v2254
          %v3174 = vpop.f32.mrb[0].mxu0
          %v3175 = vadd.f32 0.0, %v3174
          %v3176 = vpop.f32.mrb[0].mxu0
          %v3177 = vadd.f32 0.0, %v3176
          %v3178 = vpop.f32.mrb[0].mxu0
          %v3179 = vadd.f32 0.0, %v3178
          %v3180 = vpop.f32.mrb[0].mxu0
          %v3181 = vadd.f32 0.0, %v3180
          %3182 = vmatprep.mubr.bf16.mxu0 %v2259
          %3183 = vmatmul.mubr.bf16.gmra.mrb[0].mxu0 %v2258
          %v3184 = vpop.f32.mrb[0].mxu0
          %v3185 = vadd.f32 0.0, %v3184
          %v3186 = vpop.f32.mrb[0].mxu0
          %v3187 = vadd.f32 0.0, %v3186
          %v3188 = vpop.f32.mrb[0].mxu0
          %v3189 = vadd.f32 0.0, %v3188
          %v3190 = vpop.f32.mrb[0].mxu0
          %v3191 = vadd.f32 0.0, %v3190
          %3192 = vmatprep.mubr.bf16.mxu0 %v2263
          %3193 = vmatmul.mubr.bf16.gmra.mrb[0].mxu0 %v2262
          %v3194 = vpop.f32.mrb[0].mxu0
          %v3195 = vadd.f32 0.0, %v3194
          %v3196 = vpop.f32.mrb[0].mxu0
          %v3197 = vadd.f32 0.0, %v3196
          %v3198 = vpop.f32.mrb[0].mxu0
          %v3199 = vadd.f32 0.0, %v3198
          %v3200 = vpop.f32.mrb[0].mxu0
          %v3201 = vadd.f32 0.0, %v3200
          %3202 = vmatprep.mubr.bf16.mxu0 %v2267
          %3203 = vmatmul.mubr.bf16.gmra.mrb[0].mxu0 %v2266
          %v3204 = vpop.f32.mrb[0].mxu0
          %v3205 = vadd.f32 0.0, %v3204
          %v3206 = vpop.f32.mrb[0].mxu0
          %v3207 = vadd.f32 0.0, %v3206
          %v3208 = vpop.f32.mrb[0].mxu0
          %v3209 = vadd.f32 0.0, %v3208
          %v3210 = vpop.f32.mrb[0].mxu0
          %v3211 = vadd.f32 0.0, %v3210
          %3212 = vmatprep.mubr.bf16.mxu0 %v2271
          %3213 = vmatmul.mubr.bf16.gmra.mrb[0].mxu0 %v2270
          %v3214 = vpop.f32.mrb[0].mxu0
          %v3215 = vadd.f32 0.0, %v3214
          %v3216 = vpop.f32.mrb[0].mxu0
          %v3217 = vadd.f32 0.0, %v3216
          %v3218 = vpop.f32.mrb[0].mxu0
          %v3219 = vadd.f32 0.0, %v3218
          %v3220 = vpop.f32.mrb[0].mxu0
          %v3221 = vadd.f32 0.0, %v3220
          %3222 = vmatprep.mubr.bf16.mxu0 %v2275
          %3223 = vmatmul.mubr.bf16.gmra.mrb[0].mxu0 %v2274
          %v3224 = vpop.f32.mrb[0].mxu0
          %v3225 = vadd.f32 0.0, %v3224
          %v3226 = vpop.f32.mrb[0].mxu0
          %v3227 = vadd.f32 0.0, %v3226
          %v3228 = vpop.f32.mrb[0].mxu0
          %v3229 = vadd.f32 0.0, %v3228
          %v3230 = vpop.f32.mrb[0].mxu0
          %v3231 = vadd.f32 0.0, %v3230
          %3232 = vmatprep.mubr.bf16.mxu0 %v2279
          %3233 = vmatmul.mubr.bf16.gmra.mrb[0].mxu0 %v2278
          %v3234 = vpop.f32.mrb[0].mxu0
          %v3235 = vadd.f32 0.0, %v3234
          %v3236 = vpop.f32.mrb[0].mxu0
          %v3237 = vadd.f32 0.0, %v3236
          %v3238 = vpop.f32.mrb[0].mxu0
          %v3239 = vadd.f32 0.0, %v3238
          %v3240 = vpop.f32.mrb[0].mxu0
          %v3241 = vadd.f32 0.0, %v3240
          %3242 = vdwg.mxu0
          %3243 = vmatprep.subr.bf16.mxu0 %v2859
          %3244 = vmatpush1.bf16.msra.mxu0 %v2858
          %3245 = vmatprep.subr.bf16.mxu0 %v2863
          %3246 = vmatpush1.bf16.msra.mxu0 %v2862
          %3247 = vmatprep.subr.bf16.mxu0 %v2867
          %3248 = vmatpush1.bf16.msra.mxu0 %v2866
          %3249 = vmatprep.subr.bf16.mxu0 %v2871
          %3250 = vmatpush1.bf16.msra.mxu0 %v2870
          %3251 = vmatprep.subr.bf16.mxu0 %v2875
          %3252 = vmatpush1.bf16.msra.mxu0 %v2874
          %3253 = vmatprep.subr.bf16.mxu0 %v2879
          %3254 = vmatpush1.bf16.msra.mxu0 %v2878
          %3255 = vmatprep.subr.bf16.mxu0 %v2883
          %3256 = vmatpush1.bf16.msra.mxu0 %v2882
          %3257 = vmatprep.subr.bf16.mxu0 %v2887
          %3258 = vmatpush1.bf16.msra.mxu0 %v2886
          %3259 = vmatprep.subr.bf16.mxu0 %v2891
          %3260 = vmatpush1.bf16.msra.mxu0 %v2890
          %3261 = vmatprep.subr.bf16.mxu0 %v2895
          %3262 = vmatpush1.bf16.msra.mxu0 %v2894
          %3263 = vmatprep.subr.bf16.mxu0 %v2899
          %3264 = vmatpush1.bf16.msra.mxu0 %v2898
          %3265 = vmatprep.subr.bf16.mxu0 %v2903
          %3266 = vmatpush1.bf16.msra.mxu0 %v2902
          %3267 = vmatprep.subr.bf16.mxu0 %v2907
          %3268 = vmatpush1.bf16.msra.mxu0 %v2906
          %3269 = vmatprep.subr.bf16.mxu0 %v2911
          %3270 = vmatpush1.bf16.msra.mxu0 %v2910
          %3271 = vmatprep.subr.bf16.mxu0 %v2915
          %3272 = vmatpush1.bf16.msra.mxu0 %v2914
          %3273 = vmatprep.subr.bf16.mxu0 %v2919
          %3274 = vmatpush1.bf16.msra.mxu0 %v2918
          %3275 = vmatprep.mubr.bf16.mxu0 %v2221
          %3276 = vmatmul.mubr.bf16.gmra.mrb[0].mxu0 %v2220
          %v3277 = vpop.f32.mrb[0].mxu0
          %v3278 = vadd.f32 %v3085, %v3277
          %v3279 = vpop.f32.mrb[0].mxu0
          %v3280 = vadd.f32 %v3087, %v3279
          %v3281 = vpop.f32.mrb[0].mxu0
          %v3282 = vadd.f32 %v3089, %v3281
          %v3283 = vpop.f32.mrb[0].mxu0
          %v3284 = vadd.f32 %v3091, %v3283
          %3285 = vmatprep.mubr.bf16.mxu0 %v2225
          %3286 = vmatmul.mubr.bf16.gmra.mrb[0].mxu0 %v2224
          %v3287 = vpop.f32.mrb[0].mxu0
          %v3288 = vadd.f32 %v3095, %v3287
          %v3289 = vpop.f32.mrb[0].mxu0
          %v3290 = vadd.f32 %v3097, %v3289
          %v3291 = vpop.f32.mrb[0].mxu0
          %v3292 = vadd.f32 %v3099, %v3291
          %v3293 = vpop.f32.mrb[0].mxu0
          %v3294 = vadd.f32 %v3101, %v3293
          %3295 = vmatprep.mubr.bf16.mxu0 %v2229
          %3296 = vmatmul.mubr.bf16.gmra.mrb[0].mxu0 %v2228
          %v3297 = vpop.f32.mrb[0].mxu0
          %v3298 = vadd.f32 %v3105, %v3297
          %v3299 = vpop.f32.mrb[0].mxu0
          %v3300 = vadd.f32 %v3107, %v3299
          %v3301 = vpop.f32.mrb[0].mxu0
          %v3302 = vadd.f32 %v3109, %v3301
          %v3303 = vpop.f32.mrb[0].mxu0
          %v3304 = vadd.f32 %v3111, %v3303
          %3305 = vmatprep.mubr.bf16.mxu0 %v2233
          %3306 = vmatmul.mubr.bf16.gmra.mrb[0].mxu0 %v2232
          %v3307 = vpop.f32.mrb[0].mxu0
          %v3308 = vadd.f32 %v3115, %v3307
          %v3309 = vpop.f32.mrb[0].mxu0
          %v3310 = vadd.f32 %v3117, %v3309
          %v3311 = vpop.f32.mrb[0].mxu0
          %v3312 = vadd.f32 %v3119, %v3311
          %v3313 = vpop.f32.mrb[0].mxu0
          %v3314 = vadd.f32 %v3121, %v3313
          %3315 = vmatprep.mubr.bf16.mxu0 %v2237
          %3316 = vmatmul.mubr.bf16.gmra.mrb[0].mxu0 %v2236
          %v3317 = vpop.f32.mrb[0].mxu0
          %v3318 = vadd.f32 %v3125, %v3317
          %v3319 = vpop.f32.mrb[0].mxu0
          %v3320 = vadd.f32 %v3127, %v3319
          %v3321 = vpop.f32.mrb[0].mxu0
          %v3322 = vadd.f32 %v3129, %v3321
          %v3323 = vpop.f32.mrb[0].mxu0
          %v3324 = vadd.f32 %v3131, %v3323
          %3325 = vmatprep.mubr.bf16.mxu0 %v2241
          %3326 = vmatmul.mubr.bf16.gmra.mrb[0].mxu0 %v2240
          %v3327 = vpop.f32.mrb[0].mxu0
          %v3328 = vadd.f32 %v3135, %v3327
          %v3329 = vpop.f32.mrb[0].mxu0
          %v3330 = vadd.f32 %v3137, %v3329
          %v3331 = vpop.f32.mrb[0].mxu0
          %v3332 = vadd.f32 %v3139, %v3331
          %v3333 = vpop.f32.mrb[0].mxu0
          %v3334 = vadd.f32 %v3141, %v3333
          %3335 = vmatprep.mubr.bf16.mxu0 %v2245
          %3336 = vmatmul.mubr.bf16.gmra.mrb[0].mxu0 %v2244
          %v3337 = vpop.f32.mrb[0].mxu0
          %v3338 = vadd.f32 %v3145, %v3337
          %v3339 = vpop.f32.mrb[0].mxu0
          %v3340 = vadd.f32 %v3147, %v3339
          %v3341 = vpop.f32.mrb[0].mxu0
          %v3342 = vadd.f32 %v3149, %v3341
          %v3343 = vpop.f32.mrb[0].mxu0
          %v3344 = vadd.f32 %v3151, %v3343
          %3345 = vmatprep.mubr.bf16.mxu0 %v2249
          %3346 = vmatmul.mubr.bf16.gmra.mrb[0].mxu0 %v2248
          %v3347 = vpop.f32.mrb[0].mxu0
          %v3348 = vadd.f32 %v3155, %v3347
          %v3349 = vpop.f32.mrb[0].mxu0
          %v3350 = vadd.f32 %v3157, %v3349
          %v3351 = vpop.f32.mrb[0].mxu0
          %v3352 = vadd.f32 %v3159, %v3351
          %v3353 = vpop.f32.mrb[0].mxu0
          %v3354 = vadd.f32 %v3161, %v3353
          %3355 = vmatprep.mubr.bf16.mxu0 %v2253
          %3356 = vmatmul.mubr.bf16.gmra.mrb[0].mxu0 %v2252
          %v3357 = vpop.f32.mrb[0].mxu0
          %v3358 = vadd.f32 %v3165, %v3357
          %v3359 = vpop.f32.mrb[0].mxu0
          %v3360 = vadd.f32 %v3167, %v3359
          %v3361 = vpop.f32.mrb[0].mxu0
          %v3362 = vadd.f32 %v3169, %v3361
          %v3363 = vpop.f32.mrb[0].mxu0
          %v3364 = vadd.f32 %v3171, %v3363
          %3365 = vmatprep.mubr.bf16.mxu0 %v2257
          %3366 = vmatmul.mubr.bf16.gmra.mrb[0].mxu0 %v2256
          %v3367 = vpop.f32.mrb[0].mxu0
          %v3368 = vadd.f32 %v3175, %v3367
          %v3369 = vpop.f32.mrb[0].mxu0
          %v3370 = vadd.f32 %v3177, %v3369
          %v3371 = vpop.f32.mrb[0].mxu0
          %v3372 = vadd.f32 %v3179, %v3371
          %v3373 = vpop.f32.mrb[0].mxu0
          %v3374 = vadd.f32 %v3181, %v3373
          %3375 = vmatprep.mubr.bf16.mxu0 %v2261
          %3376 = vmatmul.mubr.bf16.gmra.mrb[0].mxu0 %v2260
          %v3377 = vpop.f32.mrb[0].mxu0
          %v3378 = vadd.f32 %v3185, %v3377
          %v3379 = vpop.f32.mrb[0].mxu0
          %v3380 = vadd.f32 %v3187, %v3379
          %v3381 = vpop.f32.mrb[0].mxu0
          %v3382 = vadd.f32 %v3189, %v3381
          %v3383 = vpop.f32.mrb[0].mxu0
          %v3384 = vadd.f32 %v3191, %v3383
          %3385 = vmatprep.mubr.bf16.mxu0 %v2265
          %3386 = vmatmul.mubr.bf16.gmra.mrb[0].mxu0 %v2264
          %v3387 = vpop.f32.mrb[0].mxu0
          %v3388 = vadd.f32 %v3195, %v3387
          %v3389 = vpop.f32.mrb[0].mxu0
          %v3390 = vadd.f32 %v3197, %v3389
          %v3391 = vpop.f32.mrb[0].mxu0
          %v3392 = vadd.f32 %v3199, %v3391
          %v3393 = vpop.f32.mrb[0].mxu0
          %v3394 = vadd.f32 %v3201, %v3393
          %3395 = vmatprep.mubr.bf16.mxu0 %v2269
          %3396 = vmatmul.mubr.bf16.gmra.mrb[0].mxu0 %v2268
          %v3397 = vpop.f32.mrb[0].mxu0
          %v3398 = vadd.f32 %v3205, %v3397
          %v3399 = vpop.f32.mrb[0].mxu0
          %v3400 = vadd.f32 %v3207, %v3399
          %v3401 = vpop.f32.mrb[0].mxu0
          %v3402 = vadd.f32 %v3209, %v3401
          %v3403 = vpop.f32.mrb[0].mxu0
          %v3404 = vadd.f32 %v3211, %v3403
          %3405 = vmatprep.mubr.bf16.mxu0 %v2273
          %3406 = vmatmul.mubr.bf16.gmra.mrb[0].mxu0 %v2272
          %v3407 = vpop.f32.mrb[0].mxu0
          %v3408 = vadd.f32 %v3215, %v3407
          %v3409 = vpop.f32.mrb[0].mxu0
          %v3410 = vadd.f32 %v3217, %v3409
          %v3411 = vpop.f32.mrb[0].mxu0
          %v3412 = vadd.f32 %v3219, %v3411
          %v3413 = vpop.f32.mrb[0].mxu0
          %v3414 = vadd.f32 %v3221, %v3413
          %3415 = vmatprep.mubr.bf16.mxu0 %v2277
          %3416 = vmatmul.mubr.bf16.gmra.mrb[0].mxu0 %v2276
          %v3417 = vpop.f32.mrb[0].mxu0
          %v3418 = vadd.f32 %v3225, %v3417
          %v3419 = vpop.f32.mrb[0].mxu0
          %v3420 = vadd.f32 %v3227, %v3419
          %v3421 = vpop.f32.mrb[0].mxu0
          %v3422 = vadd.f32 %v3229, %v3421
          %v3423 = vpop.f32.mrb[0].mxu0
          %v3424 = vadd.f32 %v3231, %v3423
          %3425 = vmatprep.mubr.bf16.mxu0 %v2281
          %3426 = vmatmul.mubr.bf16.gmra.mrb[0].mxu0 %v2280
          %v3427 = vpop.f32.mrb[0].mxu0
          %v3428 = vadd.f32 %v3235, %v3427
          %v3429 = vpop.f32.mrb[0].mxu0
          %v3430 = vadd.f32 %v3237, %v3429
          %v3431 = vpop.f32.mrb[0].mxu0
          %v3432 = vadd.f32 %v3239, %v3431
          %v3433 = vpop.f32.mrb[0].mxu0
          %v3434 = vadd.f32 %v3241, %v3433
          %3435 = vdwg.mxu0
          %3436 = vmatprep.subr.bf16.mxu0 %v2797
          %3437 = vmatpush1.bf16.msra.mxu0 %v2796
          %3438 = vmatprep.subr.bf16.mxu0 %v2801
          %3439 = vmatpush1.bf16.msra.mxu0 %v2800
          %3440 = vmatprep.subr.bf16.mxu0 %v2805
          %3441 = vmatpush1.bf16.msra.mxu0 %v2804
          %3442 = vmatprep.subr.bf16.mxu0 %v2809
          %3443 = vmatpush1.bf16.msra.mxu0 %v2808
          %3444 = vmatprep.subr.bf16.mxu0 %v2813
          %3445 = vmatpush1.bf16.msra.mxu0 %v2812
          %3446 = vmatprep.subr.bf16.mxu0 %v2817
          %3447 = vmatpush1.bf16.msra.mxu0 %v2816
          %3448 = vmatprep.subr.bf16.mxu0 %v2821
          %3449 = vmatpush1.bf16.msra.mxu0 %v2820
          %3450 = vmatprep.subr.bf16.mxu0 %v2825
          %3451 = vmatpush1.bf16.msra.mxu0 %v2824
          %3452 = vmatprep.subr.bf16.mxu0 %v2829
          %3453 = vmatpush1.bf16.msra.mxu0 %v2828
          %3454 = vmatprep.subr.bf16.mxu0 %v2833
          %3455 = vmatpush1.bf16.msra.mxu0 %v2832
          %3456 = vmatprep.subr.bf16.mxu0 %v2837
          %3457 = vmatpush1.bf16.msra.mxu0 %v2836
          %3458 = vmatprep.subr.bf16.mxu0 %v2841
          %3459 = vmatpush1.bf16.msra.mxu0 %v2840
          %3460 = vmatprep.subr.bf16.mxu0 %v2845
          %3461 = vmatpush1.bf16.msra.mxu0 %v2844
          %3462 = vmatprep.subr.bf16.mxu0 %v2849
          %3463 = vmatpush1.bf16.msra.mxu0 %v2848
          %3464 = vmatprep.subr.bf16.mxu0 %v2853
          %3465 = vmatpush1.bf16.msra.mxu0 %v2852
          %3466 = vmatprep.subr.bf16.mxu0 %v2857
          %3467 = vmatpush1.bf16.msra.mxu0 %v2856
          %3468 = vmatprep.mubr.bf16.mxu0 %v2219
          %3469 = vmatmul.mubr.bf16.gmra.mrb[0].mxu0 %v2218
          %v3470 = vpop.f32.mrb[0].mxu0
          %v3471 = vadd.f32 0.0, %v3470
          %v3472 = vpop.f32.mrb[0].mxu0
          %v3473 = vadd.f32 0.0, %v3472
          %v3474 = vpop.f32.mrb[0].mxu0
          %v3475 = vadd.f32 0.0, %v3474
          %v3476 = vpop.f32.mrb[0].mxu0
          %v3477 = vadd.f32 0.0, %v3476
          %3478 = vmatprep.mubr.bf16.mxu0 %v2223
          %3479 = vmatmul.mubr.bf16.gmra.mrb[0].mxu0 %v2222
          %v3480 = vpop.f32.mrb[0].mxu0
          %v3481 = vadd.f32 0.0, %v3480
          %v3482 = vpop.f32.mrb[0].mxu0
          %v3483 = vadd.f32 0.0, %v3482
          %v3484 = vpop.f32.mrb[0].mxu0
          %v3485 = vadd.f32 0.0, %v3484
          %v3486 = vpop.f32.mrb[0].mxu0
          %v3487 = vadd.f32 0.0, %v3486
          %3488 = vmatprep.mubr.bf16.mxu0 %v2227
          %3489 = vmatmul.mubr.bf16.gmra.mrb[0].mxu0 %v2226
          %v3490 = vpop.f32.mrb[0].mxu0
          %v3491 = vadd.f32 0.0, %v3490
          %v3492 = vpop.f32.mrb[0].mxu0
          %v3493 = vadd.f32 0.0, %v3492
          %v3494 = vpop.f32.mrb[0].mxu0
          %v3495 = vadd.f32 0.0, %v3494
          %v3496 = vpop.f32.mrb[0].mxu0
          %v3497 = vadd.f32 0.0, %v3496
          %3498 = vmatprep.mubr.bf16.mxu0 %v2231
          %3499 = vmatmul.mubr.bf16.gmra.mrb[0].mxu0 %v2230
          %v3500 = vpop.f32.mrb[0].mxu0
          %v3501 = vadd.f32 0.0, %v3500
          %v3502 = vpop.f32.mrb[0].mxu0
          %v3503 = vadd.f32 0.0, %v3502
          %v3504 = vpop.f32.mrb[0].mxu0
          %v3505 = vadd.f32 0.0, %v3504
          %v3506 = vpop.f32.mrb[0].mxu0
          %v3507 = vadd.f32 0.0, %v3506
          %3508 = vmatprep.mubr.bf16.mxu0 %v2235
          %3509 = vmatmul.mubr.bf16.gmra.mrb[0].mxu0 %v2234
          %v3510 = vpop.f32.mrb[0].mxu0
          %v3511 = vadd.f32 0.0, %v3510
          %v3512 = vpop.f32.mrb[0].mxu0
          %v3513 = vadd.f32 0.0, %v3512
          %v3514 = vpop.f32.mrb[0].mxu0
          %v3515 = vadd.f32 0.0, %v3514
          %v3516 = vpop.f32.mrb[0].mxu0
          %v3517 = vadd.f32 0.0, %v3516
          %3518 = vmatprep.mubr.bf16.mxu0 %v2239
          %3519 = vmatmul.mubr.bf16.gmra.mrb[0].mxu0 %v2238
          %v3520 = vpop.f32.mrb[0].mxu0
          %v3521 = vadd.f32 0.0, %v3520
          %v3522 = vpop.f32.mrb[0].mxu0
          %v3523 = vadd.f32 0.0, %v3522
          %v3524 = vpop.f32.mrb[0].mxu0
          %v3525 = vadd.f32 0.0, %v3524
          %v3526 = vpop.f32.mrb[0].mxu0
          %v3527 = vadd.f32 0.0, %v3526
          %3528 = vmatprep.mubr.bf16.mxu0 %v2243
          %3529 = vmatmul.mubr.bf16.gmra.mrb[0].mxu0 %v2242
          %v3530 = vpop.f32.mrb[0].mxu0
          %v3531 = vadd.f32 0.0, %v3530
          %v3532 = vpop.f32.mrb[0].mxu0
          %v3533 = vadd.f32 0.0, %v3532
          %v3534 = vpop.f32.mrb[0].mxu0
          %v3535 = vadd.f32 0.0, %v3534
          %v3536 = vpop.f32.mrb[0].mxu0
          %v3537 = vadd.f32 0.0, %v3536
          %3538 = vmatprep.mubr.bf16.mxu0 %v2247
          %3539 = vmatmul.mubr.bf16.gmra.mrb[0].mxu0 %v2246
          %v3540 = vpop.f32.mrb[0].mxu0
          %v3541 = vadd.f32 0.0, %v3540
          %v3542 = vpop.f32.mrb[0].mxu0
          %v3543 = vadd.f32 0.0, %v3542
          %v3544 = vpop.f32.mrb[0].mxu0
          %v3545 = vadd.f32 0.0, %v3544
          %v3546 = vpop.f32.mrb[0].mxu0
          %v3547 = vadd.f32 0.0, %v3546
          %3548 = vmatprep.mubr.bf16.mxu0 %v2251
          %3549 = vmatmul.mubr.bf16.gmra.mrb[0].mxu0 %v2250
          %v3550 = vpop.f32.mrb[0].mxu0
          %v3551 = vadd.f32 0.0, %v3550
          %v3552 = vpop.f32.mrb[0].mxu0
          %v3553 = vadd.f32 0.0, %v3552
          %v3554 = vpop.f32.mrb[0].mxu0
          %v3555 = vadd.f32 0.0, %v3554
          %v3556 = vpop.f32.mrb[0].mxu0
          %v3557 = vadd.f32 0.0, %v3556
          %3558 = vmatprep.mubr.bf16.mxu0 %v2255
          %3559 = vmatmul.mubr.bf16.gmra.mrb[0].mxu0 %v2254
          %v3560 = vpop.f32.mrb[0].mxu0
          %v3561 = vadd.f32 0.0, %v3560
          %v3562 = vpop.f32.mrb[0].mxu0
          %v3563 = vadd.f32 0.0, %v3562
          %v3564 = vpop.f32.mrb[0].mxu0
          %v3565 = vadd.f32 0.0, %v3564
          %v3566 = vpop.f32.mrb[0].mxu0
          %v3567 = vadd.f32 0.0, %v3566
          %3568 = vmatprep.mubr.bf16.mxu0 %v2259
          %3569 = vmatmul.mubr.bf16.gmra.mrb[0].mxu0 %v2258
          %v3570 = vpop.f32.mrb[0].mxu0
          %v3571 = vadd.f32 0.0, %v3570
          %v3572 = vpop.f32.mrb[0].mxu0
          %v3573 = vadd.f32 0.0, %v3572
          %v3574 = vpop.f32.mrb[0].mxu0
          %v3575 = vadd.f32 0.0, %v3574
          %v3576 = vpop.f32.mrb[0].mxu0
          %v3577 = vadd.f32 0.0, %v3576
          %3578 = vmatprep.mubr.bf16.mxu0 %v2263
          %3579 = vmatmul.mubr.bf16.gmra.mrb[0].mxu0 %v2262
          %v3580 = vpop.f32.mrb[0].mxu0
          %v3581 = vadd.f32 0.0, %v3580
          %v3582 = vpop.f32.mrb[0].mxu0
          %v3583 = vadd.f32 0.0, %v3582
          %v3584 = vpop.f32.mrb[0].mxu0
          %v3585 = vadd.f32 0.0, %v3584
          %v3586 = vpop.f32.mrb[0].mxu0
          %v3587 = vadd.f32 0.0, %v3586
          %3588 = vmatprep.mubr.bf16.mxu0 %v2267
          %3589 = vmatmul.mubr.bf16.gmra.mrb[0].mxu0 %v2266
          %v3590 = vpop.f32.mrb[0].mxu0
          %v3591 = vadd.f32 0.0, %v3590
          %v3592 = vpop.f32.mrb[0].mxu0
          %v3593 = vadd.f32 0.0, %v3592
          %v3594 = vpop.f32.mrb[0].mxu0
          %v3595 = vadd.f32 0.0, %v3594
          %v3596 = vpop.f32.mrb[0].mxu0
          %v3597 = vadd.f32 0.0, %v3596
          %3598 = vmatprep.mubr.bf16.mxu0 %v2271
          %3599 = vmatmul.mubr.bf16.gmra.mrb[0].mxu0 %v2270
          %v3600 = vpop.f32.mrb[0].mxu0
          %v3601 = vadd.f32 0.0, %v3600
          %v3602 = vpop.f32.mrb[0].mxu0
          %v3603 = vadd.f32 0.0, %v3602
          %v3604 = vpop.f32.mrb[0].mxu0
          %v3605 = vadd.f32 0.0, %v3604
          %v3606 = vpop.f32.mrb[0].mxu0
          %v3607 = vadd.f32 0.0, %v3606
          %3608 = vmatprep.mubr.bf16.mxu0 %v2275
          %3609 = vmatmul.mubr.bf16.gmra.mrb[0].mxu0 %v2274
          %v3610 = vpop.f32.mrb[0].mxu0
          %v3611 = vadd.f32 0.0, %v3610
          %v3612 = vpop.f32.mrb[0].mxu0
          %v3613 = vadd.f32 0.0, %v3612
          %v3614 = vpop.f32.mrb[0].mxu0
          %v3615 = vadd.f32 0.0, %v3614
          %v3616 = vpop.f32.mrb[0].mxu0
          %v3617 = vadd.f32 0.0, %v3616
          %3618 = vmatprep.mubr.bf16.mxu0 %v2279
          %3619 = vmatmul.mubr.bf16.gmra.mrb[0].mxu0 %v2278
          %v3620 = vpop.f32.mrb[0].mxu0
          %v3621 = vadd.f32 0.0, %v3620
          %v3622 = vpop.f32.mrb[0].mxu0
          %v3623 = vadd.f32 0.0, %v3622
          %v3624 = vpop.f32.mrb[0].mxu0
          %v3625 = vadd.f32 0.0, %v3624
          %v3626 = vpop.f32.mrb[0].mxu0
          %v3627 = vadd.f32 0.0, %v3626
          %3628 = vdwg.mxu0
          %3629 = vmatprep.subr.bf16.mxu0 %v2861
          %3630 = vmatpush1.bf16.msra.mxu0 %v2860
          %3631 = vmatprep.subr.bf16.mxu0 %v2865
          %3632 = vmatpush1.bf16.msra.mxu0 %v2864
          %3633 = vmatprep.subr.bf16.mxu0 %v2869
          %3634 = vmatpush1.bf16.msra.mxu0 %v2868
          %3635 = vmatprep.subr.bf16.mxu0 %v2873
          %3636 = vmatpush1.bf16.msra.mxu0 %v2872
          %3637 = vmatprep.subr.bf16.mxu0 %v2877
          %3638 = vmatpush1.bf16.msra.mxu0 %v2876
          %3639 = vmatprep.subr.bf16.mxu0 %v2881
          %3640 = vmatpush1.bf16.msra.mxu0 %v2880
          %3641 = vmatprep.subr.bf16.mxu0 %v2885
          %3642 = vmatpush1.bf16.msra.mxu0 %v2884
          %3643 = vmatprep.subr.bf16.mxu0 %v2889
          %3644 = vmatpush1.bf16.msra.mxu0 %v2888
          %3645 = vmatprep.subr.bf16.mxu0 %v2893
          %3646 = vmatpush1.bf16.msra.mxu0 %v2892
          %3647 = vmatprep.subr.bf16.mxu0 %v2897
          %3648 = vmatpush1.bf16.msra.mxu0 %v2896
          %3649 = vmatprep.subr.bf16.mxu0 %v2901
          %3650 = vmatpush1.bf16.msra.mxu0 %v2900
          %3651 = vmatprep.subr.bf16.mxu0 %v2905
          %3652 = vmatpush1.bf16.msra.mxu0 %v2904
          %3653 = vmatprep.subr.bf16.mxu0 %v2909
          %3654 = vmatpush1.bf16.msra.mxu0 %v2908
          %3655 = vmatprep.subr.bf16.mxu0 %v2913
          %3656 = vmatpush1.bf16.msra.mxu0 %v2912
          %3657 = vmatprep.subr.bf16.mxu0 %v2917
          %3658 = vmatpush1.bf16.msra.mxu0 %v2916
          %3659 = vmatprep.subr.bf16.mxu0 %v2921
          %3660 = vmatpush1.bf16.msra.mxu0 %v2920
          %3661 = vmatprep.mubr.bf16.mxu0 %v2221
          %3662 = vmatmul.mubr.bf16.gmra.mrb[0].mxu0 %v2220
          %v3663 = vpop.f32.mrb[0].mxu0
          %v3664 = vadd.f32 %v3471, %v3663
          %v3665 = vpop.f32.mrb[0].mxu0
          %v3666 = vadd.f32 %v3473, %v3665
          %v3667 = vpop.f32.mrb[0].mxu0
          %v3668 = vadd.f32 %v3475, %v3667
          %v3669 = vpop.f32.mrb[0].mxu0
          %v3670 = vadd.f32 %v3477, %v3669
          %3671 = vmatprep.mubr.bf16.mxu0 %v2225
          %3672 = vmatmul.mubr.bf16.gmra.mrb[0].mxu0 %v2224
          %v3673 = vpop.f32.mrb[0].mxu0
          %v3674 = vadd.f32 %v3481, %v3673
          %v3675 = vpop.f32.mrb[0].mxu0
          %v3676 = vadd.f32 %v3483, %v3675
          %v3677 = vpop.f32.mrb[0].mxu0
          %v3678 = vadd.f32 %v3485, %v3677
          %v3679 = vpop.f32.mrb[0].mxu0
          %v3680 = vadd.f32 %v3487, %v3679
          %3681 = vmatprep.mubr.bf16.mxu0 %v2229
          %3682 = vmatmul.mubr.bf16.gmra.mrb[0].mxu0 %v2228
          %v3683 = vpop.f32.mrb[0].mxu0
          %v3684 = vadd.f32 %v3491, %v3683
          %v3685 = vpop.f32.mrb[0].mxu0
          %v3686 = vadd.f32 %v3493, %v3685
          %v3687 = vpop.f32.mrb[0].mxu0
          %v3688 = vadd.f32 %v3495, %v3687
          %v3689 = vpop.f32.mrb[0].mxu0
          %v3690 = vadd.f32 %v3497, %v3689
          %3691 = vmatprep.mubr.bf16.mxu0 %v2233
          %3692 = vmatmul.mubr.bf16.gmra.mrb[0].mxu0 %v2232
          %v3693 = vpop.f32.mrb[0].mxu0
          %v3694 = vadd.f32 %v3501, %v3693
          %v3695 = vpop.f32.mrb[0].mxu0
          %v3696 = vadd.f32 %v3503, %v3695
          %v3697 = vpop.f32.mrb[0].mxu0
          %v3698 = vadd.f32 %v3505, %v3697
          %v3699 = vpop.f32.mrb[0].mxu0
          %v3700 = vadd.f32 %v3507, %v3699
          %3701 = vmatprep.mubr.bf16.mxu0 %v2237
          %3702 = vmatmul.mubr.bf16.gmra.mrb[0].mxu0 %v2236
          %v3703 = vpop.f32.mrb[0].mxu0
          %v3704 = vadd.f32 %v3511, %v3703
          %v3705 = vpop.f32.mrb[0].mxu0
          %v3706 = vadd.f32 %v3513, %v3705
          %v3707 = vpop.f32.mrb[0].mxu0
          %v3708 = vadd.f32 %v3515, %v3707
          %v3709 = vpop.f32.mrb[0].mxu0
          %v3710 = vadd.f32 %v3517, %v3709
          %3711 = vmatprep.mubr.bf16.mxu0 %v2241
          %3712 = vmatmul.mubr.bf16.gmra.mrb[0].mxu0 %v2240
          %v3713 = vpop.f32.mrb[0].mxu0
          %v3714 = vadd.f32 %v3521, %v3713
          %v3715 = vpop.f32.mrb[0].mxu0
          %v3716 = vadd.f32 %v3523, %v3715
          %v3717 = vpop.f32.mrb[0].mxu0
          %v3718 = vadd.f32 %v3525, %v3717
          %v3719 = vpop.f32.mrb[0].mxu0
          %v3720 = vadd.f32 %v3527, %v3719
          %3721 = vmatprep.mubr.bf16.mxu0 %v2245
          %3722 = vmatmul.mubr.bf16.gmra.mrb[0].mxu0 %v2244
          %v3723 = vpop.f32.mrb[0].mxu0
          %v3724 = vadd.f32 %v3531, %v3723
          %v3725 = vpop.f32.mrb[0].mxu0
          %v3726 = vadd.f32 %v3533, %v3725
          %v3727 = vpop.f32.mrb[0].mxu0
          %v3728 = vadd.f32 %v3535, %v3727
          %v3729 = vpop.f32.mrb[0].mxu0
          %v3730 = vadd.f32 %v3537, %v3729
          %3731 = vmatprep.mubr.bf16.mxu0 %v2249
          %3732 = vmatmul.mubr.bf16.gmra.mrb[0].mxu0 %v2248
          %v3733 = vpop.f32.mrb[0].mxu0
          %v3734 = vadd.f32 %v3541, %v3733
          %v3735 = vpop.f32.mrb[0].mxu0
          %v3736 = vadd.f32 %v3543, %v3735
          %v3737 = vpop.f32.mrb[0].mxu0
          %v3738 = vadd.f32 %v3545, %v3737
          %v3739 = vpop.f32.mrb[0].mxu0
          %v3740 = vadd.f32 %v3547, %v3739
          %3741 = vmatprep.mubr.bf16.mxu0 %v2253
          %3742 = vmatmul.mubr.bf16.gmra.mrb[0].mxu0 %v2252
          %v3743 = vpop.f32.mrb[0].mxu0
          %v3744 = vadd.f32 %v3551, %v3743
          %v3745 = vpop.f32.mrb[0].mxu0
          %v3746 = vadd.f32 %v3553, %v3745
          %v3747 = vpop.f32.mrb[0].mxu0
          %v3748 = vadd.f32 %v3555, %v3747
          %v3749 = vpop.f32.mrb[0].mxu0
          %v3750 = vadd.f32 %v3557, %v3749
          %3751 = vmatprep.mubr.bf16.mxu0 %v2257
          %3752 = vmatmul.mubr.bf16.gmra.mrb[0].mxu0 %v2256
          %v3753 = vpop.f32.mrb[0].mxu0
          %v3754 = vadd.f32 %v3561, %v3753
          %v3755 = vpop.f32.mrb[0].mxu0
          %v3756 = vadd.f32 %v3563, %v3755
          %v3757 = vpop.f32.mrb[0].mxu0
          %v3758 = vadd.f32 %v3565, %v3757
          %v3759 = vpop.f32.mrb[0].mxu0
          %v3760 = vadd.f32 %v3567, %v3759
          %3761 = vmatprep.mubr.bf16.mxu0 %v2261
          %3762 = vmatmul.mubr.bf16.gmra.mrb[0].mxu0 %v2260
          %v3763 = vpop.f32.mrb[0].mxu0
          %v3764 = vadd.f32 %v3571, %v3763
          %v3765 = vpop.f32.mrb[0].mxu0
          %v3766 = vadd.f32 %v3573, %v3765
          %v3767 = vpop.f32.mrb[0].mxu0
          %v3768 = vadd.f32 %v3575, %v3767
          %v3769 = vpop.f32.mrb[0].mxu0
          %v3770 = vadd.f32 %v3577, %v3769
          %3771 = vmatprep.mubr.bf16.mxu0 %v2265
          %3772 = vmatmul.mubr.bf16.gmra.mrb[0].mxu0 %v2264
          %v3773 = vpop.f32.mrb[0].mxu0
          %v3774 = vadd.f32 %v3581, %v3773
          %v3775 = vpop.f32.mrb[0].mxu0
          %v3776 = vadd.f32 %v3583, %v3775
          %v3777 = vpop.f32.mrb[0].mxu0
          %v3778 = vadd.f32 %v3585, %v3777
          %v3779 = vpop.f32.mrb[0].mxu0
          %v3780 = vadd.f32 %v3587, %v3779
          %3781 = vmatprep.mubr.bf16.mxu0 %v2269
          %3782 = vmatmul.mubr.bf16.gmra.mrb[0].mxu0 %v2268
          %v3783 = vpop.f32.mrb[0].mxu0
          %v3784 = vadd.f32 %v3591, %v3783
          %v3785 = vpop.f32.mrb[0].mxu0
          %v3786 = vadd.f32 %v3593, %v3785
          %v3787 = vpop.f32.mrb[0].mxu0
          %v3788 = vadd.f32 %v3595, %v3787
          %v3789 = vpop.f32.mrb[0].mxu0
          %v3790 = vadd.f32 %v3597, %v3789
          %3791 = vmatprep.mubr.bf16.mxu0 %v2273
          %3792 = vmatmul.mubr.bf16.gmra.mrb[0].mxu0 %v2272
          %v3793 = vpop.f32.mrb[0].mxu0
          %v3794 = vadd.f32 %v3601, %v3793
          %v3795 = vpop.f32.mrb[0].mxu0
          %v3796 = vadd.f32 %v3603, %v3795
          %v3797 = vpop.f32.mrb[0].mxu0
          %v3798 = vadd.f32 %v3605, %v3797
          %v3799 = vpop.f32.mrb[0].mxu0
          %v3800 = vadd.f32 %v3607, %v3799
          %3801 = vmatprep.mubr.bf16.mxu0 %v2277
          %3802 = vmatmul.mubr.bf16.gmra.mrb[0].mxu0 %v2276
          %v3803 = vpop.f32.mrb[0].mxu0
          %v3804 = vadd.f32 %v3611, %v3803
          %v3805 = vpop.f32.mrb[0].mxu0
          %v3806 = vadd.f32 %v3613, %v3805
          %v3807 = vpop.f32.mrb[0].mxu0
          %v3808 = vadd.f32 %v3615, %v3807
          %v3809 = vpop.f32.mrb[0].mxu0
          %v3810 = vadd.f32 %v3617, %v3809
          %3811 = vmatprep.mubr.bf16.mxu0 %v2281
          %3812 = vmatmul.mubr.bf16.gmra.mrb[0].mxu0 %v2280
          %v3813 = vpop.f32.mrb[0].mxu0
          %v3814 = vadd.f32 %v3621, %v3813
          %v3815 = vpop.f32.mrb[0].mxu0
          %v3816 = vadd.f32 %v3623, %v3815
          %v3817 = vpop.f32.mrb[0].mxu0
          %v3818 = vadd.f32 %v3625, %v3817
          %v3819 = vpop.f32.mrb[0].mxu0
          %v3820 = vadd.f32 %v3627, %v3819
          %3821 = vdwg.mxu0
          %v3822 = vld [vmem:[%s380] sm:$0xf]
          %v3823 = vld [vmem:[%s389] sm:$0xf]
          %v3824 = vadd.f32 %v3278, %v3282
          %v3825 = vadd.f32 %v3824, %v3288
          %v3826 = vadd.f32 %v3825, %v3292
          %v3827 = vadd.f32 %v3826, %v3298
          %v3828 = vadd.f32 %v3827, %v3302
          %v3829 = vadd.f32 %v3828, %v3308
          %v3830 = vadd.f32 %v3829, %v3312
          %v3831 = vadd.f32 %v3830, %v3318
          %v3832 = vadd.f32 %v3831, %v3322
          %v3833 = vadd.f32 %v3832, %v3328
          %v3834 = vadd.f32 %v3833, %v3332
          %v3835 = vadd.f32 %v3834, %v3338
          %v3836 = vadd.f32 %v3835, %v3342
          %v3837 = vadd.f32 %v3836, %v3348
          %v3838 = vadd.f32 %v3837, %v3352
          %v3839 = vadd.f32 %v3838, %v3358
          %v3840 = vadd.f32 %v3839, %v3362
          %v3841 = vadd.f32 %v3840, %v3368
          %v3842 = vadd.f32 %v3841, %v3372
          %v3843 = vadd.f32 %v3842, %v3378
          %v3844 = vadd.f32 %v3843, %v3382
          %v3845 = vadd.f32 %v3844, %v3388
          %v3846 = vadd.f32 %v3845, %v3392
          %v3847 = vadd.f32 %v3846, %v3398
          %v3848 = vadd.f32 %v3847, %v3402
          %v3849 = vadd.f32 %v3848, %v3408
          %v3850 = vadd.f32 %v3849, %v3412
          %v3851 = vadd.f32 %v3850, %v3418
          %v3852 = vadd.f32 %v3851, %v3422
          %v3853 = vadd.f32 %v3852, %v3428
          %v3854 = vadd.f32 %v3853, %v3432
          %v3855 = vrot.slane %v3854, 4
          %v3856 = vadd.f32 %v3854, %v3855
          %v3857 = vrot.slane %v3856, 2
          %v3858 = vadd.f32 %v3856, %v3857
          %v3859 = vrot.slane %v3858, 1
          %v3860 = vadd.f32 %v3858, %v3859
          %v3861 = vadd.f32 %v3280, %v3284
          %v3862 = vadd.f32 %v3861, %v3290
          %v3863 = vadd.f32 %v3862, %v3294
          %v3864 = vadd.f32 %v3863, %v3300
          %v3865 = vadd.f32 %v3864, %v3304
          %v3866 = vadd.f32 %v3865, %v3310
          %v3867 = vadd.f32 %v3866, %v3314
          %v3868 = vadd.f32 %v3867, %v3320
          %v3869 = vadd.f32 %v3868, %v3324
          %v3870 = vadd.f32 %v3869, %v3330
          %v3871 = vadd.f32 %v3870, %v3334
          %v3872 = vadd.f32 %v3871, %v3340
          %v3873 = vadd.f32 %v3872, %v3344
          %v3874 = vadd.f32 %v3873, %v3350
          %v3875 = vadd.f32 %v3874, %v3354
          %v3876 = vadd.f32 %v3875, %v3360
          %v3877 = vadd.f32 %v3876, %v3364
          %v3878 = vadd.f32 %v3877, %v3370
          %v3879 = vadd.f32 %v3878, %v3374
          %v3880 = vadd.f32 %v3879, %v3380
          %v3881 = vadd.f32 %v3880, %v3384
          %v3882 = vadd.f32 %v3881, %v3390
          %v3883 = vadd.f32 %v3882, %v3394
          %v3884 = vadd.f32 %v3883, %v3400
          %v3885 = vadd.f32 %v3884, %v3404
          %v3886 = vadd.f32 %v3885, %v3410
          %v3887 = vadd.f32 %v3886, %v3414
          %v3888 = vadd.f32 %v3887, %v3420
          %v3889 = vadd.f32 %v3888, %v3424
          %v3890 = vadd.f32 %v3889, %v3430
          %v3891 = vadd.f32 %v3890, %v3434
          %v3892 = vrot.slane %v3891, 4
          %v3893 = vadd.f32 %v3891, %v3892
          %v3894 = vrot.slane %v3893, 2
          %v3895 = vadd.f32 %v3893, %v3894
          %v3896 = vrot.slane %v3895, 1
          %v3897 = vadd.f32 %v3895, %v3896
          %v3898 = vadd.f32 %v3664, %v3668
          %v3899 = vadd.f32 %v3898, %v3674
          %v3900 = vadd.f32 %v3899, %v3678
          %v3901 = vadd.f32 %v3900, %v3684
          %v3902 = vadd.f32 %v3901, %v3688
          %v3903 = vadd.f32 %v3902, %v3694
          %v3904 = vadd.f32 %v3903, %v3698
          %v3905 = vadd.f32 %v3904, %v3704
          %v3906 = vadd.f32 %v3905, %v3708
          %v3907 = vadd.f32 %v3906, %v3714
          %v3908 = vadd.f32 %v3907, %v3718
          %v3909 = vadd.f32 %v3908, %v3724
          %v3910 = vadd.f32 %v3909, %v3728
          %v3911 = vadd.f32 %v3910, %v3734
          %v3912 = vadd.f32 %v3911, %v3738
          %v3913 = vadd.f32 %v3912, %v3744
          %v3914 = vadd.f32 %v3913, %v3748
          %v3915 = vadd.f32 %v3914, %v3754
          %v3916 = vadd.f32 %v3915, %v3758
          %v3917 = vadd.f32 %v3916, %v3764
          %v3918 = vadd.f32 %v3917, %v3768
          %v3919 = vadd.f32 %v3918, %v3774
          %v3920 = vadd.f32 %v3919, %v3778
          %v3921 = vadd.f32 %v3920, %v3784
          %v3922 = vadd.f32 %v3921, %v3788
          %v3923 = vadd.f32 %v3922, %v3794
          %v3924 = vadd.f32 %v3923, %v3798
          %v3925 = vadd.f32 %v3924, %v3804
          %v3926 = vadd.f32 %v3925, %v3808
          %v3927 = vadd.f32 %v3926, %v3814
          %v3928 = vadd.f32 %v3927, %v3818
          %v3929 = vrot.slane %v3928, 4
          %v3930 = vadd.f32 %v3928, %v3929
          %v3931 = vrot.slane %v3930, 2
          %v3932 = vadd.f32 %v3930, %v3931
          %v3933 = vrot.slane %v3932, 1
          %v3934 = vadd.f32 %v3932, %v3933
          %v3935 = vadd.f32 %v3666, %v3670
          %v3936 = vadd.f32 %v3935, %v3676
          %v3937 = vadd.f32 %v3936, %v3680
          %v3938 = vadd.f32 %v3937, %v3686
          %v3939 = vadd.f32 %v3938, %v3690
          %v3940 = vadd.f32 %v3939, %v3696
          %v3941 = vadd.f32 %v3940, %v3700
          %v3942 = vadd.f32 %v3941, %v3706
          %v3943 = vadd.f32 %v3942, %v3710
          %v3944 = vadd.f32 %v3943, %v3716
          %v3945 = vadd.f32 %v3944, %v3720
          %v3946 = vadd.f32 %v3945, %v3726
          %v3947 = vadd.f32 %v3946, %v3730
          %v3948 = vadd.f32 %v3947, %v3736
          %v3949 = vadd.f32 %v3948, %v3740
          %v3950 = vadd.f32 %v3949, %v3746
          %v3951 = vadd.f32 %v3950, %v3750
          %v3952 = vadd.f32 %v3951, %v3756
          %v3953 = vadd.f32 %v3952, %v3760
          %v3954 = vadd.f32 %v3953, %v3766
          %v3955 = vadd.f32 %v3954, %v3770
          %v3956 = vadd.f32 %v3955, %v3776
          %v3957 = vadd.f32 %v3956, %v3780
          %v3958 = vadd.f32 %v3957, %v3786
          %v3959 = vadd.f32 %v3958, %v3790
          %v3960 = vadd.f32 %v3959, %v3796
          %v3961 = vadd.f32 %v3960, %v3800
          %v3962 = vadd.f32 %v3961, %v3806
          %v3963 = vadd.f32 %v3962, %v3810
          %v3964 = vadd.f32 %v3963, %v3816
          %v3965 = vadd.f32 %v3964, %v3820
          %v3966 = vrot.slane %v3965, 4
          %v3967 = vadd.f32 %v3965, %v3966
          %v3968 = vrot.slane %v3967, 2
          %v3969 = vadd.f32 %v3967, %v3968
          %v3970 = vrot.slane %v3969, 1
          %v3971 = vadd.f32 %v3969, %v3970
          %v3972 = vmul.f32 %v3860, 0.00390625
          %v3973 = vmul.f32 %v3897, 0.00390625
          %v3974 = vmul.f32 %v3934, 0.00390625
          %v3975 = vmul.f32 %v3971, 0.00390625
          %v3976 = vmul.f32 %v3278, %v3278
          %v3977 = vmul.f32 %v3280, %v3280
          %v3978 = vmul.f32 %v3664, %v3664
          %v3979 = vmul.f32 %v3666, %v3666
          %v3980 = vmul.f32 %v3282, %v3282
          %v3981 = vmul.f32 %v3284, %v3284
          %v3982 = vmul.f32 %v3668, %v3668
          %v3983 = vmul.f32 %v3670, %v3670
          %v3984 = vmul.f32 %v3288, %v3288
          %v3985 = vmul.f32 %v3290, %v3290
          %v3986 = vmul.f32 %v3674, %v3674
          %v3987 = vmul.f32 %v3676, %v3676
          %v3988 = vmul.f32 %v3292, %v3292
          %v3989 = vmul.f32 %v3294, %v3294
          %v3990 = vmul.f32 %v3678, %v3678
          %v3991 = vmul.f32 %v3680, %v3680
          %v3992 = vmul.f32 %v3298, %v3298
          %v3993 = vmul.f32 %v3300, %v3300
          %v3994 = vmul.f32 %v3684, %v3684
          %v3995 = vmul.f32 %v3686, %v3686
          %v3996 = vmul.f32 %v3302, %v3302
          %v3997 = vmul.f32 %v3304, %v3304
          %v3998 = vmul.f32 %v3688, %v3688
          %v3999 = vmul.f32 %v3690, %v3690
          %v4000 = vmul.f32 %v3308, %v3308
          %v4001 = vmul.f32 %v3310, %v3310
          %v4002 = vmul.f32 %v3694, %v3694
          %v4003 = vmul.f32 %v3696, %v3696
          %v4004 = vmul.f32 %v3312, %v3312
          %v4005 = vmul.f32 %v3314, %v3314
          %v4006 = vmul.f32 %v3698, %v3698
          %v4007 = vmul.f32 %v3700, %v3700
          %v4008 = vmul.f32 %v3318, %v3318
          %v4009 = vmul.f32 %v3320, %v3320
          %v4010 = vmul.f32 %v3704, %v3704
          %v4011 = vmul.f32 %v3706, %v3706
          %v4012 = vmul.f32 %v3322, %v3322
          %v4013 = vmul.f32 %v3324, %v3324
          %v4014 = vmul.f32 %v3708, %v3708
          %v4015 = vmul.f32 %v3710, %v3710
          %v4016 = vmul.f32 %v3328, %v3328
          %v4017 = vmul.f32 %v3330, %v3330
          %v4018 = vmul.f32 %v3714, %v3714
          %v4019 = vmul.f32 %v3716, %v3716
          %v4020 = vmul.f32 %v3332, %v3332
          %v4021 = vmul.f32 %v3334, %v3334
          %v4022 = vmul.f32 %v3718, %v3718
          %v4023 = vmul.f32 %v3720, %v3720
          %v4024 = vmul.f32 %v3338, %v3338
          %v4025 = vmul.f32 %v3340, %v3340
          %v4026 = vmul.f32 %v3724, %v3724
          %v4027 = vmul.f32 %v3726, %v3726
          %v4028 = vmul.f32 %v3342, %v3342
          %v4029 = vmul.f32 %v3344, %v3344
          %v4030 = vmul.f32 %v3728, %v3728
          %v4031 = vmul.f32 %v3730, %v3730
          %v4032 = vmul.f32 %v3348, %v3348
          %v4033 = vmul.f32 %v3350, %v3350
          %v4034 = vmul.f32 %v3734, %v3734
          %v4035 = vmul.f32 %v3736, %v3736
          %v4036 = vmul.f32 %v3352, %v3352
          %v4037 = vmul.f32 %v3354, %v3354
          %v4038 = vmul.f32 %v3738, %v3738
          %v4039 = vmul.f32 %v3740, %v3740
          %v4040 = vmul.f32 %v3358, %v3358
          %v4041 = vmul.f32 %v3360, %v3360
          %v4042 = vmul.f32 %v3744, %v3744
          %v4043 = vmul.f32 %v3746, %v3746
          %v4044 = vmul.f32 %v3362, %v3362
          %v4045 = vmul.f32 %v3364, %v3364
          %v4046 = vmul.f32 %v3748, %v3748
          %v4047 = vmul.f32 %v3750, %v3750
          %v4048 = vmul.f32 %v3368, %v3368
          %v4049 = vmul.f32 %v3370, %v3370
          %v4050 = vmul.f32 %v3754, %v3754
          %v4051 = vmul.f32 %v3756, %v3756
          %v4052 = vmul.f32 %v3372, %v3372
          %v4053 = vmul.f32 %v3374, %v3374
          %v4054 = vmul.f32 %v3758, %v3758
          %v4055 = vmul.f32 %v3760, %v3760
          %v4056 = vmul.f32 %v3378, %v3378
          %v4057 = vmul.f32 %v3380, %v3380
          %v4058 = vmul.f32 %v3764, %v3764
          %v4059 = vmul.f32 %v3766, %v3766
          %v4060 = vmul.f32 %v3382, %v3382
          %v4061 = vmul.f32 %v3384, %v3384
          %v4062 = vmul.f32 %v3768, %v3768
          %v4063 = vmul.f32 %v3770, %v3770
          %v4064 = vmul.f32 %v3388, %v3388
          %v4065 = vmul.f32 %v3390, %v3390
          %v4066 = vmul.f32 %v3774, %v3774
          %v4067 = vmul.f32 %v3776, %v3776
          %v4068 = vmul.f32 %v3392, %v3392
          %v4069 = vmul.f32 %v3394, %v3394
          %v4070 = vmul.f32 %v3778, %v3778
          %v4071 = vmul.f32 %v3780, %v3780
          %v4072 = vmul.f32 %v3398, %v3398
          %v4073 = vmul.f32 %v3400, %v3400
          %v4074 = vmul.f32 %v3784, %v3784
          %v4075 = vmul.f32 %v3786, %v3786
          %v4076 = vmul.f32 %v3402, %v3402
          %v4077 = vmul.f32 %v3404, %v3404
          %v4078 = vmul.f32 %v3788, %v3788
          %v4079 = vmul.f32 %v3790, %v3790
          %v4080 = vmul.f32 %v3408, %v3408
          %v4081 = vmul.f32 %v3410, %v3410
          %v4082 = vmul.f32 %v3794, %v3794
          %v4083 = vmul.f32 %v3796, %v3796
          %v4084 = vmul.f32 %v3412, %v3412
          %v4085 = vmul.f32 %v3414, %v3414
          %v4086 = vmul.f32 %v3798, %v3798
          %v4087 = vmul.f32 %v3800, %v3800
          %v4088 = vmul.f32 %v3418, %v3418
          %v4089 = vmul.f32 %v3420, %v3420
          %v4090 = vmul.f32 %v3804, %v3804
          %v4091 = vmul.f32 %v3806, %v3806
          %v4092 = vmul.f32 %v3422, %v3422
          %v4093 = vmul.f32 %v3424, %v3424
          %v4094 = vmul.f32 %v3808, %v3808
          %v4095 = vmul.f32 %v3810, %v3810
          %v4096 = vmul.f32 %v3428, %v3428
          %v4097 = vmul.f32 %v3430, %v3430
          %v4098 = vmul.f32 %v3814, %v3814
          %v4099 = vmul.f32 %v3816, %v3816
          %v4100 = vmul.f32 %v3432, %v3432
          %v4101 = vmul.f32 %v3434, %v3434
          %v4102 = vmul.f32 %v3818, %v3818
          %v4103 = vmul.f32 %v3820, %v3820
          %v4104 = vadd.f32 %v3976, %v3980
          %v4105 = vadd.f32 %v4104, %v3984
          %v4106 = vadd.f32 %v4105, %v3988
          %v4107 = vadd.f32 %v4106, %v3992
          %v4108 = vadd.f32 %v4107, %v3996
          %v4109 = vadd.f32 %v4108, %v4000
          %v4110 = vadd.f32 %v4109, %v4004
          %v4111 = vadd.f32 %v4110, %v4008
          %v4112 = vadd.f32 %v4111, %v4012
          %v4113 = vadd.f32 %v4112, %v4016
          %v4114 = vadd.f32 %v4113, %v4020
          %v4115 = vadd.f32 %v4114, %v4024
          %v4116 = vadd.f32 %v4115, %v4028
          %v4117 = vadd.f32 %v4116, %v4032
          %v4118 = vadd.f32 %v4117, %v4036
          %v4119 = vadd.f32 %v4118, %v4040
          %v4120 = vadd.f32 %v4119, %v4044
          %v4121 = vadd.f32 %v4120, %v4048
          %v4122 = vadd.f32 %v4121, %v4052
          %v4123 = vadd.f32 %v4122, %v4056
          %v4124 = vadd.f32 %v4123, %v4060
          %v4125 = vadd.f32 %v4124, %v4064
          %v4126 = vadd.f32 %v4125, %v4068
          %v4127 = vadd.f32 %v4126, %v4072
          %v4128 = vadd.f32 %v4127, %v4076
          %v4129 = vadd.f32 %v4128, %v4080
          %v4130 = vadd.f32 %v4129, %v4084
          %v4131 = vadd.f32 %v4130, %v4088
          %v4132 = vadd.f32 %v4131, %v4092
          %v4133 = vadd.f32 %v4132, %v4096
          %v4134 = vadd.f32 %v4133, %v4100
          %v4135 = vrot.slane %v4134, 4
          %v4136 = vadd.f32 %v4134, %v4135
          %v4137 = vrot.slane %v4136, 2
          %v4138 = vadd.f32 %v4136, %v4137
          %v4139 = vrot.slane %v4138, 1
          %v4140 = vadd.f32 %v4138, %v4139
          %v4141 = vadd.f32 %v3977, %v3981
          %v4142 = vadd.f32 %v4141, %v3985
          %v4143 = vadd.f32 %v4142, %v3989
          %v4144 = vadd.f32 %v4143, %v3993
          %v4145 = vadd.f32 %v4144, %v3997
          %v4146 = vadd.f32 %v4145, %v4001
          %v4147 = vadd.f32 %v4146, %v4005
          %v4148 = vadd.f32 %v4147, %v4009
          %v4149 = vadd.f32 %v4148, %v4013
          %v4150 = vadd.f32 %v4149, %v4017
          %v4151 = vadd.f32 %v4150, %v4021
          %v4152 = vadd.f32 %v4151, %v4025
          %v4153 = vadd.f32 %v4152, %v4029
          %v4154 = vadd.f32 %v4153, %v4033
          %v4155 = vadd.f32 %v4154, %v4037
          %v4156 = vadd.f32 %v4155, %v4041
          %v4157 = vadd.f32 %v4156, %v4045
          %v4158 = vadd.f32 %v4157, %v4049
          %v4159 = vadd.f32 %v4158, %v4053
          %v4160 = vadd.f32 %v4159, %v4057
          %v4161 = vadd.f32 %v4160, %v4061
          %v4162 = vadd.f32 %v4161, %v4065
          %v4163 = vadd.f32 %v4162, %v4069
          %v4164 = vadd.f32 %v4163, %v4073
          %v4165 = vadd.f32 %v4164, %v4077
          %v4166 = vadd.f32 %v4165, %v4081
          %v4167 = vadd.f32 %v4166, %v4085
          %v4168 = vadd.f32 %v4167, %v4089
          %v4169 = vadd.f32 %v4168, %v4093
          %v4170 = vadd.f32 %v4169, %v4097
          %v4171 = vadd.f32 %v4170, %v4101
          %v4172 = vrot.slane %v4171, 4
          %v4173 = vadd.f32 %v4171, %v4172
          %v4174 = vrot.slane %v4173, 2
          %v4175 = vadd.f32 %v4173, %v4174
          %v4176 = vrot.slane %v4175, 1
          %v4177 = vadd.f32 %v4175, %v4176
          %v4178 = vadd.f32 %v3978, %v3982
          %v4179 = vadd.f32 %v4178, %v3986
          %v4180 = vadd.f32 %v4179, %v3990
          %v4181 = vadd.f32 %v4180, %v3994
          %v4182 = vadd.f32 %v4181, %v3998
          %v4183 = vadd.f32 %v4182, %v4002
          %v4184 = vadd.f32 %v4183, %v4006
          %v4185 = vadd.f32 %v4184, %v4010
          %v4186 = vadd.f32 %v4185, %v4014
          %v4187 = vadd.f32 %v4186, %v4018
          %v4188 = vadd.f32 %v4187, %v4022
          %v4189 = vadd.f32 %v4188, %v4026
          %v4190 = vadd.f32 %v4189, %v4030
          %v4191 = vadd.f32 %v4190, %v4034
          %v4192 = vadd.f32 %v4191, %v4038
          %v4193 = vadd.f32 %v4192, %v4042
          %v4194 = vadd.f32 %v4193, %v4046
          %v4195 = vadd.f32 %v4194, %v4050
          %v4196 = vadd.f32 %v4195, %v4054
          %v4197 = vadd.f32 %v4196, %v4058
          %v4198 = vadd.f32 %v4197, %v4062
          %v4199 = vadd.f32 %v4198, %v4066
          %v4200 = vadd.f32 %v4199, %v4070
          %v4201 = vadd.f32 %v4200, %v4074
          %v4202 = vadd.f32 %v4201, %v4078
          %v4203 = vadd.f32 %v4202, %v4082
          %v4204 = vadd.f32 %v4203, %v4086
          %v4205 = vadd.f32 %v4204, %v4090
          %v4206 = vadd.f32 %v4205, %v4094
          %v4207 = vadd.f32 %v4206, %v4098
          %v4208 = vadd.f32 %v4207, %v4102
          %v4209 = vrot.slane %v4208, 4
          %v4210 = vadd.f32 %v4208, %v4209
          %v4211 = vrot.slane %v4210, 2
          %v4212 = vadd.f32 %v4210, %v4211
          %v4213 = vrot.slane %v4212, 1
          %v4214 = vadd.f32 %v4212, %v4213
          %v4215 = vadd.f32 %v3979, %v3983
          %v4216 = vadd.f32 %v4215, %v3987
          %v4217 = vadd.f32 %v4216, %v3991
          %v4218 = vadd.f32 %v4217, %v3995
          %v4219 = vadd.f32 %v4218, %v3999
          %v4220 = vadd.f32 %v4219, %v4003
          %v4221 = vadd.f32 %v4220, %v4007
          %v4222 = vadd.f32 %v4221, %v4011
          %v4223 = vadd.f32 %v4222, %v4015
          %v4224 = vadd.f32 %v4223, %v4019
          %v4225 = vadd.f32 %v4224, %v4023
          %v4226 = vadd.f32 %v4225, %v4027
          %v4227 = vadd.f32 %v4226, %v4031
          %v4228 = vadd.f32 %v4227, %v4035
          %v4229 = vadd.f32 %v4228, %v4039
          %v4230 = vadd.f32 %v4229, %v4043
          %v4231 = vadd.f32 %v4230, %v4047
          %v4232 = vadd.f32 %v4231, %v4051
          %v4233 = vadd.f32 %v4232, %v4055
          %v4234 = vadd.f32 %v4233, %v4059
          %v4235 = vadd.f32 %v4234, %v4063
          %v4236 = vadd.f32 %v4235, %v4067
          %v4237 = vadd.f32 %v4236, %v4071
          %v4238 = vadd.f32 %v4237, %v4075
          %v4239 = vadd.f32 %v4238, %v4079
          %v4240 = vadd.f32 %v4239, %v4083
          %v4241 = vadd.f32 %v4240, %v4087
          %v4242 = vadd.f32 %v4241, %v4091
          %v4243 = vadd.f32 %v4242, %v4095
          %v4244 = vadd.f32 %v4243, %v4099
          %v4245 = vadd.f32 %v4244, %v4103
          %v4246 = vrot.slane %v4245, 4
          %v4247 = vadd.f32 %v4245, %v4246
          %v4248 = vrot.slane %v4247, 2
          %v4249 = vadd.f32 %v4247, %v4248
          %v4250 = vrot.slane %v4249, 1
          %v4251 = vadd.f32 %v4249, %v4250
          %v4252 = vmul.f32 %v4140, 0.00390625
          %v4253 = vmul.f32 %v4177, 0.00390625
          %v4254 = vmul.f32 %v4214, 0.00390625
          %v4255 = vmul.f32 %v4251, 0.00390625
          %v4256 = vmul.f32 %v3972, %v3972
          %v4257 = vmul.f32 %v3973, %v3973
          %v4258 = vmul.f32 %v3974, %v3974
          %v4259 = vmul.f32 %v3975, %v3975
          %v4260 = vsub.f32 %v4252, %v4256
          %v4261 = vsub.f32 %v4253, %v4257
          %v4262 = vsub.f32 %v4254, %v4258
          %v4263 = vsub.f32 %v4255, %v4259
          %v4264 = vadd.f32 %v4260, 1e-05
          %v4265 = vadd.f32 %v4261, 1e-05
          %v4266 = vadd.f32 %v4262, 1e-05
          %v4267 = vadd.f32 %v4263, 1e-05
          %v4268 = vrsqrt.pop %v4264
          %v4269 = vrsqrt.pop %v4265
          %v4270 = vrsqrt.pop %v4266
          %v4271 = vrsqrt.pop %v4267
          %v4276 = vcombine.low %v4268, %v4269
          %v4277 = vcombine.low %v4270, %v4271
          %v4279 = vunpack.c.l.s4 1966171168
          %v4280 = vunpack.c.0.s8 %v4279
          %v4281 = vlaneseq
          %v4282 = vshrl.u32 %v4281, 7
          %v4283 = vsub.s32 %v4280, %v4282
          %v4284 = vrot.slane %v4276, %v4283
          %v4286 = vunpack.c.l.s4 1966171168
          %v4287 = vunpack.c.0.s8 %v4286
          %v4288 = vlaneseq
          %v4289 = vshrl.u32 %v4288, 7
          %v4290 = vsub.s32 %v4287, %v4289
          %v4291 = vrot.slane %v4277, %v4290
          %v4292 = vcombine.low %v4284, %v4291
          %v4294 = vunpack.c.l.s4 1966171168
          %v4295 = vunpack.c.0.s8 %v4294
          %v4296 = vlaneseq
          %v4297 = vshrl.u32 %v4296, 7
          %v4298 = vsub.s32 %v4295, %v4297
          %v4299 = vrot.slane %v4292, %v4298
          %v4301 = vmul.f32 %v3822, %v4299
          %v4303 = vlaneseq
          %v4304 = vshrl.u32 %v4303, 7
          %v4305 = vsub.s32 0, %v4304
          %v4306 = vrot.slane %v4301, %v4305
          %v4307 = vlaneseq
          %v4308 = vshrl.u32 %v4307, 7
          %v4309 = vsub.s32 1, %v4308
          %v4310 = vrot.slane %v4301, %v4309
          %v4311 = vlaneseq
          %v4312 = vshrl.u32 %v4311, 7
          %v4313 = vsub.s32 2, %v4312
          %v4314 = vrot.slane %v4301, %v4313
          %v4315 = vlaneseq
          %v4316 = vshrl.u32 %v4315, 7
          %v4317 = vsub.s32 3, %v4316
          %v4318 = vrot.slane %v4301, %v4317
          %v4323 = vmul.f32 %v3972, %v4306
          %v4324 = vmul.f32 %v3973, %v4310
          %v4325 = vmul.f32 %v3974, %v4314
          %v4326 = vmul.f32 %v3975, %v4318
          %v4331 = vcombine.low %v4323, %v4324
          %v4332 = vcombine.low %v4325, %v4326
          %v4334 = vunpack.c.l.s4 1966171168
          %v4335 = vunpack.c.0.s8 %v4334
          %v4336 = vlaneseq
          %v4337 = vshrl.u32 %v4336, 7
          %v4338 = vsub.s32 %v4335, %v4337
          %v4339 = vrot.slane %v4331, %v4338
          %v4341 = vunpack.c.l.s4 1966171168
          %v4342 = vunpack.c.0.s8 %v4341
          %v4343 = vlaneseq
          %v4344 = vshrl.u32 %v4343, 7
          %v4345 = vsub.s32 %v4342, %v4344
          %v4346 = vrot.slane %v4332, %v4345
          %v4347 = vcombine.low %v4339, %v4346
          %v4349 = vunpack.c.l.s4 1966171168
          %v4350 = vunpack.c.0.s8 %v4349
          %v4351 = vlaneseq
          %v4352 = vshrl.u32 %v4351, 7
          %v4353 = vsub.s32 %v4350, %v4352
          %v4354 = vrot.slane %v4347, %v4353
          %v4356 = vsub.f32 %v3823, %v4354
          %v4357 = vmul.f32 %v3278, %v4306
          %v4358 = vmul.f32 %v3280, %v4310
          %v4359 = vmul.f32 %v3664, %v4314
          %v4360 = vmul.f32 %v3666, %v4318
          %v4361 = vmul.f32 %v3282, %v4306
          %v4362 = vmul.f32 %v3284, %v4310
          %v4363 = vmul.f32 %v3668, %v4314
          %v4364 = vmul.f32 %v3670, %v4318
          %v4365 = vmul.f32 %v3288, %v4306
          %v4366 = vmul.f32 %v3290, %v4310
          %v4367 = vmul.f32 %v3674, %v4314
          %v4368 = vmul.f32 %v3676, %v4318
          %v4369 = vmul.f32 %v3292, %v4306
          %v4370 = vmul.f32 %v3294, %v4310
          %v4371 = vmul.f32 %v3678, %v4314
          %v4372 = vmul.f32 %v3680, %v4318
          %v4373 = vmul.f32 %v3298, %v4306
          %v4374 = vmul.f32 %v3300, %v4310
          %v4375 = vmul.f32 %v3684, %v4314
          %v4376 = vmul.f32 %v3686, %v4318
          %v4377 = vmul.f32 %v3302, %v4306
          %v4378 = vmul.f32 %v3304, %v4310
          %v4379 = vmul.f32 %v3688, %v4314
          %v4380 = vmul.f32 %v3690, %v4318
          %v4381 = vmul.f32 %v3308, %v4306
          %v4382 = vmul.f32 %v3310, %v4310
          %v4383 = vmul.f32 %v3694, %v4314
          %v4384 = vmul.f32 %v3696, %v4318
          %v4385 = vmul.f32 %v3312, %v4306
          %v4386 = vmul.f32 %v3314, %v4310
          %v4387 = vmul.f32 %v3698, %v4314
          %v4388 = vmul.f32 %v3700, %v4318
          %v4389 = vmul.f32 %v3318, %v4306
          %v4390 = vmul.f32 %v3320, %v4310
          %v4391 = vmul.f32 %v3704, %v4314
          %v4392 = vmul.f32 %v3706, %v4318
          %v4393 = vmul.f32 %v3322, %v4306
          %v4394 = vmul.f32 %v3324, %v4310
          %v4395 = vmul.f32 %v3708, %v4314
          %v4396 = vmul.f32 %v3710, %v4318
          %v4397 = vmul.f32 %v3328, %v4306
          %v4398 = vmul.f32 %v3330, %v4310
          %v4399 = vmul.f32 %v3714, %v4314
          %v4400 = vmul.f32 %v3716, %v4318
          %v4401 = vmul.f32 %v3332, %v4306
          %v4402 = vmul.f32 %v3334, %v4310
          %v4403 = vmul.f32 %v3718, %v4314
          %v4404 = vmul.f32 %v3720, %v4318
          %v4405 = vmul.f32 %v3338, %v4306
          %v4406 = vmul.f32 %v3340, %v4310
          %v4407 = vmul.f32 %v3724, %v4314
          %v4408 = vmul.f32 %v3726, %v4318
          %v4409 = vmul.f32 %v3342, %v4306
          %v4410 = vmul.f32 %v3344, %v4310
          %v4411 = vmul.f32 %v3728, %v4314
          %v4412 = vmul.f32 %v3730, %v4318
          %v4413 = vmul.f32 %v3348, %v4306
          %v4414 = vmul.f32 %v3350, %v4310
          %v4415 = vmul.f32 %v3734, %v4314
          %v4416 = vmul.f32 %v3736, %v4318
          %v4417 = vmul.f32 %v3352, %v4306
          %v4418 = vmul.f32 %v3354, %v4310
          %v4419 = vmul.f32 %v3738, %v4314
          %v4420 = vmul.f32 %v3740, %v4318
          %v4421 = vmul.f32 %v3358, %v4306
          %v4422 = vmul.f32 %v3360, %v4310
          %v4423 = vmul.f32 %v3744, %v4314
          %v4424 = vmul.f32 %v3746, %v4318
          %v4425 = vmul.f32 %v3362, %v4306
          %v4426 = vmul.f32 %v3364, %v4310
          %v4427 = vmul.f32 %v3748, %v4314
          %v4428 = vmul.f32 %v3750, %v4318
          %v4429 = vmul.f32 %v3368, %v4306
          %v4430 = vmul.f32 %v3370, %v4310
          %v4431 = vmul.f32 %v3754, %v4314
          %v4432 = vmul.f32 %v3756, %v4318
          %v4433 = vmul.f32 %v3372, %v4306
          %v4434 = vmul.f32 %v3374, %v4310
          %v4435 = vmul.f32 %v3758, %v4314
          %v4436 = vmul.f32 %v3760, %v4318
          %v4437 = vmul.f32 %v3378, %v4306
          %v4438 = vmul.f32 %v3380, %v4310
          %v4439 = vmul.f32 %v3764, %v4314
          %v4440 = vmul.f32 %v3766, %v4318
          %v4441 = vmul.f32 %v3382, %v4306
          %v4442 = vmul.f32 %v3384, %v4310
          %v4443 = vmul.f32 %v3768, %v4314
          %v4444 = vmul.f32 %v3770, %v4318
          %v4445 = vmul.f32 %v3388, %v4306
          %v4446 = vmul.f32 %v3390, %v4310
          %v4447 = vmul.f32 %v3774, %v4314
          %v4448 = vmul.f32 %v3776, %v4318
          %v4449 = vmul.f32 %v3392, %v4306
          %v4450 = vmul.f32 %v3394, %v4310
          %v4451 = vmul.f32 %v3778, %v4314
          %v4452 = vmul.f32 %v3780, %v4318
          %v4453 = vmul.f32 %v3398, %v4306
          %v4454 = vmul.f32 %v3400, %v4310
          %v4455 = vmul.f32 %v3784, %v4314
          %v4456 = vmul.f32 %v3786, %v4318
          %v4457 = vmul.f32 %v3402, %v4306
          %v4458 = vmul.f32 %v3404, %v4310
          %v4459 = vmul.f32 %v3788, %v4314
          %v4460 = vmul.f32 %v3790, %v4318
          %v4461 = vmul.f32 %v3408, %v4306
          %v4462 = vmul.f32 %v3410, %v4310
          %v4463 = vmul.f32 %v3794, %v4314
          %v4464 = vmul.f32 %v3796, %v4318
          %v4465 = vmul.f32 %v3412, %v4306
          %v4466 = vmul.f32 %v3414, %v4310
          %v4467 = vmul.f32 %v3798, %v4314
          %v4468 = vmul.f32 %v3800, %v4318
          %v4469 = vmul.f32 %v3418, %v4306
          %v4470 = vmul.f32 %v3420, %v4310
          %v4471 = vmul.f32 %v3804, %v4314
          %v4472 = vmul.f32 %v3806, %v4318
          %v4473 = vmul.f32 %v3422, %v4306
          %v4474 = vmul.f32 %v3424, %v4310
          %v4475 = vmul.f32 %v3808, %v4314
          %v4476 = vmul.f32 %v3810, %v4318
          %v4477 = vmul.f32 %v3428, %v4306
          %v4478 = vmul.f32 %v3430, %v4310
          %v4479 = vmul.f32 %v3814, %v4314
          %v4480 = vmul.f32 %v3816, %v4318
          %v4481 = vmul.f32 %v3432, %v4306
          %v4482 = vmul.f32 %v3434, %v4310
          %v4483 = vmul.f32 %v3818, %v4314
          %v4484 = vmul.f32 %v3820, %v4318
          %v4486 = vlaneseq
          %v4487 = vshrl.u32 %v4486, 7
          %v4488 = vsub.s32 0, %v4487
          %v4489 = vrot.slane %v4356, %v4488
          %v4490 = vlaneseq
          %v4491 = vshrl.u32 %v4490, 7
          %v4492 = vsub.s32 1, %v4491
          %v4493 = vrot.slane %v4356, %v4492
          %v4494 = vlaneseq
          %v4495 = vshrl.u32 %v4494, 7
          %v4496 = vsub.s32 2, %v4495
          %v4497 = vrot.slane %v4356, %v4496
          %v4498 = vlaneseq
          %v4499 = vshrl.u32 %v4498, 7
          %v4500 = vsub.s32 3, %v4499
          %v4501 = vrot.slane %v4356, %v4500
          %v4506 = vadd.f32 %v4357, %v4489
          %v4507 = vadd.f32 %v4358, %v4493
          %v4508 = vadd.f32 %v4359, %v4497
          %v4509 = vadd.f32 %v4360, %v4501
          %v4510 = vadd.f32 %v4361, %v4489
          %v4511 = vadd.f32 %v4362, %v4493
          %v4512 = vadd.f32 %v4363, %v4497
          %v4513 = vadd.f32 %v4364, %v4501
          %v4514 = vadd.f32 %v4365, %v4489
          %v4515 = vadd.f32 %v4366, %v4493
          %v4516 = vadd.f32 %v4367, %v4497
          %v4517 = vadd.f32 %v4368, %v4501
          %v4518 = vadd.f32 %v4369, %v4489
          %v4519 = vadd.f32 %v4370, %v4493
          %v4520 = vadd.f32 %v4371, %v4497
          %v4521 = vadd.f32 %v4372, %v4501
          %v4522 = vadd.f32 %v4373, %v4489
          %v4523 = vadd.f32 %v4374, %v4493
          %v4524 = vadd.f32 %v4375, %v4497
          %v4525 = vadd.f32 %v4376, %v4501
          %v4526 = vadd.f32 %v4377, %v4489
          %v4527 = vadd.f32 %v4378, %v4493
          %v4528 = vadd.f32 %v4379, %v4497
          %v4529 = vadd.f32 %v4380, %v4501
          %v4530 = vadd.f32 %v4381, %v4489
          %v4531 = vadd.f32 %v4382, %v4493
          %v4532 = vadd.f32 %v4383, %v4497
          %v4533 = vadd.f32 %v4384, %v4501
          %v4534 = vadd.f32 %v4385, %v4489
          %v4535 = vadd.f32 %v4386, %v4493
          %v4536 = vadd.f32 %v4387, %v4497
          %v4537 = vadd.f32 %v4388, %v4501
          %v4538 = vadd.f32 %v4389, %v4489
          %v4539 = vadd.f32 %v4390, %v4493
          %v4540 = vadd.f32 %v4391, %v4497
          %v4541 = vadd.f32 %v4392, %v4501
          %v4542 = vadd.f32 %v4393, %v4489
          %v4543 = vadd.f32 %v4394, %v4493
          %v4544 = vadd.f32 %v4395, %v4497
          %v4545 = vadd.f32 %v4396, %v4501
          %v4546 = vadd.f32 %v4397, %v4489
          %v4547 = vadd.f32 %v4398, %v4493
          %v4548 = vadd.f32 %v4399, %v4497
          %v4549 = vadd.f32 %v4400, %v4501
          %v4550 = vadd.f32 %v4401, %v4489
          %v4551 = vadd.f32 %v4402, %v4493
          %v4552 = vadd.f32 %v4403, %v4497
          %v4553 = vadd.f32 %v4404, %v4501
          %v4554 = vadd.f32 %v4405, %v4489
          %v4555 = vadd.f32 %v4406, %v4493
          %v4556 = vadd.f32 %v4407, %v4497
          %v4557 = vadd.f32 %v4408, %v4501
          %v4558 = vadd.f32 %v4409, %v4489
          %v4559 = vadd.f32 %v4410, %v4493
          %v4560 = vadd.f32 %v4411, %v4497
          %v4561 = vadd.f32 %v4412, %v4501
          %v4562 = vadd.f32 %v4413, %v4489
          %v4563 = vadd.f32 %v4414, %v4493
          %v4564 = vadd.f32 %v4415, %v4497
          %v4565 = vadd.f32 %v4416, %v4501
          %v4566 = vadd.f32 %v4417, %v4489
          %v4567 = vadd.f32 %v4418, %v4493
          %v4568 = vadd.f32 %v4419, %v4497
          %v4569 = vadd.f32 %v4420, %v4501
          %v4570 = vadd.f32 %v4421, %v4489
          %v4571 = vadd.f32 %v4422, %v4493
          %v4572 = vadd.f32 %v4423, %v4497
          %v4573 = vadd.f32 %v4424, %v4501
          %v4574 = vadd.f32 %v4425, %v4489
          %v4575 = vadd.f32 %v4426, %v4493
          %v4576 = vadd.f32 %v4427, %v4497
          %v4577 = vadd.f32 %v4428, %v4501
          %v4578 = vadd.f32 %v4429, %v4489
          %v4579 = vadd.f32 %v4430, %v4493
          %v4580 = vadd.f32 %v4431, %v4497
          %v4581 = vadd.f32 %v4432, %v4501
          %v4582 = vadd.f32 %v4433, %v4489
          %v4583 = vadd.f32 %v4434, %v4493
          %v4584 = vadd.f32 %v4435, %v4497
          %v4585 = vadd.f32 %v4436, %v4501
          %v4586 = vadd.f32 %v4437, %v4489
          %v4587 = vadd.f32 %v4438, %v4493
          %v4588 = vadd.f32 %v4439, %v4497
          %v4589 = vadd.f32 %v4440, %v4501
          %v4590 = vadd.f32 %v4441, %v4489
          %v4591 = vadd.f32 %v4442, %v4493
          %v4592 = vadd.f32 %v4443, %v4497
          %v4593 = vadd.f32 %v4444, %v4501
          %v4594 = vadd.f32 %v4445, %v4489
          %v4595 = vadd.f32 %v4446, %v4493
          %v4596 = vadd.f32 %v4447, %v4497
          %v4597 = vadd.f32 %v4448, %v4501
          %v4598 = vadd.f32 %v4449, %v4489
          %v4599 = vadd.f32 %v4450, %v4493
          %v4600 = vadd.f32 %v4451, %v4497
          %v4601 = vadd.f32 %v4452, %v4501
          %v4602 = vadd.f32 %v4453, %v4489
          %v4603 = vadd.f32 %v4454, %v4493
          %v4604 = vadd.f32 %v4455, %v4497
          %v4605 = vadd.f32 %v4456, %v4501
          %v4606 = vadd.f32 %v4457, %v4489
          %v4607 = vadd.f32 %v4458, %v4493
          %v4608 = vadd.f32 %v4459, %v4497
          %v4609 = vadd.f32 %v4460, %v4501
          %v4610 = vadd.f32 %v4461, %v4489
          %v4611 = vadd.f32 %v4462, %v4493
          %v4612 = vadd.f32 %v4463, %v4497
          %v4613 = vadd.f32 %v4464, %v4501
          %v4614 = vadd.f32 %v4465, %v4489
          %v4615 = vadd.f32 %v4466, %v4493
          %v4616 = vadd.f32 %v4467, %v4497
          %v4617 = vadd.f32 %v4468, %v4501
          %v4618 = vadd.f32 %v4469, %v4489
          %v4619 = vadd.f32 %v4470, %v4493
          %v4620 = vadd.f32 %v4471, %v4497
          %v4621 = vadd.f32 %v4472, %v4501
          %v4622 = vadd.f32 %v4473, %v4489
          %v4623 = vadd.f32 %v4474, %v4493
          %v4624 = vadd.f32 %v4475, %v4497
          %v4625 = vadd.f32 %v4476, %v4501
          %v4626 = vadd.f32 %v4477, %v4489
          %v4627 = vadd.f32 %v4478, %v4493
          %v4628 = vadd.f32 %v4479, %v4497
          %v4629 = vadd.f32 %v4480, %v4501
          %v4630 = vadd.f32 %v4481, %v4489
          %v4631 = vadd.f32 %v4482, %v4493
          %v4632 = vadd.f32 %v4483, %v4497
          %v4633 = vadd.f32 %v4484, %v4501
          %v4634 = vmax.f32 %v4506, 0.0
          %v4635 = vmax.f32 %v4507, 0.0
          %v4636 = vmax.f32 %v4508, 0.0
          %v4637 = vmax.f32 %v4509, 0.0
          %v4638 = vmax.f32 %v4510, 0.0
          %v4639 = vmax.f32 %v4511, 0.0
          %v4640 = vmax.f32 %v4512, 0.0
          %v4641 = vmax.f32 %v4513, 0.0
          %v4642 = vmax.f32 %v4514, 0.0
          %v4643 = vmax.f32 %v4515, 0.0
          %v4644 = vmax.f32 %v4516, 0.0
          %v4645 = vmax.f32 %v4517, 0.0
          %v4646 = vmax.f32 %v4518, 0.0
          %v4647 = vmax.f32 %v4519, 0.0
          %v4648 = vmax.f32 %v4520, 0.0
          %v4649 = vmax.f32 %v4521, 0.0
          %v4650 = vmax.f32 %v4522, 0.0
          %v4651 = vmax.f32 %v4523, 0.0
          %v4652 = vmax.f32 %v4524, 0.0
          %v4653 = vmax.f32 %v4525, 0.0
          %v4654 = vmax.f32 %v4526, 0.0
          %v4655 = vmax.f32 %v4527, 0.0
          %v4656 = vmax.f32 %v4528, 0.0
          %v4657 = vmax.f32 %v4529, 0.0
          %v4658 = vmax.f32 %v4530, 0.0
          %v4659 = vmax.f32 %v4531, 0.0
          %v4660 = vmax.f32 %v4532, 0.0
          %v4661 = vmax.f32 %v4533, 0.0
          %v4662 = vmax.f32 %v4534, 0.0
          %v4663 = vmax.f32 %v4535, 0.0
          %v4664 = vmax.f32 %v4536, 0.0
          %v4665 = vmax.f32 %v4537, 0.0
          %v4666 = vmax.f32 %v4538, 0.0
          %v4667 = vmax.f32 %v4539, 0.0
          %v4668 = vmax.f32 %v4540, 0.0
          %v4669 = vmax.f32 %v4541, 0.0
          %v4670 = vmax.f32 %v4542, 0.0
          %v4671 = vmax.f32 %v4543, 0.0
          %v4672 = vmax.f32 %v4544, 0.0
          %v4673 = vmax.f32 %v4545, 0.0
          %v4674 = vmax.f32 %v4546, 0.0
          %v4675 = vmax.f32 %v4547, 0.0
          %v4676 = vmax.f32 %v4548, 0.0
          %v4677 = vmax.f32 %v4549, 0.0
          %v4678 = vmax.f32 %v4550, 0.0
          %v4679 = vmax.f32 %v4551, 0.0
          %v4680 = vmax.f32 %v4552, 0.0
          %v4681 = vmax.f32 %v4553, 0.0
          %v4682 = vmax.f32 %v4554, 0.0
          %v4683 = vmax.f32 %v4555, 0.0
          %v4684 = vmax.f32 %v4556, 0.0
          %v4685 = vmax.f32 %v4557, 0.0
          %v4686 = vmax.f32 %v4558, 0.0
          %v4687 = vmax.f32 %v4559, 0.0
          %v4688 = vmax.f32 %v4560, 0.0
          %v4689 = vmax.f32 %v4561, 0.0
          %v4690 = vmax.f32 %v4562, 0.0
          %v4691 = vmax.f32 %v4563, 0.0
          %v4692 = vmax.f32 %v4564, 0.0
          %v4693 = vmax.f32 %v4565, 0.0
          %v4694 = vmax.f32 %v4566, 0.0
          %v4695 = vmax.f32 %v4567, 0.0
          %v4696 = vmax.f32 %v4568, 0.0
          %v4697 = vmax.f32 %v4569, 0.0
          %v4698 = vmax.f32 %v4570, 0.0
          %v4699 = vmax.f32 %v4571, 0.0
          %v4700 = vmax.f32 %v4572, 0.0
          %v4701 = vmax.f32 %v4573, 0.0
          %v4702 = vmax.f32 %v4574, 0.0
          %v4703 = vmax.f32 %v4575, 0.0
          %v4704 = vmax.f32 %v4576, 0.0
          %v4705 = vmax.f32 %v4577, 0.0
          %v4706 = vmax.f32 %v4578, 0.0
          %v4707 = vmax.f32 %v4579, 0.0
          %v4708 = vmax.f32 %v4580, 0.0
          %v4709 = vmax.f32 %v4581, 0.0
          %v4710 = vmax.f32 %v4582, 0.0
          %v4711 = vmax.f32 %v4583, 0.0
          %v4712 = vmax.f32 %v4584, 0.0
          %v4713 = vmax.f32 %v4585, 0.0
          %v4714 = vmax.f32 %v4586, 0.0
          %v4715 = vmax.f32 %v4587, 0.0
          %v4716 = vmax.f32 %v4588, 0.0
          %v4717 = vmax.f32 %v4589, 0.0
          %v4718 = vmax.f32 %v4590, 0.0
          %v4719 = vmax.f32 %v4591, 0.0
          %v4720 = vmax.f32 %v4592, 0.0
          %v4721 = vmax.f32 %v4593, 0.0
          %v4722 = vmax.f32 %v4594, 0.0
          %v4723 = vmax.f32 %v4595, 0.0
          %v4724 = vmax.f32 %v4596, 0.0
          %v4725 = vmax.f32 %v4597, 0.0
          %v4726 = vmax.f32 %v4598, 0.0
          %v4727 = vmax.f32 %v4599, 0.0
          %v4728 = vmax.f32 %v4600, 0.0
          %v4729 = vmax.f32 %v4601, 0.0
          %v4730 = vmax.f32 %v4602, 0.0
          %v4731 = vmax.f32 %v4603, 0.0
          %v4732 = vmax.f32 %v4604, 0.0
          %v4733 = vmax.f32 %v4605, 0.0
          %v4734 = vmax.f32 %v4606, 0.0
          %v4735 = vmax.f32 %v4607, 0.0
          %v4736 = vmax.f32 %v4608, 0.0
          %v4737 = vmax.f32 %v4609, 0.0
          %v4738 = vmax.f32 %v4610, 0.0
          %v4739 = vmax.f32 %v4611, 0.0
          %v4740 = vmax.f32 %v4612, 0.0
          %v4741 = vmax.f32 %v4613, 0.0
          %v4742 = vmax.f32 %v4614, 0.0
          %v4743 = vmax.f32 %v4615, 0.0
          %v4744 = vmax.f32 %v4616, 0.0
          %v4745 = vmax.f32 %v4617, 0.0
          %v4746 = vmax.f32 %v4618, 0.0
          %v4747 = vmax.f32 %v4619, 0.0
          %v4748 = vmax.f32 %v4620, 0.0
          %v4749 = vmax.f32 %v4621, 0.0
          %v4750 = vmax.f32 %v4622, 0.0
          %v4751 = vmax.f32 %v4623, 0.0
          %v4752 = vmax.f32 %v4624, 0.0
          %v4753 = vmax.f32 %v4625, 0.0
          %v4754 = vmax.f32 %v4626, 0.0
          %v4755 = vmax.f32 %v4627, 0.0
          %v4756 = vmax.f32 %v4628, 0.0
          %v4757 = vmax.f32 %v4629, 0.0
          %v4758 = vmax.f32 %v4630, 0.0
          %v4759 = vmax.f32 %v4631, 0.0
          %v4760 = vmax.f32 %v4632, 0.0
          %v4761 = vmax.f32 %v4633, 0.0
          %p4762 = scmp.eq.s32.totalorder %s27, 3
          // Predicated region
          $region89: #{tpu_custom_call.1} parent=87 // pred_check
            %p4763 = pneg %p4762
          $region90: #{tpu_custom_call.1} parent=87 // pred_check_branch
            %4765 = sbr.rel (%p4763) target = $region92
          $region91: #{tpu_custom_call.1} parent=87 // pred_region
            %4766 = vst [vmem:[#allocation14] sm:$0xff] %v4634
            %4767 = vst [vmem:[#allocation14 + $0x8] sm:$0xff] %v4635
            %4768 = vst [vmem:[#allocation14 + $0x10] sm:$0xff] %v4636
            %4769 = vst [vmem:[#allocation14 + $0x18] sm:$0xff] %v4637
            %4770 = vst [vmem:[#allocation14 + $0x20] sm:$0xff] %v4638
            %4771 = vst [vmem:[#allocation14 + $0x28] sm:$0xff] %v4639
            %4772 = vst [vmem:[#allocation14 + $0x30] sm:$0xff] %v4640
            %4773 = vst [vmem:[#allocation14 + $0x38] sm:$0xff] %v4641
            %4774 = vst [vmem:[#allocation14 + $0x40] sm:$0xff] %v4642
            %4775 = vst [vmem:[#allocation14 + $0x48] sm:$0xff] %v4643
            %4776 = vst [vmem:[#allocation14 + $0x50] sm:$0xff] %v4644
            %4777 = vst [vmem:[#allocation14 + $0x58] sm:$0xff] %v4645
            %4778 = vst [vmem:[#allocation14 + $0x60] sm:$0xff] %v4646
            %4779 = vst [vmem:[#allocation14 + $0x68] sm:$0xff] %v4647
            %4780 = vst [vmem:[#allocation14 + $0x70] sm:$0xff] %v4648
            %4781 = vst [vmem:[#allocation14 + $0x78] sm:$0xff] %v4649
            %4782 = vst [vmem:[#allocation14 + $0x80] sm:$0xff] %v4650
            %4783 = vst [vmem:[#allocation14 + $0x88] sm:$0xff] %v4651
            %4784 = vst [vmem:[#allocation14 + $0x90] sm:$0xff] %v4652
            %4785 = vst [vmem:[#allocation14 + $0x98] sm:$0xff] %v4653
            %4786 = vst [vmem:[#allocation14 + $0xa0] sm:$0xff] %v4654
            %4787 = vst [vmem:[#allocation14 + $0xa8] sm:$0xff] %v4655
            %4788 = vst [vmem:[#allocation14 + $0xb0] sm:$0xff] %v4656
            %4789 = vst [vmem:[#allocation14 + $0xb8] sm:$0xff] %v4657
            %4790 = vst [vmem:[#allocation14 + $0xc0] sm:$0xff] %v4658
            %4791 = vst [vmem:[#allocation14 + $0xc8] sm:$0xff] %v4659
            %4792 = vst [vmem:[#allocation14 + $0xd0] sm:$0xff] %v4660
            %4793 = vst [vmem:[#allocation14 + $0xd8] sm:$0xff] %v4661
            %4794 = vst [vmem:[#allocation14 + $0xe0] sm:$0xff] %v4662
            %4795 = vst [vmem:[#allocation14 + $0xe8] sm:$0xff] %v4663
            %4796 = vst [vmem:[#allocation14 + $0xf0] sm:$0xff] %v4664
            %4797 = vst [vmem:[#allocation14 + $0xf8] sm:$0xff] %v4665
            %4798 = vst [vmem:[#allocation14 + $0x100] sm:$0xff] %v4666
            %4799 = vst [vmem:[#allocation14 + $0x108] sm:$0xff] %v4667
            %4800 = vst [vmem:[#allocation14 + $0x110] sm:$0xff] %v4668
            %4801 = vst [vmem:[#allocation14 + $0x118] sm:$0xff] %v4669
            %4802 = vst [vmem:[#allocation14 + $0x120] sm:$0xff] %v4670
            %4803 = vst [vmem:[#allocation14 + $0x128] sm:$0xff] %v4671
            %4804 = vst [vmem:[#allocation14 + $0x130] sm:$0xff] %v4672
            %4805 = vst [vmem:[#allocation14 + $0x138] sm:$0xff] %v4673
            %4806 = vst [vmem:[#allocation14 + $0x140] sm:$0xff] %v4674
            %4807 = vst [vmem:[#allocation14 + $0x148] sm:$0xff] %v4675
            %4808 = vst [vmem:[#allocation14 + $0x150] sm:$0xff] %v4676
            %4809 = vst [vmem:[#allocation14 + $0x158] sm:$0xff] %v4677
            %4810 = vst [vmem:[#allocation14 + $0x160] sm:$0xff] %v4678
            %4811 = vst [vmem:[#allocation14 + $0x168] sm:$0xff] %v4679
            %4812 = vst [vmem:[#allocation14 + $0x170] sm:$0xff] %v4680
            %4813 = vst [vmem:[#allocation14 + $0x178] sm:$0xff] %v4681
            %4814 = vst [vmem:[#allocation14 + $0x180] sm:$0xff] %v4682
            %4815 = vst [vmem:[#allocation14 + $0x188] sm:$0xff] %v4683
            %4816 = vst [vmem:[#allocation14 + $0x190] sm:$0xff] %v4684
            %4817 = vst [vmem:[#allocation14 + $0x198] sm:$0xff] %v4685
            %4818 = vst [vmem:[#allocation14 + $0x1a0] sm:$0xff] %v4686
            %4819 = vst [vmem:[#allocation14 + $0x1a8] sm:$0xff] %v4687
            %4820 = vst [vmem:[#allocation14 + $0x1b0] sm:$0xff] %v4688
            %4821 = vst [vmem:[#allocation14 + $0x1b8] sm:$0xff] %v4689
            %4822 = vst [vmem:[#allocation14 + $0x1c0] sm:$0xff] %v4690
            %4823 = vst [vmem:[#allocation14 + $0x1c8] sm:$0xff] %v4691
            %4824 = vst [vmem:[#allocation14 + $0x1d0] sm:$0xff] %v4692
            %4825 = vst [vmem:[#allocation14 + $0x1d8] sm:$0xff] %v4693
            %4826 = vst [vmem:[#allocation14 + $0x1e0] sm:$0xff] %v4694
            %4827 = vst [vmem:[#allocation14 + $0x1e8] sm:$0xff] %v4695
            %4828 = vst [vmem:[#allocation14 + $0x1f0] sm:$0xff] %v4696
            %4829 = vst [vmem:[#allocation14 + $0x1f8] sm:$0xff] %v4697
            %4830 = vst [vmem:[#allocation14 + $0x200] sm:$0xff] %v4698
            %4831 = vst [vmem:[#allocation14 + $0x208] sm:$0xff] %v4699
            %4832 = vst [vmem:[#allocation14 + $0x210] sm:$0xff] %v4700
            %4833 = vst [vmem:[#allocation14 + $0x218] sm:$0xff] %v4701
            %4834 = vst [vmem:[#allocation14 + $0x220] sm:$0xff] %v4702
            %4835 = vst [vmem:[#allocation14 + $0x228] sm:$0xff] %v4703
            %4836 = vst [vmem:[#allocation14 + $0x230] sm:$0xff] %v4704
            %4837 = vst [vmem:[#allocation14 + $0x238] sm:$0xff] %v4705
            %4838 = vst [vmem:[#allocation14 + $0x240] sm:$0xff] %v4706
            %4839 = vst [vmem:[#allocation14 + $0x248] sm:$0xff] %v4707
            %4840 = vst [vmem:[#allocation14 + $0x250] sm:$0xff] %v4708
            %4841 = vst [vmem:[#allocation14 + $0x258] sm:$0xff] %v4709
            %4842 = vst [vmem:[#allocation14 + $0x260] sm:$0xff] %v4710
            %4843 = vst [vmem:[#allocation14 + $0x268] sm:$0xff] %v4711
            %4844 = vst [vmem:[#allocation14 + $0x270] sm:$0xff] %v4712
            %4845 = vst [vmem:[#allocation14 + $0x278] sm:$0xff] %v4713
            %4846 = vst [vmem:[#allocation14 + $0x280] sm:$0xff] %v4714
            %4847 = vst [vmem:[#allocation14 + $0x288] sm:$0xff] %v4715
            %4848 = vst [vmem:[#allocation14 + $0x290] sm:$0xff] %v4716
            %4849 = vst [vmem:[#allocation14 + $0x298] sm:$0xff] %v4717
            %4850 = vst [vmem:[#allocation14 + $0x2a0] sm:$0xff] %v4718
            %4851 = vst [vmem:[#allocation14 + $0x2a8] sm:$0xff] %v4719
            %4852 = vst [vmem:[#allocation14 + $0x2b0] sm:$0xff] %v4720
            %4853 = vst [vmem:[#allocation14 + $0x2b8] sm:$0xff] %v4721
            %4854 = vst [vmem:[#allocation14 + $0x2c0] sm:$0xff] %v4722
            %4855 = vst [vmem:[#allocation14 + $0x2c8] sm:$0xff] %v4723
            %4856 = vst [vmem:[#allocation14 + $0x2d0] sm:$0xff] %v4724
            %4857 = vst [vmem:[#allocation14 + $0x2d8] sm:$0xff] %v4725
            %4858 = vst [vmem:[#allocation14 + $0x2e0] sm:$0xff] %v4726
            %4859 = vst [vmem:[#allocation14 + $0x2e8] sm:$0xff] %v4727
            %4860 = vst [vmem:[#allocation14 + $0x2f0] sm:$0xff] %v4728
            %4861 = vst [vmem:[#allocation14 + $0x2f8] sm:$0xff] %v4729
            %4862 = vst [vmem:[#allocation14 + $0x300] sm:$0xff] %v4730
            %4863 = vst [vmem:[#allocation14 + $0x308] sm:$0xff] %v4731
            %4864 = vst [vmem:[#allocation14 + $0x310] sm:$0xff] %v4732
            %4865 = vst [vmem:[#allocation14 + $0x318] sm:$0xff] %v4733
            %4866 = vst [vmem:[#allocation14 + $0x320] sm:$0xff] %v4734
            %4867 = vst [vmem:[#allocation14 + $0x328] sm:$0xff] %v4735
            %4868 = vst [vmem:[#allocation14 + $0x330] sm:$0xff] %v4736
            %4869 = vst [vmem:[#allocation14 + $0x338] sm:$0xff] %v4737
            %4870 = vst [vmem:[#allocation14 + $0x340] sm:$0xff] %v4738
            %4871 = vst [vmem:[#allocation14 + $0x348] sm:$0xff] %v4739
            %4872 = vst [vmem:[#allocation14 + $0x350] sm:$0xff] %v4740
            %4873 = vst [vmem:[#allocation14 + $0x358] sm:$0xff] %v4741
            %4874 = vst [vmem:[#allocation14 + $0x360] sm:$0xff] %v4742
            %4875 = vst [vmem:[#allocation14 + $0x368] sm:$0xff] %v4743
            %4876 = vst [vmem:[#allocation14 + $0x370] sm:$0xff] %v4744
            %4877 = vst [vmem:[#allocation14 + $0x378] sm:$0xff] %v4745
            %4878 = vst [vmem:[#allocation14 + $0x380] sm:$0xff] %v4746
            %4879 = vst [vmem:[#allocation14 + $0x388] sm:$0xff] %v4747
            %4880 = vst [vmem:[#allocation14 + $0x390] sm:$0xff] %v4748
            %4881 = vst [vmem:[#allocation14 + $0x398] sm:$0xff] %v4749
            %4882 = vst [vmem:[#allocation14 + $0x3a0] sm:$0xff] %v4750
            %4883 = vst [vmem:[#allocation14 + $0x3a8] sm:$0xff] %v4751
            %4884 = vst [vmem:[#allocation14 + $0x3b0] sm:$0xff] %v4752
            %4885 = vst [vmem:[#allocation14 + $0x3b8] sm:$0xff] %v4753
            %4886 = vst [vmem:[#allocation14 + $0x3c0] sm:$0xff] %v4754
            %4887 = vst [vmem:[#allocation14 + $0x3c8] sm:$0xff] %v4755
            %4888 = vst [vmem:[#allocation14 + $0x3d0] sm:$0xff] %v4756
            %4889 = vst [vmem:[#allocation14 + $0x3d8] sm:$0xff] %v4757
            %4890 = vst [vmem:[#allocation14 + $0x3e0] sm:$0xff] %v4758
            %4891 = vst [vmem:[#allocation14 + $0x3e8] sm:$0xff] %v4759
            %4892 = vst [vmem:[#allocation14 + $0x3f0] sm:$0xff] %v4760
            %4893 = vst [vmem:[#allocation14 + $0x3f8] sm:$0xff] %v4761
          $region92: #{tpu_custom_call.1} parent=87 // pred_fallthru
            _
          %p4894 = scmp.lt.s32.totalorder %s27, 3
          // Predicated region
          $region93: #{tpu_custom_call.1} parent=87 // pred_check
            %p4895 = pneg %p4894
          $region94: #{tpu_custom_call.1} parent=87 // pred_check_branch
            %4897 = sbr.rel (%p4895) target = $region96
          $region95: #{tpu_custom_call.1} parent=87 // pred_region
            %v4898 = vpack.c.bf16 %v4638, %v4634
            %v4899 = vpack.c.bf16 %v4639, %v4635
            %v4900 = vpack.c.bf16 %v4640, %v4636
            %v4901 = vpack.c.bf16 %v4641, %v4637
            %v4902 = vpack.c.bf16 %v4646, %v4642
            %v4903 = vpack.c.bf16 %v4647, %v4643
            %v4904 = vpack.c.bf16 %v4648, %v4644
            %v4905 = vpack.c.bf16 %v4649, %v4645
            %v4906 = vpack.c.bf16 %v4654, %v4650
            %v4907 = vpack.c.bf16 %v4655, %v4651
            %v4908 = vpack.c.bf16 %v4656, %v4652
            %v4909 = vpack.c.bf16 %v4657, %v4653
            %v4910 = vpack.c.bf16 %v4662, %v4658
            %v4911 = vpack.c.bf16 %v4663, %v4659
            %v4912 = vpack.c.bf16 %v4664, %v4660
            %v4913 = vpack.c.bf16 %v4665, %v4661
            %v4914 = vpack.c.bf16 %v4670, %v4666
            %v4915 = vpack.c.bf16 %v4671, %v4667
            %v4916 = vpack.c.bf16 %v4672, %v4668
            %v4917 = vpack.c.bf16 %v4673, %v4669
            %v4918 = vpack.c.bf16 %v4678, %v4674
            %v4919 = vpack.c.bf16 %v4679, %v4675
            %v4920 = vpack.c.bf16 %v4680, %v4676
            %v4921 = vpack.c.bf16 %v4681, %v4677
            %v4922 = vpack.c.bf16 %v4686, %v4682
            %v4923 = vpack.c.bf16 %v4687, %v4683
            %v4924 = vpack.c.bf16 %v4688, %v4684
            %v4925 = vpack.c.bf16 %v4689, %v4685
            %v4926 = vpack.c.bf16 %v4694, %v4690
            %v4927 = vpack.c.bf16 %v4695, %v4691
            %v4928 = vpack.c.bf16 %v4696, %v4692
            %v4929 = vpack.c.bf16 %v4697, %v4693
            %v4930 = vpack.c.bf16 %v4702, %v4698
            %v4931 = vpack.c.bf16 %v4703, %v4699
            %v4932 = vpack.c.bf16 %v4704, %v4700
            %v4933 = vpack.c.bf16 %v4705, %v4701
            %v4934 = vpack.c.bf16 %v4710, %v4706
            %v4935 = vpack.c.bf16 %v4711, %v4707
            %v4936 = vpack.c.bf16 %v4712, %v4708
            %v4937 = vpack.c.bf16 %v4713, %v4709
            %v4938 = vpack.c.bf16 %v4718, %v4714
            %v4939 = vpack.c.bf16 %v4719, %v4715
            %v4940 = vpack.c.bf16 %v4720, %v4716
            %v4941 = vpack.c.bf16 %v4721, %v4717
            %v4942 = vpack.c.bf16 %v4726, %v4722
            %v4943 = vpack.c.bf16 %v4727, %v4723
            %v4944 = vpack.c.bf16 %v4728, %v4724
            %v4945 = vpack.c.bf16 %v4729, %v4725
            %v4946 = vpack.c.bf16 %v4734, %v4730
            %v4947 = vpack.c.bf16 %v4735, %v4731
            %v4948 = vpack.c.bf16 %v4736, %v4732
            %v4949 = vpack.c.bf16 %v4737, %v4733
            %v4950 = vpack.c.bf16 %v4742, %v4738
            %v4951 = vpack.c.bf16 %v4743, %v4739
            %v4952 = vpack.c.bf16 %v4744, %v4740
            %v4953 = vpack.c.bf16 %v4745, %v4741
            %v4954 = vpack.c.bf16 %v4750, %v4746
            %v4955 = vpack.c.bf16 %v4751, %v4747
            %v4956 = vpack.c.bf16 %v4752, %v4748
            %v4957 = vpack.c.bf16 %v4753, %v4749
            %v4958 = vpack.c.bf16 %v4758, %v4754
            %v4959 = vpack.c.bf16 %v4759, %v4755
            %v4960 = vpack.c.bf16 %v4760, %v4756
            %v4961 = vpack.c.bf16 %v4761, %v4757
            %4962 = vst [vmem:[#allocation2] sm:$0xff] %v4898
            %4963 = vst [vmem:[#allocation2 + $0x8] sm:$0xff] %v4899
            %4964 = vst [vmem:[#allocation2 + $0x10] sm:$0xff] %v4900
            %4965 = vst [vmem:[#allocation2 + $0x18] sm:$0xff] %v4901
            %4966 = vst [vmem:[#allocation2 + $0x20] sm:$0xff] %v4902
            %4967 = vst [vmem:[#allocation2 + $0x28] sm:$0xff] %v4903
            %4968 = vst [vmem:[#allocation2 + $0x30] sm:$0xff] %v4904
            %4969 = vst [vmem:[#allocation2 + $0x38] sm:$0xff] %v4905
            %4970 = vst [vmem:[#allocation2 + $0x40] sm:$0xff] %v4906
            %4971 = vst [vmem:[#allocation2 + $0x48] sm:$0xff] %v4907
            %4972 = vst [vmem:[#allocation2 + $0x50] sm:$0xff] %v4908
            %4973 = vst [vmem:[#allocation2 + $0x58] sm:$0xff] %v4909
            %4974 = vst [vmem:[#allocation2 + $0x60] sm:$0xff] %v4910
            %4975 = vst [vmem:[#allocation2 + $0x68] sm:$0xff] %v4911
            %4976 = vst [vmem:[#allocation2 + $0x70] sm:$0xff] %v4912
            %4977 = vst [vmem:[#allocation2 + $0x78] sm:$0xff] %v4913
            %4978 = vst [vmem:[#allocation2 + $0x80] sm:$0xff] %v4914
            %4979 = vst [vmem:[#allocation2 + $0x88] sm:$0xff] %v4915
            %4980 = vst [vmem:[#allocation2 + $0x90] sm:$0xff] %v4916
            %4981 = vst [vmem:[#allocation2 + $0x98] sm:$0xff] %v4917
            %4982 = vst [vmem:[#allocation2 + $0xa0] sm:$0xff] %v4918
            %4983 = vst [vmem:[#allocation2 + $0xa8] sm:$0xff] %v4919
            %4984 = vst [vmem:[#allocation2 + $0xb0] sm:$0xff] %v4920
            %4985 = vst [vmem:[#allocation2 + $0xb8] sm:$0xff] %v4921
            %4986 = vst [vmem:[#allocation2 + $0xc0] sm:$0xff] %v4922
            %4987 = vst [vmem:[#allocation2 + $0xc8] sm:$0xff] %v4923
            %4988 = vst [vmem:[#allocation2 + $0xd0] sm:$0xff] %v4924
            %4989 = vst [vmem:[#allocation2 + $0xd8] sm:$0xff] %v4925
            %4990 = vst [vmem:[#allocation2 + $0xe0] sm:$0xff] %v4926
            %4991 = vst [vmem:[#allocation2 + $0xe8] sm:$0xff] %v4927
            %4992 = vst [vmem:[#allocation2 + $0xf0] sm:$0xff] %v4928
            %4993 = vst [vmem:[#allocation2 + $0xf8] sm:$0xff] %v4929
            %4994 = vst [vmem:[#allocation2 + $0x100] sm:$0xff] %v4930
            %4995 = vst [vmem:[#allocation2 + $0x108] sm:$0xff] %v4931
            %4996 = vst [vmem:[#allocation2 + $0x110] sm:$0xff] %v4932
            %4997 = vst [vmem:[#allocation2 + $0x118] sm:$0xff] %v4933
            %4998 = vst [vmem:[#allocation2 + $0x120] sm:$0xff] %v4934
            %4999 = vst [vmem:[#allocation2 + $0x128] sm:$0xff] %v4935
            %5000 = vst [vmem:[#allocation2 + $0x130] sm:$0xff] %v4936
            %5001 = vst [vmem:[#allocation2 + $0x138] sm:$0xff] %v4937
            %5002 = vst [vmem:[#allocation2 + $0x140] sm:$0xff] %v4938
            %5003 = vst [vmem:[#allocation2 + $0x148] sm:$0xff] %v4939
            %5004 = vst [vmem:[#allocation2 + $0x150] sm:$0xff] %v4940
            %5005 = vst [vmem:[#allocation2 + $0x158] sm:$0xff] %v4941
            %5006 = vst [vmem:[#allocation2 + $0x160] sm:$0xff] %v4942
            %5007 = vst [vmem:[#allocation2 + $0x168] sm:$0xff] %v4943
            %5008 = vst [vmem:[#allocation2 + $0x170] sm:$0xff] %v4944
            %5009 = vst [vmem:[#allocation2 + $0x178] sm:$0xff] %v4945
            %5010 = vst [vmem:[#allocation2 + $0x180] sm:$0xff] %v4946
            %5011 = vst [vmem:[#allocation2 + $0x188] sm:$0xff] %v4947
            %5012 = vst [vmem:[#allocation2 + $0x190] sm:$0xff] %v4948
            %5013 = vst [vmem:[#allocation2 + $0x198] sm:$0xff] %v4949
            %5014 = vst [vmem:[#allocation2 + $0x1a0] sm:$0xff] %v4950
            %5015 = vst [vmem:[#allocation2 + $0x1a8] sm:$0xff] %v4951
            %5016 = vst [vmem:[#allocation2 + $0x1b0] sm:$0xff] %v4952
            %5017 = vst [vmem:[#allocation2 + $0x1b8] sm:$0xff] %v4953
            %5018 = vst [vmem:[#allocation2 + $0x1c0] sm:$0xff] %v4954
            %5019 = vst [vmem:[#allocation2 + $0x1c8] sm:$0xff] %v4955
            %5020 = vst [vmem:[#allocation2 + $0x1d0] sm:$0xff] %v4956
            %5021 = vst [vmem:[#allocation2 + $0x1d8] sm:$0xff] %v4957
            %5022 = vst [vmem:[#allocation2 + $0x1e0] sm:$0xff] %v4958
            %5023 = vst [vmem:[#allocation2 + $0x1e8] sm:$0xff] %v4959
            %5024 = vst [vmem:[#allocation2 + $0x1f0] sm:$0xff] %v4960
            %5025 = vst [vmem:[#allocation2 + $0x1f8] sm:$0xff] %v4961
          $region96: #{tpu_custom_call.1} parent=87 // pred_fallthru
            _
        $region88: #{tpu_custom_call.1} parent=47 // pred_fallthru
          _
        // Predicated region
        $region97: #{tpu_custom_call.1} parent=47 // pred_check
          %p5026 = pneg %p220
        $region98: #{tpu_custom_call.1} parent=47 // pred_check_branch
          %5028 = sbr.rel (%p5026) target = $region100
        $region99: #{tpu_custom_call.1} parent=47 // pred_region
          %s5030 = ssub.s32 16384, 16384
          %5031 = vsyncadd [#allocation5], %s5030
          %s5032 = sshll.u32 [#allocation14], 4
          %s5033 = int_to_ptr.vmem [resolvable:$true] %s5032
          %5038 = dma.vmem_to_hbm [thread:$0]  %s5033, 16384, %s7, [#allocation5], 512, 512, 32
        $region100: #{tpu_custom_call.1} parent=47 // pred_fallthru
          _
        // Predicated region
        $region101: #{tpu_custom_call.1} parent=47 // pred_check
          %p5039 = pneg %p220
        $region102: #{tpu_custom_call.1} parent=47 // pred_check_branch
          %5041 = sbr.rel (%p5039) target = $region104
        $region103: #{tpu_custom_call.1} parent=47 // pred_region
          %5042 = dma.done [#allocation5], 16384
        $region104: #{tpu_custom_call.1} parent=47 // pred_fallthru
          _
      $region48: #{tpu_custom_call.1} parent=5 // pred_fallthru
        _
      %p5043 = scmp.le.s32.totalorder 2, %s22
      // Predicated region
      $region105: #{tpu_custom_call.1} parent=5 // pred_check
        %p5044 = pneg %p5043
      $region106: #{tpu_custom_call.1} parent=5 // pred_check_branch
        %5046 = sbr.rel (%p5044) target = $region108
      $region107: #{tpu_custom_call.1} parent=5 // pred_region
        %s5047 = ssub.s32 %s22, 2
      $region108: #{tpu_custom_call.1} parent=5 // pred_fallthru
        _
    $region6: #{tpu_custom_call.1} parent=1 // loop_footer
      %s26 = sadd.s32 1, %s22
    $region7: #{tpu_custom_call.1} parent=1 // loop_footer_branch
      %21 = sbr.rel target = $region3
    $region8: #{tpu_custom_call.1} parent=1 // loop_exit
      _
    %5048 = vsyncpa [#allocation4], 1
    %s5049 = scalar_lea.sflag [#allocation4], 1
    %5050 = vsyncpa %s5049, 1
    %5051 = vsyncpa [#allocation7], 1
    %5052 = vsyncpa [#allocation10], 1
    %s5053 = scalar_lea.sflag [#allocation10], 1
    %5054 = vsyncpa %s5053, 1
    %5055 = vsyncpa [#allocation13], 1
    %s5056 = scalar_lea.sflag [#allocation13], 1
    %5057 = vsyncpa %s5056, 1
    %5058 = vsyncpa [#allocation5], 1
    %s5059 = scalar_lea.sflag [#allocation5], 1
    %5060 = vsyncpa %s5059, 1

</llo_original>
